<compile_context>
chip_gen: v7x
topology: tpu7x:2x2x1
jax: 0.10.0
libtpu: 0.0.40
codegen_flags: <defaults>
</compile_context>

<pallas_src>
import jax
import jax.numpy as jnp
from jax import lax
from jax.experimental import pallas as pl
from jax.experimental.pallas import tpu as pltpu

H = 8            # feature-map height  (input_H / 32 for MobileNetV3)
W = 8            # feature-map width
C_IN = 960       # MobileNetV3-Large feature channels
C_MID = 256      # conv_reduce output channels
C_HEAD = 32      # YOLOHead first conv channels
NUM_ANCHORS = 3
NUM_CLASSES = 2
C_OUT = NUM_ANCHORS * (5 + NUM_CLASSES)   # 21
BN_EPS = 1e-5


def yolo_head_kernel(feat_ref, wr_ref, br_ref, w3f_ref, bh_ref, w1_ref, b1_ref,
                     out_ref, accp_ref):
    bt = feat_ref.shape[0]
    m = bt * H * W

    # conv_reduce: 1x1 conv == channel matmul on the MXU (bf16 in, f32 acc).
    f = feat_ref[...].reshape(m, C_IN)
    r = jnp.dot(f, wr_ref[...], preferred_element_type=jnp.float32) + br_ref[...]

    # 3x3 conv: one lane-dense matmul producing all 9 taps at once ...
    big = jnp.dot(r.astype(jnp.bfloat16), w3f_ref[...],
                  preferred_element_type=jnp.float32)            # (m, 9*C_HEAD)
    big = big.reshape(bt, H, W, 9 * C_HEAD)

    # ... then 9 spatial shift-adds into a padded accumulator. Tap (ky,kx)
    # (dy=ky-1, dx=kx-1) computed at (h,w) contributes to output (h-dy, w-dx);
    # in padded coords the full (H,W) slab lands at [1-dy:1-dy+H, 1-dx:1-dx+W].
    # The center tap initializes the interior; border cells are never read.
    accp_ref[:, 1:1 + H, 1:1 + W, :] = big[..., 4 * C_HEAD:5 * C_HEAD]
    k = 0
    for ky in range(3):
        for kx in range(3):
            if not (ky == 1 and kx == 1):
                dy, dx = ky - 1, kx - 1
                accp_ref[:, 1 - dy:1 - dy + H, 1 - dx:1 - dx + W, :] += (
                    big[..., k * C_HEAD:(k + 1) * C_HEAD])
            k += 1

    # Bias (with folded BatchNorm) + ReLU, then final 1x1 conv (32 -> 21).
    y = accp_ref[:, 1:1 + H, 1:1 + W, :].reshape(m, C_HEAD)
    y = jnp.maximum(y + bh_ref[...], 0.0)
    o = jnp.dot(y, w1_ref[...], preferred_element_type=jnp.float32) + b1_ref[...]
    out_ref[...] = o.reshape(bt, H, W, C_OUT)


def yolo_head_pallas(feat_nhwc, params, block_b=8):
    wr, br, w3f, bh, w1, b1 = params
    n = feat_nhwc.shape[0]
    bt = min(block_b, n)
    n_tiles = -(-n // bt)
    n_pad = n_tiles * bt

    feat = feat_nhwc.astype(jnp.bfloat16)
    if n_pad != n:
        feat = jnp.pad(feat, ((0, n_pad - n), (0, 0), (0, 0), (0, 0)))

    def full_spec(shape):
        nd = len(shape)
        return pl.BlockSpec(shape, lambda b, _nd=nd: (0,) * _nd)

    in_specs = [
        pl.BlockSpec((bt, H, W, C_IN), lambda b: (b, 0, 0, 0)),  # features (bf16)
        full_spec((C_IN, C_MID)),          # w_reduce (bf16)
        full_spec((1, C_MID)),             # b_reduce (f32)
        full_spec((C_MID, 9 * C_HEAD)),    # w3 fused, lane-dense (bf16)
        full_spec((1, C_HEAD)),            # b3 with BN folded in (f32)
        full_spec((C_HEAD, C_OUT)),        # w1 (f32)
        full_spec((1, C_OUT)),             # b1 (f32)
    ]
    out_specs = pl.BlockSpec((bt, H, W, C_OUT), lambda b: (b, 0, 0, 0))

    out = pl.pallas_call(
        yolo_head_kernel,
        out_shape=jax.ShapeDtypeStruct((n_pad, H, W, C_OUT), jnp.float32),
        grid_spec=pltpu.PrefetchScalarGridSpec(
            num_scalar_prefetch=0,
            grid=(n_tiles,),
            in_specs=in_specs,
            out_specs=out_specs,
            scratch_shapes=[
                pltpu.VMEM((bt, H + 2, W + 2, C_HEAD), jnp.float32)],
        ),
        compiler_params=pltpu.CompilerParams(
            dimension_semantics=("parallel",)),
    )(feat, wr, br, w3f, bh, w1, b1)
    return out[:n]


def init_raw_params(key):
    ks = jax.random.split(key, 10)
    wr = 0.02 * jax.random.normal(ks[0], (C_IN, C_MID), jnp.float32)
    br = 0.01 * jax.random.normal(ks[1], (1, C_MID), jnp.float32)
    w3 = 0.02 * jax.random.normal(ks[2], (3, 3, C_MID, C_HEAD), jnp.float32)
    b3 = 0.01 * jax.random.normal(ks[3], (1, C_HEAD), jnp.float32)
    gamma = 1.0 + 0.1 * jax.random.normal(ks[4], (1, C_HEAD), jnp.float32)
    beta = 0.1 * jax.random.normal(ks[5], (1, C_HEAD), jnp.float32)
    mean = 0.1 * jax.random.normal(ks[6], (1, C_HEAD), jnp.float32)
    var = 1.0 + 0.1 * jnp.abs(jax.random.normal(ks[7], (1, C_HEAD), jnp.float32))
    w1 = 0.02 * jax.random.normal(ks[8], (C_HEAD, C_OUT), jnp.float32)
    b1 = 0.01 * jax.random.normal(ks[9], (1, C_OUT), jnp.float32)
    return (wr, br, w3, b3, gamma, beta, mean, var, w1, b1)


def prepare_params(raw):
    """Fold BatchNorm (eval) into the 3x3 conv, flatten w3 lane-dense, cast bf16."""
    wr, br, w3, b3, gamma, beta, mean, var, w1, b1 = raw
    scale = gamma / jnp.sqrt(var + BN_EPS)          # (1, C_HEAD)
    shift = beta - mean * scale
    w3s = w3 * scale                                # fold BN into conv weight
    bh = b3 * scale + shift                         # fold BN into conv bias
    # lane-dense (C_MID, 9*C_HEAD); column block k = ky*3 + kx.
    w3f = jnp.transpose(w3s, (2, 0, 1, 3)).reshape(C_MID, 9 * C_HEAD)
    return (wr.astype(jnp.bfloat16), br,
            w3f.astype(jnp.bfloat16), bh,
            w1, b1)


def ref_forward_nhwc(feat_nhwc, raw):
    """Plain-JAX f32 reference of the same head (conv_reduce + YOLOHead)."""
    wr, br, w3, b3, gamma, beta, mean, var, w1, b1 = raw
    r = jnp.einsum('nhwc,cd->nhwd', feat_nhwc, wr) + br
    y = lax.conv_general_dilated(
        r, w3, window_strides=(1, 1), padding='SAME',
        dimension_numbers=('NHWC', 'HWIO', 'NHWC')) + b3
    scale = gamma / jnp.sqrt(var + BN_EPS)
    shift = beta - mean * scale
    y = jnp.maximum(y * scale + shift, 0.0)
    return jnp.einsum('nhwc,cd->nhwd', y, w1) + b1


def yolo_face_detector_forward(features_nchw, params, block_b=8):
    """features_nchw: (N, 960, H, W) backbone output; returns (N, 21, H, W)."""
    feat_nhwc = jnp.transpose(features_nchw, (0, 2, 3, 1))
    out_nhwc = yolo_head_pallas(feat_nhwc, params, block_b=block_b)
    return jnp.transpose(out_nhwc, (0, 3, 1, 2))


if __name__ == "__main__":
    key = jax.random.PRNGKey(0)
    k_feat, k_param = jax.random.split(key)

    # Synthetic MobileNetV3-Large feature map (NCHW, as PyTorch would produce).
    N = 2
    features = jax.random.normal(k_feat, (N, C_IN, H, W), jnp.float32)
    raw_params = init_raw_params(k_param)
    params = prepare_params(raw_params)

    out = yolo_face_detector_forward(features, params)
    out = jax.block_until_ready(out)

    assert out.shape == (N, C_OUT, H, W), out.shape

    # Sanity-check against a plain-JAX f32 reference of the same head
    # (kernel uses bf16 inputs with f32 accumulation -> modest tolerance).
    ref = ref_forward_nhwc(jnp.transpose(features, (0, 2, 3, 1)), raw_params)
    ref = jnp.transpose(ref, (0, 3, 1, 2))
    assert jnp.all(jnp.isfinite(out))
    assert jnp.allclose(out, ref, rtol=5e-2, atol=5e-3), float(
        jnp.max(jnp.abs(out - ref)))

    print("KERNEL_OK")
</pallas_src>

<mosaic_0001>
module attributes {stable_mosaic.version = 11 : i64} {
  func.func @yolo_head_kernel(%arg0: i32, %arg1: memref<2x8x8x960xbf16, #tpu.memory_space<vmem>>, %arg2: memref<960x256xbf16, #tpu.memory_space<vmem>>, %arg3: memref<1x256xf32, #tpu.memory_space<vmem>>, %arg4: memref<256x288xbf16, #tpu.memory_space<vmem>>, %arg5: memref<1x32xf32, #tpu.memory_space<vmem>>, %arg6: memref<32x21xf32, #tpu.memory_space<vmem>>, %arg7: memref<1x21xf32, #tpu.memory_space<vmem>>, %arg8: memref<2x8x8x21xf32, #tpu.memory_space<vmem>>, %arg9: memref<2x10x10x32xf32, #tpu.memory_space<vmem>>) attributes {dimension_semantics = [#tpu.dimension_semantics<parallel>], iteration_bounds = array<i64: 1>, scalar_prefetch = 0 : i64, scratch_operands = 1 : i64, tpu.core_type = #tpu.core_type<tc>, window_params = [{transform_indices = @transform_0, window_bounds = array<i64: 2, 8, 8, 960>}, {pipeline_mode = #tpu.pipeline_mode<synchronous>, transform_indices = @transform_1, window_bounds = array<i64: 960, 256>}, {pipeline_mode = #tpu.pipeline_mode<synchronous>, transform_indices = @transform_2, window_bounds = array<i64: 1, 256>}, {pipeline_mode = #tpu.pipeline_mode<synchronous>, transform_indices = @transform_3, window_bounds = array<i64: 256, 288>}, {pipeline_mode = #tpu.pipeline_mode<synchronous>, transform_indices = @transform_4, window_bounds = array<i64: 1, 32>}, {pipeline_mode = #tpu.pipeline_mode<synchronous>, transform_indices = @transform_5, window_bounds = array<i64: 32, 21>}, {pipeline_mode = #tpu.pipeline_mode<synchronous>, transform_indices = @transform_6, window_bounds = array<i64: 1, 21>}, {transform_indices = @transform_7, window_bounds = array<i64: 2, 8, 8, 21>}]} {
    %c0 = arith.constant 0 : index
    %c0_0 = arith.constant 0 : index
    %c0_1 = arith.constant 0 : index
    %c0_2 = arith.constant 0 : index
    %0 = vector.load %arg1[%c0, %c0_0, %c0_1, %c0_2] : memref<2x8x8x960xbf16, #tpu.memory_space<vmem>>, vector<2x8x8x960xbf16>
    %1 = vector.shape_cast %0 : vector<2x8x8x960xbf16> to vector<128x960xbf16>
    %c0_3 = arith.constant 0 : index
    %c0_4 = arith.constant 0 : index
    %2 = vector.load %arg2[%c0_3, %c0_4] : memref<960x256xbf16, #tpu.memory_space<vmem>>, vector<960x256xbf16>
    %cst = arith.constant dense<0.000000e+00> : vector<128x256xf32>
    %3 = tpu.matmul %1, %2, %cst {dimension_numbers = #tpu.dot_dimension_numbers<[1], [0], [0], [1], [0, 0, 1, 1], [], []>} : vector<128x960xbf16>, vector<960x256xbf16>, vector<128x256xf32> -> vector<128x256xf32>
    %c0_5 = arith.constant 0 : index
    %c0_6 = arith.constant 0 : index
    %4 = vector.load %arg3[%c0_5, %c0_6] : memref<1x256xf32, #tpu.memory_space<vmem>>, vector<1x256xf32>
    %5 = vector.broadcast %4 : vector<1x256xf32> to vector<128x256xf32>
    %6 = arith.addf %3, %5 : vector<128x256xf32>
    %7 = arith.truncf %6 : vector<128x256xf32> to vector<128x256xbf16>
    %c0_7 = arith.constant 0 : index
    %c0_8 = arith.constant 0 : index
    %8 = vector.load %arg4[%c0_7, %c0_8] : memref<256x288xbf16, #tpu.memory_space<vmem>>, vector<256x288xbf16>
    %cst_9 = arith.constant dense<0.000000e+00> : vector<128x288xf32>
    %9 = tpu.matmul %7, %8, %cst_9 {dimension_numbers = #tpu.dot_dimension_numbers<[1], [0], [0], [1], [0, 0, 1, 1], [], []>} : vector<128x256xbf16>, vector<256x288xbf16>, vector<128x288xf32> -> vector<128x288xf32>
    %10 = vector.shape_cast %9 : vector<128x288xf32> to vector<2x8x8x288xf32>
    %11 = vector.extract_strided_slice %10 {offsets = [0, 0, 0, 128], sizes = [2, 8, 8, 32], strides = [1, 1, 1, 1]} : vector<2x8x8x288xf32> to vector<2x8x8x32xf32>
    %c0_10 = arith.constant 0 : index
    %c1 = arith.constant 1 : index
    %c1_11 = arith.constant 1 : index
    %c0_12 = arith.constant 0 : index
    %12 = vector.load %arg9[%c0_10, %c1, %c1_11, %c0_12] : memref<2x10x10x32xf32, #tpu.memory_space<vmem>>, vector<2x8x8x32xf32>
    tpu.vector_store %arg9[%c0_10, %c1, %c1_11, %c0_12], %11 {strides = array<i32>} : memref<2x10x10x32xf32, #tpu.memory_space<vmem>>, vector<2x8x8x32xf32>,
    %c0_13 = arith.constant 0 : index
    %c2 = arith.constant 2 : index
    %c2_14 = arith.constant 2 : index
    %c0_15 = arith.constant 0 : index
    %13 = vector.load %arg9[%c0_13, %c2, %c2_14, %c0_15] : memref<2x10x10x32xf32, #tpu.memory_space<vmem>>, vector<2x8x8x32xf32>
    %14 = vector.extract_strided_slice %10 {offsets = [0, 0, 0, 0], sizes = [2, 8, 8, 32], strides = [1, 1, 1, 1]} : vector<2x8x8x288xf32> to vector<2x8x8x32xf32>
    %15 = arith.addf %13, %14 : vector<2x8x8x32xf32>
    %c0_16 = arith.constant 0 : index
    %c2_17 = arith.constant 2 : index
    %c2_18 = arith.constant 2 : index
    %c0_19 = arith.constant 0 : index
    %16 = vector.load %arg9[%c0_16, %c2_17, %c2_18, %c0_19] : memref<2x10x10x32xf32, #tpu.memory_space<vmem>>, vector<2x8x8x32xf32>
    tpu.vector_store %arg9[%c0_16, %c2_17, %c2_18, %c0_19], %15 {strides = array<i32>} : memref<2x10x10x32xf32, #tpu.memory_space<vmem>>, vector<2x8x8x32xf32>,
    %c0_20 = arith.constant 0 : index
    %c2_21 = arith.constant 2 : index
    %c1_22 = arith.constant 1 : index
    %c0_23 = arith.constant 0 : index
    %17 = vector.load %arg9[%c0_20, %c2_21, %c1_22, %c0_23] : memref<2x10x10x32xf32, #tpu.memory_space<vmem>>, vector<2x8x8x32xf32>
    %18 = vector.extract_strided_slice %10 {offsets = [0, 0, 0, 32], sizes = [2, 8, 8, 32], strides = [1, 1, 1, 1]} : vector<2x8x8x288xf32> to vector<2x8x8x32xf32>
    %19 = arith.addf %17, %18 : vector<2x8x8x32xf32>
    %c0_24 = arith.constant 0 : index
    %c2_25 = arith.constant 2 : index
    %c1_26 = arith.constant 1 : index
    %c0_27 = arith.constant 0 : index
    %20 = vector.load %arg9[%c0_24, %c2_25, %c1_26, %c0_27] : memref<2x10x10x32xf32, #tpu.memory_space<vmem>>, vector<2x8x8x32xf32>
    tpu.vector_store %arg9[%c0_24, %c2_25, %c1_26, %c0_27], %19 {strides = array<i32>} : memref<2x10x10x32xf32, #tpu.memory_space<vmem>>, vector<2x8x8x32xf32>,
    %c0_28 = arith.constant 0 : index
    %c2_29 = arith.constant 2 : index
    %c0_30 = arith.constant 0 : index
    %c0_31 = arith.constant 0 : index
    %21 = vector.load %arg9[%c0_28, %c2_29, %c0_30, %c0_31] : memref<2x10x10x32xf32, #tpu.memory_space<vmem>>, vector<2x8x8x32xf32>
    %22 = vector.extract_strided_slice %10 {offsets = [0, 0, 0, 64], sizes = [2, 8, 8, 32], strides = [1, 1, 1, 1]} : vector<2x8x8x288xf32> to vector<2x8x8x32xf32>
    %23 = arith.addf %21, %22 : vector<2x8x8x32xf32>
    %c0_32 = arith.constant 0 : index
    %c2_33 = arith.constant 2 : index
    %c0_34 = arith.constant 0 : index
    %c0_35 = arith.constant 0 : index
    %24 = vector.load %arg9[%c0_32, %c2_33, %c0_34, %c0_35] : memref<2x10x10x32xf32, #tpu.memory_space<vmem>>, vector<2x8x8x32xf32>
    tpu.vector_store %arg9[%c0_32, %c2_33, %c0_34, %c0_35], %23 {strides = array<i32>} : memref<2x10x10x32xf32, #tpu.memory_space<vmem>>, vector<2x8x8x32xf32>,
    %c0_36 = arith.constant 0 : index
    %c1_37 = arith.constant 1 : index
    %c2_38 = arith.constant 2 : index
    %c0_39 = arith.constant 0 : index
    %25 = vector.load %arg9[%c0_36, %c1_37, %c2_38, %c0_39] : memref<2x10x10x32xf32, #tpu.memory_space<vmem>>, vector<2x8x8x32xf32>
    %26 = vector.extract_strided_slice %10 {offsets = [0, 0, 0, 96], sizes = [2, 8, 8, 32], strides = [1, 1, 1, 1]} : vector<2x8x8x288xf32> to vector<2x8x8x32xf32>
    %27 = arith.addf %25, %26 : vector<2x8x8x32xf32>
    %c0_40 = arith.constant 0 : index
    %c1_41 = arith.constant 1 : index
    %c2_42 = arith.constant 2 : index
    %c0_43 = arith.constant 0 : index
    %28 = vector.load %arg9[%c0_40, %c1_41, %c2_42, %c0_43] : memref<2x10x10x32xf32, #tpu.memory_space<vmem>>, vector<2x8x8x32xf32>
    tpu.vector_store %arg9[%c0_40, %c1_41, %c2_42, %c0_43], %27 {strides = array<i32>} : memref<2x10x10x32xf32, #tpu.memory_space<vmem>>, vector<2x8x8x32xf32>,
    %c0_44 = arith.constant 0 : index
    %c1_45 = arith.constant 1 : index
    %c0_46 = arith.constant 0 : index
    %c0_47 = arith.constant 0 : index
    %29 = vector.load %arg9[%c0_44, %c1_45, %c0_46, %c0_47] : memref<2x10x10x32xf32, #tpu.memory_space<vmem>>, vector<2x8x8x32xf32>
    %30 = vector.extract_strided_slice %10 {offsets = [0, 0, 0, 160], sizes = [2, 8, 8, 32], strides = [1, 1, 1, 1]} : vector<2x8x8x288xf32> to vector<2x8x8x32xf32>
    %31 = arith.addf %29, %30 : vector<2x8x8x32xf32>
    %c0_48 = arith.constant 0 : index
    %c1_49 = arith.constant 1 : index
    %c0_50 = arith.constant 0 : index
    %c0_51 = arith.constant 0 : index
    %32 = vector.load %arg9[%c0_48, %c1_49, %c0_50, %c0_51] : memref<2x10x10x32xf32, #tpu.memory_space<vmem>>, vector<2x8x8x32xf32>
    tpu.vector_store %arg9[%c0_48, %c1_49, %c0_50, %c0_51], %31 {strides = array<i32>} : memref<2x10x10x32xf32, #tpu.memory_space<vmem>>, vector<2x8x8x32xf32>,
    %c0_52 = arith.constant 0 : index
    %c0_53 = arith.constant 0 : index
    %c2_54 = arith.constant 2 : index
    %c0_55 = arith.constant 0 : index
    %33 = vector.load %arg9[%c0_52, %c0_53, %c2_54, %c0_55] : memref<2x10x10x32xf32, #tpu.memory_space<vmem>>, vector<2x8x8x32xf32>
    %34 = vector.extract_strided_slice %10 {offsets = [0, 0, 0, 192], sizes = [2, 8, 8, 32], strides = [1, 1, 1, 1]} : vector<2x8x8x288xf32> to vector<2x8x8x32xf32>
    %35 = arith.addf %33, %34 : vector<2x8x8x32xf32>
    %c0_56 = arith.constant 0 : index
    %c0_57 = arith.constant 0 : index
    %c2_58 = arith.constant 2 : index
    %c0_59 = arith.constant 0 : index
    %36 = vector.load %arg9[%c0_56, %c0_57, %c2_58, %c0_59] : memref<2x10x10x32xf32, #tpu.memory_space<vmem>>, vector<2x8x8x32xf32>
    tpu.vector_store %arg9[%c0_56, %c0_57, %c2_58, %c0_59], %35 {strides = array<i32>} : memref<2x10x10x32xf32, #tpu.memory_space<vmem>>, vector<2x8x8x32xf32>,
    %c0_60 = arith.constant 0 : index
    %c0_61 = arith.constant 0 : index
    %c1_62 = arith.constant 1 : index
    %c0_63 = arith.constant 0 : index
    %37 = vector.load %arg9[%c0_60, %c0_61, %c1_62, %c0_63] : memref<2x10x10x32xf32, #tpu.memory_space<vmem>>, vector<2x8x8x32xf32>
    %38 = vector.extract_strided_slice %10 {offsets = [0, 0, 0, 224], sizes = [2, 8, 8, 32], strides = [1, 1, 1, 1]} : vector<2x8x8x288xf32> to vector<2x8x8x32xf32>
    %39 = arith.addf %37, %38 : vector<2x8x8x32xf32>
    %c0_64 = arith.constant 0 : index
    %c0_65 = arith.constant 0 : index
    %c1_66 = arith.constant 1 : index
    %c0_67 = arith.constant 0 : index
    %40 = vector.load %arg9[%c0_64, %c0_65, %c1_66, %c0_67] : memref<2x10x10x32xf32, #tpu.memory_space<vmem>>, vector<2x8x8x32xf32>
    tpu.vector_store %arg9[%c0_64, %c0_65, %c1_66, %c0_67], %39 {strides = array<i32>} : memref<2x10x10x32xf32, #tpu.memory_space<vmem>>, vector<2x8x8x32xf32>,
    %c0_68 = arith.constant 0 : index
    %c0_69 = arith.constant 0 : index
    %c0_70 = arith.constant 0 : index
    %c0_71 = arith.constant 0 : index
    %41 = vector.load %arg9[%c0_68, %c0_69, %c0_70, %c0_71] : memref<2x10x10x32xf32, #tpu.memory_space<vmem>>, vector<2x8x8x32xf32>
    %42 = vector.extract_strided_slice %10 {offsets = [0, 0, 0, 256], sizes = [2, 8, 8, 32], strides = [1, 1, 1, 1]} : vector<2x8x8x288xf32> to vector<2x8x8x32xf32>
    %43 = arith.addf %41, %42 : vector<2x8x8x32xf32>
    %c0_72 = arith.constant 0 : index
    %c0_73 = arith.constant 0 : index
    %c0_74 = arith.constant 0 : index
    %c0_75 = arith.constant 0 : index
    %44 = vector.load %arg9[%c0_72, %c0_73, %c0_74, %c0_75] : memref<2x10x10x32xf32, #tpu.memory_space<vmem>>, vector<2x8x8x32xf32>
    tpu.vector_store %arg9[%c0_72, %c0_73, %c0_74, %c0_75], %43 {strides = array<i32>} : memref<2x10x10x32xf32, #tpu.memory_space<vmem>>, vector<2x8x8x32xf32>,
    %c0_76 = arith.constant 0 : index
    %c1_77 = arith.constant 1 : index
    %c1_78 = arith.constant 1 : index
    %c0_79 = arith.constant 0 : index
    %45 = vector.load %arg9[%c0_76, %c1_77, %c1_78, %c0_79] : memref<2x10x10x32xf32, #tpu.memory_space<vmem>>, vector<2x8x8x32xf32>
    %46 = vector.shape_cast %45 : vector<2x8x8x32xf32> to vector<128x32xf32>
    %c0_80 = arith.constant 0 : index
    %c0_81 = arith.constant 0 : index
    %47 = vector.load %arg5[%c0_80, %c0_81] : memref<1x32xf32, #tpu.memory_space<vmem>>, vector<1x32xf32>
    %48 = vector.broadcast %47 : vector<1x32xf32> to vector<128x32xf32>
    %49 = arith.addf %46, %48 : vector<128x32xf32>
    %cst_82 = arith.constant 0.000000e+00 : f32
    %50 = vector.broadcast %cst_82 : f32 to vector<128x32xf32>
    %51 = arith.maximumf %49, %50 : vector<128x32xf32>
    %c0_83 = arith.constant 0 : index
    %c0_84 = arith.constant 0 : index
    %52 = vector.load %arg6[%c0_83, %c0_84] : memref<32x21xf32, #tpu.memory_space<vmem>>, vector<32x21xf32>
    %cst_85 = arith.constant dense<0.000000e+00> : vector<128x21xf32>
    %53 = tpu.matmul %51, %52, %cst_85 {dimension_numbers = #tpu.dot_dimension_numbers<[1], [0], [0], [1], [0, 0, 1, 1], [], []>} : vector<128x32xf32>, vector<32x21xf32>, vector<128x21xf32> -> vector<128x21xf32>
    %c0_86 = arith.constant 0 : index
    %c0_87 = arith.constant 0 : index
    %54 = vector.load %arg7[%c0_86, %c0_87] : memref<1x21xf32, #tpu.memory_space<vmem>>, vector<1x21xf32>
    %55 = vector.broadcast %54 : vector<1x21xf32> to vector<128x21xf32>
    %56 = arith.addf %53, %55 : vector<128x21xf32>
    %57 = vector.shape_cast %56 : vector<128x21xf32> to vector<2x8x8x21xf32>
    %c0_88 = arith.constant 0 : index
    %c0_89 = arith.constant 0 : index
    %c0_90 = arith.constant 0 : index
    %c0_91 = arith.constant 0 : index
    %58 = vector.load %arg8[%c0_88, %c0_89, %c0_90, %c0_91] : memref<2x8x8x21xf32, #tpu.memory_space<vmem>>, vector<2x8x8x21xf32>
    tpu.vector_store %arg8[%c0_88, %c0_89, %c0_90, %c0_91], %57 {strides = array<i32>} : memref<2x8x8x21xf32, #tpu.memory_space<vmem>>, vector<2x8x8x21xf32>,
    return
  }
  func.func @transform_0(%arg0: i32) -> (i32, i32, i32, i32) {
    %c0_i32 = arith.constant 0 : i32
    %c0_i32_0 = arith.constant 0 : i32
    %c0_i32_1 = arith.constant 0 : i32
    %c0_i32_2 = arith.constant 0 : i32
    return %arg0, %c0_i32, %c0_i32_0, %c0_i32_1 : i32, i32, i32, i32
  }
  func.func @transform_1(%arg0: i32) -> (i32, i32) {
    %c0_i32 = arith.constant 0 : i32
    %c0_i32_0 = arith.constant 0 : i32
    %c0_i32_1 = arith.constant 0 : i32
    return %c0_i32, %c0_i32_0 : i32, i32
  }
  func.func @transform_2(%arg0: i32) -> (i32, i32) {
    %c0_i32 = arith.constant 0 : i32
    %c0_i32_0 = arith.constant 0 : i32
    %c0_i32_1 = arith.constant 0 : i32
    return %c0_i32, %c0_i32_0 : i32, i32
  }
  func.func @transform_3(%arg0: i32) -> (i32, i32) {
    %c0_i32 = arith.constant 0 : i32
    %c0_i32_0 = arith.constant 0 : i32
    %c0_i32_1 = arith.constant 0 : i32
    return %c0_i32, %c0_i32_0 : i32, i32
  }
  func.func @transform_4(%arg0: i32) -> (i32, i32) {
    %c0_i32 = arith.constant 0 : i32
    %c0_i32_0 = arith.constant 0 : i32
    %c0_i32_1 = arith.constant 0 : i32
    return %c0_i32, %c0_i32_0 : i32, i32
  }
  func.func @transform_5(%arg0: i32) -> (i32, i32) {
    %c0_i32 = arith.constant 0 : i32
    %c0_i32_0 = arith.constant 0 : i32
    %c0_i32_1 = arith.constant 0 : i32
    return %c0_i32, %c0_i32_0 : i32, i32
  }
  func.func @transform_6(%arg0: i32) -> (i32, i32) {
    %c0_i32 = arith.constant 0 : i32
    %c0_i32_0 = arith.constant 0 : i32
    %c0_i32_1 = arith.constant 0 : i32
    return %c0_i32, %c0_i32_0 : i32, i32
  }
  func.func @transform_7(%arg0: i32) -> (i32, i32, i32, i32) {
    %c0_i32 = arith.constant 0 : i32
    %c0_i32_0 = arith.constant 0 : i32
    %c0_i32_1 = arith.constant 0 : i32
    %c0_i32_2 = arith.constant 0 : i32
    return %arg0, %c0_i32, %c0_i32_0, %c0_i32_1 : i32, i32, i32, i32
  }
}

</mosaic_0001>

<llo_original>
// kernel: tpu_custom_call.1
$region0: #{tpu_custom_call.1}
  #allocation0 [shape = 'u32[]', space=smem, size = 0x4, offset = 0x4, fixed_abs, tag = 'smem constant byte address 0x4 - core index']
  #allocation1 [shape = 'u32[144,128]{1,0:T(1,128)}', space=vmem, size = 0x12000, scoped, tag = 'internal scratch']
  #allocation2 [shape = 'f32[2,10,10,32]{3,2,1,0:T(8,128)}', space=vmem, size = 0x28000, scoped, tag = 'scratch operand']
  %s0 = inlined_call_operand.vmem [shape: bf16[2,8,8,960], index: 0, kind: input, shape index: {}]
  %s1 = inlined_call_operand.hbm [shape: bf16[960,256], index: 1, kind: input, shape index: {}]
  %s2 = inlined_call_operand.vmem [shape: f32[1,256], index: 2, kind: input, shape index: {}]
  %s3 = inlined_call_operand.vmem [shape: bf16[256,288], index: 3, kind: input, shape index: {}]
  %s4 = inlined_call_operand.vmem [shape: f32[1,32], index: 4, kind: input, shape index: {}]
  %s5 = inlined_call_operand.vmem [shape: f32[32,21], index: 5, kind: input, shape index: {}]
  %s6 = inlined_call_operand.vmem [shape: f32[1,21], index: 6, kind: input, shape index: {}]
  %s7 = inlined_call_operand.hbm [shape: f32[2,8,8,21], index: 7, kind: output, shape index: {}]
  %s8 = sld [smem:[#allocation0]]
  $region42: #{tpu_custom_call.1} parent=0
    _
  %s10 = ssub.s32 1, %s8
  %s11 = scalar_select 0, %s10, %s8
  $region1: #{tpu_custom_call.1} parent=0
    #allocation3 [shape = 'u8[491520]{0}', space=vmem, size = 0x78000, scoped, tag = 'input window, operand 1, single buffered']
    #allocation4 [shape = 's32[1]{0}', space=sflag, size = 0x4, scoped, tag = 'scoped memory for tpu_custom_call.1']
    #allocation5 [shape = 's32[1]{0}', space=sflag, size = 0x4, scoped, tag = 'scoped memory for tpu_custom_call.1']
    #allocation6 [shape = 'u8[65536]{0}', space=vmem, size = 0x10000, scoped, tag = 'output window, operand 0, single buffered']
    %12 = vsyncpa [#allocation4], 0
    %13 = vsyncpa [#allocation5], 0
    // Predicated region
    $region2: #{tpu_custom_call.1} parent=1 // pred_check
      _
    $region3: #{tpu_custom_call.1} parent=1 // pred_check_branch
      %15 = sbr.rel (0) target = $region5
    $region4: #{tpu_custom_call.1} parent=1 // pred_region
      _
    $region5: #{tpu_custom_call.1} parent=1 // pred_fallthru
      _
    // Predicated region
    $region6: #{tpu_custom_call.1} parent=1 // pred_check
      _
    $region7: #{tpu_custom_call.1} parent=1 // pred_check_branch
      %17 = sbr.rel (0) target = $region9
    $region8: #{tpu_custom_call.1} parent=1 // pred_region
      %s19 = ssub.s32 15360, 15360
      %20 = vsyncadd [#allocation4], %s19
      %s21 = sshll.u32 [#allocation3], 4
      %s22 = int_to_ptr.vmem [resolvable:$true] %s21
      %27 = dma.hbm_to_vmem [thread:$0]  %s1, 15360, %s22, [#allocation4], 128, 128, 8
    $region9: #{tpu_custom_call.1} parent=1 // pred_fallthru
      _
    // Predicated region
    $region10: #{tpu_custom_call.1} parent=1 // pred_check
      _
    $region11: #{tpu_custom_call.1} parent=1 // pred_check_branch
      %29 = sbr.rel (0) target = $region13
    $region12: #{tpu_custom_call.1} parent=1 // pred_region
      _
    $region13: #{tpu_custom_call.1} parent=1 // pred_fallthru
      _
    // Predicated region
    $region14: #{tpu_custom_call.1} parent=1 // pred_check
      _
    $region15: #{tpu_custom_call.1} parent=1 // pred_check_branch
      %31 = sbr.rel (0) target = $region17
    $region16: #{tpu_custom_call.1} parent=1 // pred_region
      _
    $region17: #{tpu_custom_call.1} parent=1 // pred_fallthru
      _
    // Predicated region
    $region18: #{tpu_custom_call.1} parent=1 // pred_check
      _
    $region19: #{tpu_custom_call.1} parent=1 // pred_check_branch
      %33 = sbr.rel (0) target = $region21
    $region20: #{tpu_custom_call.1} parent=1 // pred_region
      _
    $region21: #{tpu_custom_call.1} parent=1 // pred_fallthru
      _
    // Predicated region
    $region22: #{tpu_custom_call.1} parent=1 // pred_check
      _
    $region23: #{tpu_custom_call.1} parent=1 // pred_check_branch
      %35 = sbr.rel (0) target = $region25
    $region24: #{tpu_custom_call.1} parent=1 // pred_region
      _
    $region25: #{tpu_custom_call.1} parent=1 // pred_fallthru
      _
    // Predicated region
    $region26: #{tpu_custom_call.1} parent=1 // pred_check
      _
    $region27: #{tpu_custom_call.1} parent=1 // pred_check_branch
      %37 = sbr.rel (0) target = $region29
    $region28: #{tpu_custom_call.1} parent=1 // pred_region
      _
    $region29: #{tpu_custom_call.1} parent=1 // pred_fallthru
      _
    // Predicated region
    $region30: #{tpu_custom_call.1} parent=1 // pred_check
      _
    $region31: #{tpu_custom_call.1} parent=1 // pred_check_branch
      %39 = sbr.rel (0) target = $region33
    $region32: #{tpu_custom_call.1} parent=1 // pred_region
      %40 = dma.done [#allocation4], 15360
    $region33: #{tpu_custom_call.1} parent=1 // pred_fallthru
      _
    %v42 = vld [vmem:[%s0] sm:$0xff]
    %v43 = vld [vmem:[%s0 + $0x8] sm:$0xff]
    %v44 = vld [vmem:[%s0 + $0x10] sm:$0xff]
    %v45 = vld [vmem:[%s0 + $0x18] sm:$0xff]
    %v46 = vld [vmem:[%s0 + $0x20] sm:$0xff]
    %v47 = vld [vmem:[%s0 + $0x28] sm:$0xff]
    %v48 = vld [vmem:[%s0 + $0x30] sm:$0xff]
    %v49 = vld [vmem:[%s0 + $0x38] sm:$0xff]
    %v50 = vld [vmem:[%s0 + $0x40] sm:$0xff]
    %v51 = vld [vmem:[%s0 + $0x48] sm:$0xff]
    %v52 = vld [vmem:[%s0 + $0x50] sm:$0xff]
    %v53 = vld [vmem:[%s0 + $0x58] sm:$0xff]
    %v54 = vld [vmem:[%s0 + $0x60] sm:$0xff]
    %v55 = vld [vmem:[%s0 + $0x68] sm:$0xff]
    %v56 = vld [vmem:[%s0 + $0x70] sm:$0xff]
    %v57 = vld [vmem:[%s0 + $0x78] sm:$0xff]
    %v58 = vld [vmem:[%s0 + $0x80] sm:$0xff]
    %v59 = vld [vmem:[%s0 + $0x88] sm:$0xff]
    %v60 = vld [vmem:[%s0 + $0x90] sm:$0xff]
    %v61 = vld [vmem:[%s0 + $0x98] sm:$0xff]
    %v62 = vld [vmem:[%s0 + $0xa0] sm:$0xff]
    %v63 = vld [vmem:[%s0 + $0xa8] sm:$0xff]
    %v64 = vld [vmem:[%s0 + $0xb0] sm:$0xff]
    %v65 = vld [vmem:[%s0 + $0xb8] sm:$0xff]
    %v66 = vld [vmem:[%s0 + $0xc0] sm:$0xff]
    %v67 = vld [vmem:[%s0 + $0xc8] sm:$0xff]
    %v68 = vld [vmem:[%s0 + $0xd0] sm:$0xff]
    %v69 = vld [vmem:[%s0 + $0xd8] sm:$0xff]
    %v70 = vld [vmem:[%s0 + $0xe0] sm:$0xff]
    %v71 = vld [vmem:[%s0 + $0xe8] sm:$0xff]
    %v72 = vld [vmem:[%s0 + $0xf0] sm:$0xff]
    %v73 = vld [vmem:[%s0 + $0xf8] sm:$0xff]
    %v74 = vld [vmem:[%s0 + $0x100] sm:$0xff]
    %v75 = vld [vmem:[%s0 + $0x108] sm:$0xff]
    %v76 = vld [vmem:[%s0 + $0x110] sm:$0xff]
    %v77 = vld [vmem:[%s0 + $0x118] sm:$0xff]
    %v78 = vld [vmem:[%s0 + $0x120] sm:$0xff]
    %v79 = vld [vmem:[%s0 + $0x128] sm:$0xff]
    %v80 = vld [vmem:[%s0 + $0x130] sm:$0xff]
    %v81 = vld [vmem:[%s0 + $0x138] sm:$0xff]
    %v82 = vld [vmem:[%s0 + $0x140] sm:$0xff]
    %v83 = vld [vmem:[%s0 + $0x148] sm:$0xff]
    %v84 = vld [vmem:[%s0 + $0x150] sm:$0xff]
    %v85 = vld [vmem:[%s0 + $0x158] sm:$0xff]
    %v86 = vld [vmem:[%s0 + $0x160] sm:$0xff]
    %v87 = vld [vmem:[%s0 + $0x168] sm:$0xff]
    %v88 = vld [vmem:[%s0 + $0x170] sm:$0xff]
    %v89 = vld [vmem:[%s0 + $0x178] sm:$0xff]
    %v90 = vld [vmem:[%s0 + $0x180] sm:$0xff]
    %v91 = vld [vmem:[%s0 + $0x188] sm:$0xff]
    %v92 = vld [vmem:[%s0 + $0x190] sm:$0xff]
    %v93 = vld [vmem:[%s0 + $0x198] sm:$0xff]
    %v94 = vld [vmem:[%s0 + $0x1a0] sm:$0xff]
    %v95 = vld [vmem:[%s0 + $0x1a8] sm:$0xff]
    %v96 = vld [vmem:[%s0 + $0x1b0] sm:$0xff]
    %v97 = vld [vmem:[%s0 + $0x1b8] sm:$0xff]
    %v98 = vld [vmem:[%s0 + $0x1c0] sm:$0xff]
    %v99 = vld [vmem:[%s0 + $0x1c8] sm:$0xff]
    %v100 = vld [vmem:[%s0 + $0x1d0] sm:$0xff]
    %v101 = vld [vmem:[%s0 + $0x1d8] sm:$0xff]
    %v102 = vld [vmem:[%s0 + $0x1e0] sm:$0xff]
    %v103 = vld [vmem:[%s0 + $0x1e8] sm:$0xff]
    %v104 = vld [vmem:[%s0 + $0x1f0] sm:$0xff]
    %v105 = vld [vmem:[%s0 + $0x1f8] sm:$0xff]
    %v106 = vld [vmem:[#allocation3] sm:$0xff]
    %v107 = vld [vmem:[#allocation3 + $0x8] sm:$0xff]
    %v108 = vld [vmem:[#allocation3 + $0x10] sm:$0xff]
    %v109 = vld [vmem:[#allocation3 + $0x18] sm:$0xff]
    %v110 = vld [vmem:[#allocation3 + $0x20] sm:$0xff]
    %v111 = vld [vmem:[#allocation3 + $0x28] sm:$0xff]
    %v112 = vld [vmem:[#allocation3 + $0x30] sm:$0xff]
    %v113 = vld [vmem:[#allocation3 + $0x38] sm:$0xff]
    %v114 = vld [vmem:[#allocation3 + $0x40] sm:$0xff]
    %v115 = vld [vmem:[#allocation3 + $0x48] sm:$0xff]
    %v116 = vld [vmem:[#allocation3 + $0x50] sm:$0xff]
    %v117 = vld [vmem:[#allocation3 + $0x58] sm:$0xff]
    %v118 = vld [vmem:[#allocation3 + $0x60] sm:$0xff]
    %v119 = vld [vmem:[#allocation3 + $0x68] sm:$0xff]
    %v120 = vld [vmem:[#allocation3 + $0x70] sm:$0xff]
    %v121 = vld [vmem:[#allocation3 + $0x78] sm:$0xff]
    %v122 = vld [vmem:[#allocation3 + $0x80] sm:$0xff]
    %v123 = vld [vmem:[#allocation3 + $0x88] sm:$0xff]
    %v124 = vld [vmem:[#allocation3 + $0x90] sm:$0xff]
    %v125 = vld [vmem:[#allocation3 + $0x98] sm:$0xff]
    %v126 = vld [vmem:[#allocation3 + $0xa0] sm:$0xff]
    %v127 = vld [vmem:[#allocation3 + $0xa8] sm:$0xff]
    %v128 = vld [vmem:[#allocation3 + $0xb0] sm:$0xff]
    %v129 = vld [vmem:[#allocation3 + $0xb8] sm:$0xff]
    %v130 = vld [vmem:[#allocation3 + $0xc0] sm:$0xff]
    %v131 = vld [vmem:[#allocation3 + $0xc8] sm:$0xff]
    %v132 = vld [vmem:[#allocation3 + $0xd0] sm:$0xff]
    %v133 = vld [vmem:[#allocation3 + $0xd8] sm:$0xff]
    %v134 = vld [vmem:[#allocation3 + $0xe0] sm:$0xff]
    %v135 = vld [vmem:[#allocation3 + $0xe8] sm:$0xff]
    %v136 = vld [vmem:[#allocation3 + $0xf0] sm:$0xff]
    %v137 = vld [vmem:[#allocation3 + $0xf8] sm:$0xff]
    %v138 = vld [vmem:[#allocation3 + $0x100] sm:$0xff]
    %v139 = vld [vmem:[#allocation3 + $0x108] sm:$0xff]
    %v140 = vld [vmem:[#allocation3 + $0x110] sm:$0xff]
    %v141 = vld [vmem:[#allocation3 + $0x118] sm:$0xff]
    %v142 = vld [vmem:[#allocation3 + $0x120] sm:$0xff]
    %v143 = vld [vmem:[#allocation3 + $0x128] sm:$0xff]
    %v144 = vld [vmem:[#allocation3 + $0x130] sm:$0xff]
    %v145 = vld [vmem:[#allocation3 + $0x138] sm:$0xff]
    %v146 = vld [vmem:[#allocation3 + $0x140] sm:$0xff]
    %v147 = vld [vmem:[#allocation3 + $0x148] sm:$0xff]
    %v148 = vld [vmem:[#allocation3 + $0x150] sm:$0xff]
    %v149 = vld [vmem:[#allocation3 + $0x158] sm:$0xff]
    %v150 = vld [vmem:[#allocation3 + $0x160] sm:$0xff]
    %v151 = vld [vmem:[#allocation3 + $0x168] sm:$0xff]
    %v152 = vld [vmem:[#allocation3 + $0x170] sm:$0xff]
    %v153 = vld [vmem:[#allocation3 + $0x178] sm:$0xff]
    %v154 = vld [vmem:[#allocation3 + $0x180] sm:$0xff]
    %v155 = vld [vmem:[#allocation3 + $0x188] sm:$0xff]
    %v156 = vld [vmem:[#allocation3 + $0x190] sm:$0xff]
    %v157 = vld [vmem:[#allocation3 + $0x198] sm:$0xff]
    %v158 = vld [vmem:[#allocation3 + $0x1a0] sm:$0xff]
    %v159 = vld [vmem:[#allocation3 + $0x1a8] sm:$0xff]
    %v160 = vld [vmem:[#allocation3 + $0x1b0] sm:$0xff]
    %v161 = vld [vmem:[#allocation3 + $0x1b8] sm:$0xff]
    %v162 = vld [vmem:[#allocation3 + $0x1c0] sm:$0xff]
    %v163 = vld [vmem:[#allocation3 + $0x1c8] sm:$0xff]
    %v164 = vld [vmem:[#allocation3 + $0x1d0] sm:$0xff]
    %v165 = vld [vmem:[#allocation3 + $0x1d8] sm:$0xff]
    %v166 = vld [vmem:[#allocation3 + $0x1e0] sm:$0xff]
    %v167 = vld [vmem:[#allocation3 + $0x1e8] sm:$0xff]
    %v168 = vld [vmem:[#allocation3 + $0x1f0] sm:$0xff]
    %v169 = vld [vmem:[#allocation3 + $0x1f8] sm:$0xff]
    %v170 = vld [vmem:[#allocation3 + $0x200] sm:$0xff]
    %v171 = vld [vmem:[#allocation3 + $0x208] sm:$0xff]
    %v172 = vld [vmem:[#allocation3 + $0x210] sm:$0xff]
    %v173 = vld [vmem:[#allocation3 + $0x218] sm:$0xff]
    %v174 = vld [vmem:[#allocation3 + $0x220] sm:$0xff]
    %v175 = vld [vmem:[#allocation3 + $0x228] sm:$0xff]
    %v176 = vld [vmem:[#allocation3 + $0x230] sm:$0xff]
    %v177 = vld [vmem:[#allocation3 + $0x238] sm:$0xff]
    %v178 = vld [vmem:[#allocation3 + $0x240] sm:$0xff]
    %v179 = vld [vmem:[#allocation3 + $0x248] sm:$0xff]
    %v180 = vld [vmem:[#allocation3 + $0x250] sm:$0xff]
    %v181 = vld [vmem:[#allocation3 + $0x258] sm:$0xff]
    %v182 = vld [vmem:[#allocation3 + $0x260] sm:$0xff]
    %v183 = vld [vmem:[#allocation3 + $0x268] sm:$0xff]
    %v184 = vld [vmem:[#allocation3 + $0x270] sm:$0xff]
    %v185 = vld [vmem:[#allocation3 + $0x278] sm:$0xff]
    %v186 = vld [vmem:[#allocation3 + $0x280] sm:$0xff]
    %v187 = vld [vmem:[#allocation3 + $0x288] sm:$0xff]
    %v188 = vld [vmem:[#allocation3 + $0x290] sm:$0xff]
    %v189 = vld [vmem:[#allocation3 + $0x298] sm:$0xff]
    %v190 = vld [vmem:[#allocation3 + $0x2a0] sm:$0xff]
    %v191 = vld [vmem:[#allocation3 + $0x2a8] sm:$0xff]
    %v192 = vld [vmem:[#allocation3 + $0x2b0] sm:$0xff]
    %v193 = vld [vmem:[#allocation3 + $0x2b8] sm:$0xff]
    %v194 = vld [vmem:[#allocation3 + $0x2c0] sm:$0xff]
    %v195 = vld [vmem:[#allocation3 + $0x2c8] sm:$0xff]
    %v196 = vld [vmem:[#allocation3 + $0x2d0] sm:$0xff]
    %v197 = vld [vmem:[#allocation3 + $0x2d8] sm:$0xff]
    %v198 = vld [vmem:[#allocation3 + $0x2e0] sm:$0xff]
    %v199 = vld [vmem:[#allocation3 + $0x2e8] sm:$0xff]
    %v200 = vld [vmem:[#allocation3 + $0x2f0] sm:$0xff]
    %v201 = vld [vmem:[#allocation3 + $0x2f8] sm:$0xff]
    %v202 = vld [vmem:[#allocation3 + $0x300] sm:$0xff]
    %v203 = vld [vmem:[#allocation3 + $0x308] sm:$0xff]
    %v204 = vld [vmem:[#allocation3 + $0x310] sm:$0xff]
    %v205 = vld [vmem:[#allocation3 + $0x318] sm:$0xff]
    %v206 = vld [vmem:[#allocation3 + $0x320] sm:$0xff]
    %v207 = vld [vmem:[#allocation3 + $0x328] sm:$0xff]
    %v208 = vld [vmem:[#allocation3 + $0x330] sm:$0xff]
    %v209 = vld [vmem:[#allocation3 + $0x338] sm:$0xff]
    %v210 = vld [vmem:[#allocation3 + $0x340] sm:$0xff]
    %v211 = vld [vmem:[#allocation3 + $0x348] sm:$0xff]
    %v212 = vld [vmem:[#allocation3 + $0x350] sm:$0xff]
    %v213 = vld [vmem:[#allocation3 + $0x358] sm:$0xff]
    %v214 = vld [vmem:[#allocation3 + $0x360] sm:$0xff]
    %v215 = vld [vmem:[#allocation3 + $0x368] sm:$0xff]
    %v216 = vld [vmem:[#allocation3 + $0x370] sm:$0xff]
    %v217 = vld [vmem:[#allocation3 + $0x378] sm:$0xff]
    %v218 = vld [vmem:[#allocation3 + $0x380] sm:$0xff]
    %v219 = vld [vmem:[#allocation3 + $0x388] sm:$0xff]
    %v220 = vld [vmem:[#allocation3 + $0x390] sm:$0xff]
    %v221 = vld [vmem:[#allocation3 + $0x398] sm:$0xff]
    %v222 = vld [vmem:[#allocation3 + $0x3a0] sm:$0xff]
    %v223 = vld [vmem:[#allocation3 + $0x3a8] sm:$0xff]
    %v224 = vld [vmem:[#allocation3 + $0x3b0] sm:$0xff]
    %v225 = vld [vmem:[#allocation3 + $0x3b8] sm:$0xff]
    %v226 = vld [vmem:[%s2] sm:$0x3]
    %v228 = vlaneseq
    %v229 = vshrl.u32 %v228, 7
    %v230 = vsub.s32 0, %v229
    %v231 = vrot.slane %v226, %v230
    %v232 = vlaneseq
    %v233 = vshrl.u32 %v232, 7
    %v234 = vsub.s32 1, %v233
    %v235 = vrot.slane %v226, %v234
    %v302 = vunpack.c.l.b16 %v42
    %v303 = vunpack.c.h.b16 %v42
    %v304 = vunpack.c.l.b16 %v43
    %v305 = vunpack.c.h.b16 %v43
    %v306 = vunpack.c.l.b16 %v44
    %v307 = vunpack.c.h.b16 %v44
    %v308 = vunpack.c.l.b16 %v45
    %v309 = vunpack.c.h.b16 %v45
    %v310 = vunpack.c.l.b16 %v46
    %v311 = vunpack.c.h.b16 %v46
    %v312 = vunpack.c.l.b16 %v47
    %v313 = vunpack.c.h.b16 %v47
    %v314 = vunpack.c.l.b16 %v48
    %v315 = vunpack.c.h.b16 %v48
    %v316 = vunpack.c.l.b16 %v49
    %v317 = vunpack.c.h.b16 %v49
    %v318 = vunpack.c.l.b16 %v50
    %v319 = vunpack.c.h.b16 %v50
    %v320 = vunpack.c.l.b16 %v51
    %v321 = vunpack.c.h.b16 %v51
    %v322 = vunpack.c.l.b16 %v52
    %v323 = vunpack.c.h.b16 %v52
    %v324 = vunpack.c.l.b16 %v53
    %v325 = vunpack.c.h.b16 %v53
    %v326 = vunpack.c.l.b16 %v54
    %v327 = vunpack.c.h.b16 %v54
    %v328 = vunpack.c.l.b16 %v55
    %v329 = vunpack.c.h.b16 %v55
    %v330 = vunpack.c.l.b16 %v56
    %v331 = vunpack.c.h.b16 %v56
    %v332 = vunpack.c.l.b16 %v57
    %v333 = vunpack.c.h.b16 %v57
    %v334 = vunpack.c.l.b16 %v58
    %v335 = vunpack.c.h.b16 %v58
    %v336 = vunpack.c.l.b16 %v59
    %v337 = vunpack.c.h.b16 %v59
    %v338 = vunpack.c.l.b16 %v60
    %v339 = vunpack.c.h.b16 %v60
    %v340 = vunpack.c.l.b16 %v61
    %v341 = vunpack.c.h.b16 %v61
    %v342 = vunpack.c.l.b16 %v62
    %v343 = vunpack.c.h.b16 %v62
    %v344 = vunpack.c.l.b16 %v63
    %v345 = vunpack.c.h.b16 %v63
    %v346 = vunpack.c.l.b16 %v64
    %v347 = vunpack.c.h.b16 %v64
    %v348 = vunpack.c.l.b16 %v65
    %v349 = vunpack.c.h.b16 %v65
    %v350 = vunpack.c.l.b16 %v66
    %v351 = vunpack.c.h.b16 %v66
    %v352 = vunpack.c.l.b16 %v67
    %v353 = vunpack.c.h.b16 %v67
    %v354 = vunpack.c.l.b16 %v68
    %v355 = vunpack.c.h.b16 %v68
    %v356 = vunpack.c.l.b16 %v69
    %v357 = vunpack.c.h.b16 %v69
    %v358 = vunpack.c.l.b16 %v70
    %v359 = vunpack.c.h.b16 %v70
    %v360 = vunpack.c.l.b16 %v71
    %v361 = vunpack.c.h.b16 %v71
    %v362 = vunpack.c.l.b16 %v72
    %v363 = vunpack.c.h.b16 %v72
    %v364 = vunpack.c.l.b16 %v73
    %v365 = vunpack.c.h.b16 %v73
    %v366 = vunpack.c.l.b16 %v74
    %v367 = vunpack.c.h.b16 %v74
    %v368 = vunpack.c.l.b16 %v75
    %v369 = vunpack.c.h.b16 %v75
    %v370 = vunpack.c.l.b16 %v76
    %v371 = vunpack.c.h.b16 %v76
    %v372 = vunpack.c.l.b16 %v77
    %v373 = vunpack.c.h.b16 %v77
    %v374 = vunpack.c.l.b16 %v78
    %v375 = vunpack.c.h.b16 %v78
    %v376 = vunpack.c.l.b16 %v79
    %v377 = vunpack.c.h.b16 %v79
    %v378 = vunpack.c.l.b16 %v80
    %v379 = vunpack.c.h.b16 %v80
    %v380 = vunpack.c.l.b16 %v81
    %v381 = vunpack.c.h.b16 %v81
    %v382 = vunpack.c.l.b16 %v82
    %v383 = vunpack.c.h.b16 %v82
    %v384 = vunpack.c.l.b16 %v83
    %v385 = vunpack.c.h.b16 %v83
    %v386 = vunpack.c.l.b16 %v84
    %v387 = vunpack.c.h.b16 %v84
    %v388 = vunpack.c.l.b16 %v85
    %v389 = vunpack.c.h.b16 %v85
    %v390 = vunpack.c.l.b16 %v86
    %v391 = vunpack.c.h.b16 %v86
    %v392 = vunpack.c.l.b16 %v87
    %v393 = vunpack.c.h.b16 %v87
    %v394 = vunpack.c.l.b16 %v88
    %v395 = vunpack.c.h.b16 %v88
    %v396 = vunpack.c.l.b16 %v89
    %v397 = vunpack.c.h.b16 %v89
    %v398 = vunpack.c.l.b16 %v90
    %v399 = vunpack.c.h.b16 %v90
    %v400 = vunpack.c.l.b16 %v91
    %v401 = vunpack.c.h.b16 %v91
    %v402 = vunpack.c.l.b16 %v92
    %v403 = vunpack.c.h.b16 %v92
    %v404 = vunpack.c.l.b16 %v93
    %v405 = vunpack.c.h.b16 %v93
    %v406 = vunpack.c.l.b16 %v94
    %v407 = vunpack.c.h.b16 %v94
    %v408 = vunpack.c.l.b16 %v95
    %v409 = vunpack.c.h.b16 %v95
    %v410 = vunpack.c.l.b16 %v96
    %v411 = vunpack.c.h.b16 %v96
    %v412 = vunpack.c.l.b16 %v97
    %v413 = vunpack.c.h.b16 %v97
    %v414 = vunpack.c.l.b16 %v98
    %v415 = vunpack.c.h.b16 %v98
    %v416 = vunpack.c.l.b16 %v99
    %v417 = vunpack.c.h.b16 %v99
    %v418 = vunpack.c.l.b16 %v100
    %v419 = vunpack.c.h.b16 %v100
    %v420 = vunpack.c.l.b16 %v101
    %v421 = vunpack.c.h.b16 %v101
    %v422 = vunpack.c.l.b16 %v102
    %v423 = vunpack.c.h.b16 %v102
    %v424 = vunpack.c.l.b16 %v103
    %v425 = vunpack.c.h.b16 %v103
    %v426 = vunpack.c.l.b16 %v104
    %v427 = vunpack.c.h.b16 %v104
    %v428 = vunpack.c.l.b16 %v105
    %v429 = vunpack.c.h.b16 %v105
    %v430 = vpack.c.b16 %v310, %v302
    %v431 = vpack.c.b16 %v311, %v303
    %v432 = vpack.c.b16 %v312, %v304
    %v433 = vpack.c.b16 %v313, %v305
    %v434 = vpack.c.b16 %v314, %v306
    %v435 = vpack.c.b16 %v315, %v307
    %v436 = vpack.c.b16 %v316, %v308
    %v437 = vpack.c.b16 %v317, %v309
    %v438 = vpack.c.b16 %v326, %v318
    %v439 = vpack.c.b16 %v327, %v319
    %v440 = vpack.c.b16 %v328, %v320
    %v441 = vpack.c.b16 %v329, %v321
    %v442 = vpack.c.b16 %v330, %v322
    %v443 = vpack.c.b16 %v331, %v323
    %v444 = vpack.c.b16 %v332, %v324
    %v445 = vpack.c.b16 %v333, %v325
    %v446 = vpack.c.b16 %v342, %v334
    %v447 = vpack.c.b16 %v343, %v335
    %v448 = vpack.c.b16 %v344, %v336
    %v449 = vpack.c.b16 %v345, %v337
    %v450 = vpack.c.b16 %v346, %v338
    %v451 = vpack.c.b16 %v347, %v339
    %v452 = vpack.c.b16 %v348, %v340
    %v453 = vpack.c.b16 %v349, %v341
    %v454 = vpack.c.b16 %v358, %v350
    %v455 = vpack.c.b16 %v359, %v351
    %v456 = vpack.c.b16 %v360, %v352
    %v457 = vpack.c.b16 %v361, %v353
    %v458 = vpack.c.b16 %v362, %v354
    %v459 = vpack.c.b16 %v363, %v355
    %v460 = vpack.c.b16 %v364, %v356
    %v461 = vpack.c.b16 %v365, %v357
    %v462 = vpack.c.b16 %v374, %v366
    %v463 = vpack.c.b16 %v375, %v367
    %v464 = vpack.c.b16 %v376, %v368
    %v465 = vpack.c.b16 %v377, %v369
    %v466 = vpack.c.b16 %v378, %v370
    %v467 = vpack.c.b16 %v379, %v371
    %v468 = vpack.c.b16 %v380, %v372
    %v469 = vpack.c.b16 %v381, %v373
    %v470 = vpack.c.b16 %v390, %v382
    %v471 = vpack.c.b16 %v391, %v383
    %v472 = vpack.c.b16 %v392, %v384
    %v473 = vpack.c.b16 %v393, %v385
    %v474 = vpack.c.b16 %v394, %v386
    %v475 = vpack.c.b16 %v395, %v387
    %v476 = vpack.c.b16 %v396, %v388
    %v477 = vpack.c.b16 %v397, %v389
    %v478 = vpack.c.b16 %v406, %v398
    %v479 = vpack.c.b16 %v407, %v399
    %v480 = vpack.c.b16 %v408, %v400
    %v481 = vpack.c.b16 %v409, %v401
    %v482 = vpack.c.b16 %v410, %v402
    %v483 = vpack.c.b16 %v411, %v403
    %v484 = vpack.c.b16 %v412, %v404
    %v485 = vpack.c.b16 %v413, %v405
    %v486 = vpack.c.b16 %v422, %v414
    %v487 = vpack.c.b16 %v423, %v415
    %v488 = vpack.c.b16 %v424, %v416
    %v489 = vpack.c.b16 %v425, %v417
    %v490 = vpack.c.b16 %v426, %v418
    %v491 = vpack.c.b16 %v427, %v419
    %v492 = vpack.c.b16 %v428, %v420
    %v493 = vpack.c.b16 %v429, %v421
    %v670 = vunpack.c.l.b16 %v106
    %v671 = vunpack.c.h.b16 %v106
    %v672 = vunpack.c.l.b16 %v107
    %v673 = vunpack.c.h.b16 %v107
    %v674 = vunpack.c.l.b16 %v108
    %v675 = vunpack.c.h.b16 %v108
    %v676 = vunpack.c.l.b16 %v109
    %v677 = vunpack.c.h.b16 %v109
    %v678 = vunpack.c.l.b16 %v110
    %v679 = vunpack.c.h.b16 %v110
    %v680 = vunpack.c.l.b16 %v111
    %v681 = vunpack.c.h.b16 %v111
    %v682 = vunpack.c.l.b16 %v112
    %v683 = vunpack.c.h.b16 %v112
    %v684 = vunpack.c.l.b16 %v113
    %v685 = vunpack.c.h.b16 %v113
    %v686 = vunpack.c.l.b16 %v114
    %v687 = vunpack.c.h.b16 %v114
    %v688 = vunpack.c.l.b16 %v115
    %v689 = vunpack.c.h.b16 %v115
    %v690 = vunpack.c.l.b16 %v116
    %v691 = vunpack.c.h.b16 %v116
    %v692 = vunpack.c.l.b16 %v117
    %v693 = vunpack.c.h.b16 %v117
    %v694 = vunpack.c.l.b16 %v118
    %v695 = vunpack.c.h.b16 %v118
    %v696 = vunpack.c.l.b16 %v119
    %v697 = vunpack.c.h.b16 %v119
    %v698 = vunpack.c.l.b16 %v120
    %v699 = vunpack.c.h.b16 %v120
    %v700 = vunpack.c.l.b16 %v121
    %v701 = vunpack.c.h.b16 %v121
    %v702 = vunpack.c.l.b16 %v122
    %v703 = vunpack.c.h.b16 %v122
    %v704 = vunpack.c.l.b16 %v123
    %v705 = vunpack.c.h.b16 %v123
    %v706 = vunpack.c.l.b16 %v124
    %v707 = vunpack.c.h.b16 %v124
    %v708 = vunpack.c.l.b16 %v125
    %v709 = vunpack.c.h.b16 %v125
    %v710 = vunpack.c.l.b16 %v126
    %v711 = vunpack.c.h.b16 %v126
    %v712 = vunpack.c.l.b16 %v127
    %v713 = vunpack.c.h.b16 %v127
    %v714 = vunpack.c.l.b16 %v128
    %v715 = vunpack.c.h.b16 %v128
    %v716 = vunpack.c.l.b16 %v129
    %v717 = vunpack.c.h.b16 %v129
    %v718 = vunpack.c.l.b16 %v130
    %v719 = vunpack.c.h.b16 %v130
    %v720 = vunpack.c.l.b16 %v131
    %v721 = vunpack.c.h.b16 %v131
    %v722 = vunpack.c.l.b16 %v132
    %v723 = vunpack.c.h.b16 %v132
    %v724 = vunpack.c.l.b16 %v133
    %v725 = vunpack.c.h.b16 %v133
    %v726 = vunpack.c.l.b16 %v134
    %v727 = vunpack.c.h.b16 %v134
    %v728 = vunpack.c.l.b16 %v135
    %v729 = vunpack.c.h.b16 %v135
    %v730 = vunpack.c.l.b16 %v136
    %v731 = vunpack.c.h.b16 %v136
    %v732 = vunpack.c.l.b16 %v137
    %v733 = vunpack.c.h.b16 %v137
    %v734 = vunpack.c.l.b16 %v138
    %v735 = vunpack.c.h.b16 %v138
    %v736 = vunpack.c.l.b16 %v139
    %v737 = vunpack.c.h.b16 %v139
    %v738 = vunpack.c.l.b16 %v140
    %v739 = vunpack.c.h.b16 %v140
    %v740 = vunpack.c.l.b16 %v141
    %v741 = vunpack.c.h.b16 %v141
    %v742 = vunpack.c.l.b16 %v142
    %v743 = vunpack.c.h.b16 %v142
    %v744 = vunpack.c.l.b16 %v143
    %v745 = vunpack.c.h.b16 %v143
    %v746 = vunpack.c.l.b16 %v144
    %v747 = vunpack.c.h.b16 %v144
    %v748 = vunpack.c.l.b16 %v145
    %v749 = vunpack.c.h.b16 %v145
    %v750 = vunpack.c.l.b16 %v146
    %v751 = vunpack.c.h.b16 %v146
    %v752 = vunpack.c.l.b16 %v147
    %v753 = vunpack.c.h.b16 %v147
    %v754 = vunpack.c.l.b16 %v148
    %v755 = vunpack.c.h.b16 %v148
    %v756 = vunpack.c.l.b16 %v149
    %v757 = vunpack.c.h.b16 %v149
    %v758 = vunpack.c.l.b16 %v150
    %v759 = vunpack.c.h.b16 %v150
    %v760 = vunpack.c.l.b16 %v151
    %v761 = vunpack.c.h.b16 %v151
    %v762 = vunpack.c.l.b16 %v152
    %v763 = vunpack.c.h.b16 %v152
    %v764 = vunpack.c.l.b16 %v153
    %v765 = vunpack.c.h.b16 %v153
    %v766 = vunpack.c.l.b16 %v154
    %v767 = vunpack.c.h.b16 %v154
    %v768 = vunpack.c.l.b16 %v155
    %v769 = vunpack.c.h.b16 %v155
    %v770 = vunpack.c.l.b16 %v156
    %v771 = vunpack.c.h.b16 %v156
    %v772 = vunpack.c.l.b16 %v157
    %v773 = vunpack.c.h.b16 %v157
    %v774 = vunpack.c.l.b16 %v158
    %v775 = vunpack.c.h.b16 %v158
    %v776 = vunpack.c.l.b16 %v159
    %v777 = vunpack.c.h.b16 %v159
    %v778 = vunpack.c.l.b16 %v160
    %v779 = vunpack.c.h.b16 %v160
    %v780 = vunpack.c.l.b16 %v161
    %v781 = vunpack.c.h.b16 %v161
    %v782 = vunpack.c.l.b16 %v162
    %v783 = vunpack.c.h.b16 %v162
    %v784 = vunpack.c.l.b16 %v163
    %v785 = vunpack.c.h.b16 %v163
    %v786 = vunpack.c.l.b16 %v164
    %v787 = vunpack.c.h.b16 %v164
    %v788 = vunpack.c.l.b16 %v165
    %v789 = vunpack.c.h.b16 %v165
    %v790 = vunpack.c.l.b16 %v166
    %v791 = vunpack.c.h.b16 %v166
    %v792 = vunpack.c.l.b16 %v167
    %v793 = vunpack.c.h.b16 %v167
    %v794 = vunpack.c.l.b16 %v168
    %v795 = vunpack.c.h.b16 %v168
    %v796 = vunpack.c.l.b16 %v169
    %v797 = vunpack.c.h.b16 %v169
    %v798 = vunpack.c.l.b16 %v170
    %v799 = vunpack.c.h.b16 %v170
    %v800 = vunpack.c.l.b16 %v171
    %v801 = vunpack.c.h.b16 %v171
    %v802 = vunpack.c.l.b16 %v172
    %v803 = vunpack.c.h.b16 %v172
    %v804 = vunpack.c.l.b16 %v173
    %v805 = vunpack.c.h.b16 %v173
    %v806 = vunpack.c.l.b16 %v174
    %v807 = vunpack.c.h.b16 %v174
    %v808 = vunpack.c.l.b16 %v175
    %v809 = vunpack.c.h.b16 %v175
    %v810 = vunpack.c.l.b16 %v176
    %v811 = vunpack.c.h.b16 %v176
    %v812 = vunpack.c.l.b16 %v177
    %v813 = vunpack.c.h.b16 %v177
    %v814 = vunpack.c.l.b16 %v178
    %v815 = vunpack.c.h.b16 %v178
    %v816 = vunpack.c.l.b16 %v179
    %v817 = vunpack.c.h.b16 %v179
    %v818 = vunpack.c.l.b16 %v180
    %v819 = vunpack.c.h.b16 %v180
    %v820 = vunpack.c.l.b16 %v181
    %v821 = vunpack.c.h.b16 %v181
    %v822 = vunpack.c.l.b16 %v182
    %v823 = vunpack.c.h.b16 %v182
    %v824 = vunpack.c.l.b16 %v183
    %v825 = vunpack.c.h.b16 %v183
    %v826 = vunpack.c.l.b16 %v184
    %v827 = vunpack.c.h.b16 %v184
    %v828 = vunpack.c.l.b16 %v185
    %v829 = vunpack.c.h.b16 %v185
    %v830 = vunpack.c.l.b16 %v186
    %v831 = vunpack.c.h.b16 %v186
    %v832 = vunpack.c.l.b16 %v187
    %v833 = vunpack.c.h.b16 %v187
    %v834 = vunpack.c.l.b16 %v188
    %v835 = vunpack.c.h.b16 %v188
    %v836 = vunpack.c.l.b16 %v189
    %v837 = vunpack.c.h.b16 %v189
    %v838 = vunpack.c.l.b16 %v190
    %v839 = vunpack.c.h.b16 %v190
    %v840 = vunpack.c.l.b16 %v191
    %v841 = vunpack.c.h.b16 %v191
    %v842 = vunpack.c.l.b16 %v192
    %v843 = vunpack.c.h.b16 %v192
    %v844 = vunpack.c.l.b16 %v193
    %v845 = vunpack.c.h.b16 %v193
    %v846 = vunpack.c.l.b16 %v194
    %v847 = vunpack.c.h.b16 %v194
    %v848 = vunpack.c.l.b16 %v195
    %v849 = vunpack.c.h.b16 %v195
    %v850 = vunpack.c.l.b16 %v196
    %v851 = vunpack.c.h.b16 %v196
    %v852 = vunpack.c.l.b16 %v197
    %v853 = vunpack.c.h.b16 %v197
    %v854 = vunpack.c.l.b16 %v198
    %v855 = vunpack.c.h.b16 %v198
    %v856 = vunpack.c.l.b16 %v199
    %v857 = vunpack.c.h.b16 %v199
    %v858 = vunpack.c.l.b16 %v200
    %v859 = vunpack.c.h.b16 %v200
    %v860 = vunpack.c.l.b16 %v201
    %v861 = vunpack.c.h.b16 %v201
    %v862 = vunpack.c.l.b16 %v202
    %v863 = vunpack.c.h.b16 %v202
    %v864 = vunpack.c.l.b16 %v203
    %v865 = vunpack.c.h.b16 %v203
    %v866 = vunpack.c.l.b16 %v204
    %v867 = vunpack.c.h.b16 %v204
    %v868 = vunpack.c.l.b16 %v205
    %v869 = vunpack.c.h.b16 %v205
    %v870 = vunpack.c.l.b16 %v206
    %v871 = vunpack.c.h.b16 %v206
    %v872 = vunpack.c.l.b16 %v207
    %v873 = vunpack.c.h.b16 %v207
    %v874 = vunpack.c.l.b16 %v208
    %v875 = vunpack.c.h.b16 %v208
    %v876 = vunpack.c.l.b16 %v209
    %v877 = vunpack.c.h.b16 %v209
    %v878 = vunpack.c.l.b16 %v210
    %v879 = vunpack.c.h.b16 %v210
    %v880 = vunpack.c.l.b16 %v211
    %v881 = vunpack.c.h.b16 %v211
    %v882 = vunpack.c.l.b16 %v212
    %v883 = vunpack.c.h.b16 %v212
    %v884 = vunpack.c.l.b16 %v213
    %v885 = vunpack.c.h.b16 %v213
    %v886 = vunpack.c.l.b16 %v214
    %v887 = vunpack.c.h.b16 %v214
    %v888 = vunpack.c.l.b16 %v215
    %v889 = vunpack.c.h.b16 %v215
    %v890 = vunpack.c.l.b16 %v216
    %v891 = vunpack.c.h.b16 %v216
    %v892 = vunpack.c.l.b16 %v217
    %v893 = vunpack.c.h.b16 %v217
    %v894 = vunpack.c.l.b16 %v218
    %v895 = vunpack.c.h.b16 %v218
    %v896 = vunpack.c.l.b16 %v219
    %v897 = vunpack.c.h.b16 %v219
    %v898 = vunpack.c.l.b16 %v220
    %v899 = vunpack.c.h.b16 %v220
    %v900 = vunpack.c.l.b16 %v221
    %v901 = vunpack.c.h.b16 %v221
    %v902 = vunpack.c.l.b16 %v222
    %v903 = vunpack.c.h.b16 %v222
    %v904 = vunpack.c.l.b16 %v223
    %v905 = vunpack.c.h.b16 %v223
    %v906 = vunpack.c.l.b16 %v224
    %v907 = vunpack.c.h.b16 %v224
    %v908 = vunpack.c.l.b16 %v225
    %v909 = vunpack.c.h.b16 %v225
    %v910 = vpack.c.b16 %v672, %v670
    %v911 = vpack.c.b16 %v673, %v671
    %v912 = vpack.c.b16 %v676, %v674
    %v913 = vpack.c.b16 %v677, %v675
    %v914 = vpack.c.b16 %v680, %v678
    %v915 = vpack.c.b16 %v681, %v679
    %v916 = vpack.c.b16 %v684, %v682
    %v917 = vpack.c.b16 %v685, %v683
    %v918 = vpack.c.b16 %v688, %v686
    %v919 = vpack.c.b16 %v689, %v687
    %v920 = vpack.c.b16 %v692, %v690
    %v921 = vpack.c.b16 %v693, %v691
    %v922 = vpack.c.b16 %v696, %v694
    %v923 = vpack.c.b16 %v697, %v695
    %v924 = vpack.c.b16 %v700, %v698
    %v925 = vpack.c.b16 %v701, %v699
    %v926 = vpack.c.b16 %v704, %v702
    %v927 = vpack.c.b16 %v705, %v703
    %v928 = vpack.c.b16 %v708, %v706
    %v929 = vpack.c.b16 %v709, %v707
    %v930 = vpack.c.b16 %v712, %v710
    %v931 = vpack.c.b16 %v713, %v711
    %v932 = vpack.c.b16 %v716, %v714
    %v933 = vpack.c.b16 %v717, %v715
    %v934 = vpack.c.b16 %v720, %v718
    %v935 = vpack.c.b16 %v721, %v719
    %v936 = vpack.c.b16 %v724, %v722
    %v937 = vpack.c.b16 %v725, %v723
    %v938 = vpack.c.b16 %v728, %v726
    %v939 = vpack.c.b16 %v729, %v727
    %v940 = vpack.c.b16 %v732, %v730
    %v941 = vpack.c.b16 %v733, %v731
    %v942 = vpack.c.b16 %v736, %v734
    %v943 = vpack.c.b16 %v737, %v735
    %v944 = vpack.c.b16 %v740, %v738
    %v945 = vpack.c.b16 %v741, %v739
    %v946 = vpack.c.b16 %v744, %v742
    %v947 = vpack.c.b16 %v745, %v743
    %v948 = vpack.c.b16 %v748, %v746
    %v949 = vpack.c.b16 %v749, %v747
    %v950 = vpack.c.b16 %v752, %v750
    %v951 = vpack.c.b16 %v753, %v751
    %v952 = vpack.c.b16 %v756, %v754
    %v953 = vpack.c.b16 %v757, %v755
    %v954 = vpack.c.b16 %v760, %v758
    %v955 = vpack.c.b16 %v761, %v759
    %v956 = vpack.c.b16 %v764, %v762
    %v957 = vpack.c.b16 %v765, %v763
    %v958 = vpack.c.b16 %v768, %v766
    %v959 = vpack.c.b16 %v769, %v767
    %v960 = vpack.c.b16 %v772, %v770
    %v961 = vpack.c.b16 %v773, %v771
    %v962 = vpack.c.b16 %v776, %v774
    %v963 = vpack.c.b16 %v777, %v775
    %v964 = vpack.c.b16 %v780, %v778
    %v965 = vpack.c.b16 %v781, %v779
    %v966 = vpack.c.b16 %v784, %v782
    %v967 = vpack.c.b16 %v785, %v783
    %v968 = vpack.c.b16 %v788, %v786
    %v969 = vpack.c.b16 %v789, %v787
    %v970 = vpack.c.b16 %v792, %v790
    %v971 = vpack.c.b16 %v793, %v791
    %v972 = vpack.c.b16 %v796, %v794
    %v973 = vpack.c.b16 %v797, %v795
    %v974 = vpack.c.b16 %v800, %v798
    %v975 = vpack.c.b16 %v801, %v799
    %v976 = vpack.c.b16 %v804, %v802
    %v977 = vpack.c.b16 %v805, %v803
    %v978 = vpack.c.b16 %v808, %v806
    %v979 = vpack.c.b16 %v809, %v807
    %v980 = vpack.c.b16 %v812, %v810
    %v981 = vpack.c.b16 %v813, %v811
    %v982 = vpack.c.b16 %v816, %v814
    %v983 = vpack.c.b16 %v817, %v815
    %v984 = vpack.c.b16 %v820, %v818
    %v985 = vpack.c.b16 %v821, %v819
    %v986 = vpack.c.b16 %v824, %v822
    %v987 = vpack.c.b16 %v825, %v823
    %v988 = vpack.c.b16 %v828, %v826
    %v989 = vpack.c.b16 %v829, %v827
    %v990 = vpack.c.b16 %v832, %v830
    %v991 = vpack.c.b16 %v833, %v831
    %v992 = vpack.c.b16 %v836, %v834
    %v993 = vpack.c.b16 %v837, %v835
    %v994 = vpack.c.b16 %v840, %v838
    %v995 = vpack.c.b16 %v841, %v839
    %v996 = vpack.c.b16 %v844, %v842
    %v997 = vpack.c.b16 %v845, %v843
    %v998 = vpack.c.b16 %v848, %v846
    %v999 = vpack.c.b16 %v849, %v847
    %v1000 = vpack.c.b16 %v852, %v850
    %v1001 = vpack.c.b16 %v853, %v851
    %v1002 = vpack.c.b16 %v856, %v854
    %v1003 = vpack.c.b16 %v857, %v855
    %v1004 = vpack.c.b16 %v860, %v858
    %v1005 = vpack.c.b16 %v861, %v859
    %v1006 = vpack.c.b16 %v864, %v862
    %v1007 = vpack.c.b16 %v865, %v863
    %v1008 = vpack.c.b16 %v868, %v866
    %v1009 = vpack.c.b16 %v869, %v867
    %v1010 = vpack.c.b16 %v872, %v870
    %v1011 = vpack.c.b16 %v873, %v871
    %v1012 = vpack.c.b16 %v876, %v874
    %v1013 = vpack.c.b16 %v877, %v875
    %v1014 = vpack.c.b16 %v880, %v878
    %v1015 = vpack.c.b16 %v881, %v879
    %v1016 = vpack.c.b16 %v884, %v882
    %v1017 = vpack.c.b16 %v885, %v883
    %v1018 = vpack.c.b16 %v888, %v886
    %v1019 = vpack.c.b16 %v889, %v887
    %v1020 = vpack.c.b16 %v892, %v890
    %v1021 = vpack.c.b16 %v893, %v891
    %v1022 = vpack.c.b16 %v896, %v894
    %v1023 = vpack.c.b16 %v897, %v895
    %v1024 = vpack.c.b16 %v900, %v898
    %v1025 = vpack.c.b16 %v901, %v899
    %v1026 = vpack.c.b16 %v904, %v902
    %v1027 = vpack.c.b16 %v905, %v903
    %v1028 = vpack.c.b16 %v908, %v906
    %v1029 = vpack.c.b16 %v909, %v907
    %vm1150 = vcmask 523264
    %v1152 = vsel %vm1150, %v437, 0
    %v1155 = vsel %vm1150, %v445, 0
    %v1158 = vsel %vm1150, %v453, 0
    %v1161 = vsel %vm1150, %v461, 0
    %v1164 = vsel %vm1150, %v469, 0
    %v1167 = vsel %vm1150, %v477, 0
    %v1170 = vsel %vm1150, %v485, 0
    %v1173 = vsel %vm1150, %v493, 0
    %1175 = vmatprep.subr.bf16.mxu0 %v911
    %1176 = vmatpush1.bf16.msra.mxu0 %v910
    %1177 = vmatprep.subr.bf16.mxu0 %v913
    %1178 = vmatpush1.bf16.msra.mxu0 %v912
    %1179 = vmatprep.subr.bf16.mxu0 %v915
    %1180 = vmatpush1.bf16.msra.mxu0 %v914
    %1181 = vmatprep.subr.bf16.mxu0 %v917
    %1182 = vmatpush1.bf16.msra.mxu0 %v916
    %1183 = vmatprep.subr.bf16.mxu0 %v919
    %1184 = vmatpush1.bf16.msra.mxu0 %v918
    %1185 = vmatprep.subr.bf16.mxu0 %v921
    %1186 = vmatpush1.bf16.msra.mxu0 %v920
    %1187 = vmatprep.subr.bf16.mxu0 %v923
    %1188 = vmatpush1.bf16.msra.mxu0 %v922
    %1189 = vmatprep.subr.bf16.mxu0 %v925
    %1190 = vmatpush1.bf16.msra.mxu0 %v924
    %1191 = vmatprep.subr.bf16.mxu0 %v927
    %1192 = vmatpush1.bf16.msra.mxu0 %v926
    %1193 = vmatprep.subr.bf16.mxu0 %v929
    %1194 = vmatpush1.bf16.msra.mxu0 %v928
    %1195 = vmatprep.subr.bf16.mxu0 %v931
    %1196 = vmatpush1.bf16.msra.mxu0 %v930
    %1197 = vmatprep.subr.bf16.mxu0 %v933
    %1198 = vmatpush1.bf16.msra.mxu0 %v932
    %1199 = vmatprep.subr.bf16.mxu0 %v935
    %1200 = vmatpush1.bf16.msra.mxu0 %v934
    %1201 = vmatprep.subr.bf16.mxu0 %v937
    %1202 = vmatpush1.bf16.msra.mxu0 %v936
    %1203 = vmatprep.subr.bf16.mxu0 %v939
    %1204 = vmatpush1.bf16.msra.mxu0 %v938
    %1205 = vmatprep.subr.bf16.mxu0 %v941
    %1206 = vmatpush1.bf16.msra.mxu0 %v940
    %1207 = vmatprep.mubr.bf16.mxu0 %v431
    %1208 = vmatmul.mubr.bf16.gmra.mrb[0].mxu0 %v430
    %v1209 = vpop.f32.mrb[0].mxu0
    %v1210 = vadd.f32 %v231, %v1209
    %v1211 = vpop.f32.mrb[0].mxu0
    %v1212 = vadd.f32 %v235, %v1211
    %v1213 = vpop.f32.mrb[0].mxu0
    %v1214 = vadd.f32 %v231, %v1213
    %v1215 = vpop.f32.mrb[0].mxu0
    %v1216 = vadd.f32 %v235, %v1215
    %1217 = vmatprep.mubr.bf16.mxu0 %v439
    %1218 = vmatmul.mubr.bf16.gmra.mrb[0].mxu0 %v438
    %v1219 = vpop.f32.mrb[0].mxu0
    %v1220 = vadd.f32 %v231, %v1219
    %v1221 = vpop.f32.mrb[0].mxu0
    %v1222 = vadd.f32 %v235, %v1221
    %v1223 = vpop.f32.mrb[0].mxu0
    %v1224 = vadd.f32 %v231, %v1223
    %v1225 = vpop.f32.mrb[0].mxu0
    %v1226 = vadd.f32 %v235, %v1225
    %1227 = vmatprep.mubr.bf16.mxu0 %v447
    %1228 = vmatmul.mubr.bf16.gmra.mrb[0].mxu0 %v446
    %v1229 = vpop.f32.mrb[0].mxu0
    %v1230 = vadd.f32 %v231, %v1229
    %v1231 = vpop.f32.mrb[0].mxu0
    %v1232 = vadd.f32 %v235, %v1231
    %v1233 = vpop.f32.mrb[0].mxu0
    %v1234 = vadd.f32 %v231, %v1233
    %v1235 = vpop.f32.mrb[0].mxu0
    %v1236 = vadd.f32 %v235, %v1235
    %1237 = vmatprep.mubr.bf16.mxu0 %v455
    %1238 = vmatmul.mubr.bf16.gmra.mrb[0].mxu0 %v454
    %v1239 = vpop.f32.mrb[0].mxu0
    %v1240 = vadd.f32 %v231, %v1239
    %v1241 = vpop.f32.mrb[0].mxu0
    %v1242 = vadd.f32 %v235, %v1241
    %v1243 = vpop.f32.mrb[0].mxu0
    %v1244 = vadd.f32 %v231, %v1243
    %v1245 = vpop.f32.mrb[0].mxu0
    %v1246 = vadd.f32 %v235, %v1245
    %1247 = vmatprep.mubr.bf16.mxu0 %v463
    %1248 = vmatmul.mubr.bf16.gmra.mrb[0].mxu0 %v462
    %v1249 = vpop.f32.mrb[0].mxu0
    %v1250 = vadd.f32 %v231, %v1249
    %v1251 = vpop.f32.mrb[0].mxu0
    %v1252 = vadd.f32 %v235, %v1251
    %v1253 = vpop.f32.mrb[0].mxu0
    %v1254 = vadd.f32 %v231, %v1253
    %v1255 = vpop.f32.mrb[0].mxu0
    %v1256 = vadd.f32 %v235, %v1255
    %1257 = vmatprep.mubr.bf16.mxu0 %v471
    %1258 = vmatmul.mubr.bf16.gmra.mrb[0].mxu0 %v470
    %v1259 = vpop.f32.mrb[0].mxu0
    %v1260 = vadd.f32 %v231, %v1259
    %v1261 = vpop.f32.mrb[0].mxu0
    %v1262 = vadd.f32 %v235, %v1261
    %v1263 = vpop.f32.mrb[0].mxu0
    %v1264 = vadd.f32 %v231, %v1263
    %v1265 = vpop.f32.mrb[0].mxu0
    %v1266 = vadd.f32 %v235, %v1265
    %1267 = vmatprep.mubr.bf16.mxu0 %v479
    %1268 = vmatmul.mubr.bf16.gmra.mrb[0].mxu0 %v478
    %v1269 = vpop.f32.mrb[0].mxu0
    %v1270 = vadd.f32 %v231, %v1269
    %v1271 = vpop.f32.mrb[0].mxu0
    %v1272 = vadd.f32 %v235, %v1271
    %v1273 = vpop.f32.mrb[0].mxu0
    %v1274 = vadd.f32 %v231, %v1273
    %v1275 = vpop.f32.mrb[0].mxu0
    %v1276 = vadd.f32 %v235, %v1275
    %1277 = vmatprep.mubr.bf16.mxu0 %v487
    %1278 = vmatmul.mubr.bf16.gmra.mrb[0].mxu0 %v486
    %v1279 = vpop.f32.mrb[0].mxu0
    %v1280 = vadd.f32 %v231, %v1279
    %v1281 = vpop.f32.mrb[0].mxu0
    %v1282 = vadd.f32 %v235, %v1281
    %v1283 = vpop.f32.mrb[0].mxu0
    %v1284 = vadd.f32 %v231, %v1283
    %v1285 = vpop.f32.mrb[0].mxu0
    %v1286 = vadd.f32 %v235, %v1285
    %1287 = vdwg.mxu0
    %1288 = vmatprep.subr.bf16.mxu0 %v943
    %1289 = vmatpush1.bf16.msra.mxu0 %v942
    %1290 = vmatprep.subr.bf16.mxu0 %v945
    %1291 = vmatpush1.bf16.msra.mxu0 %v944
    %1292 = vmatprep.subr.bf16.mxu0 %v947
    %1293 = vmatpush1.bf16.msra.mxu0 %v946
    %1294 = vmatprep.subr.bf16.mxu0 %v949
    %1295 = vmatpush1.bf16.msra.mxu0 %v948
    %1296 = vmatprep.subr.bf16.mxu0 %v951
    %1297 = vmatpush1.bf16.msra.mxu0 %v950
    %1298 = vmatprep.subr.bf16.mxu0 %v953
    %1299 = vmatpush1.bf16.msra.mxu0 %v952
    %1300 = vmatprep.subr.bf16.mxu0 %v955
    %1301 = vmatpush1.bf16.msra.mxu0 %v954
    %1302 = vmatprep.subr.bf16.mxu0 %v957
    %1303 = vmatpush1.bf16.msra.mxu0 %v956
    %1304 = vmatprep.subr.bf16.mxu0 %v959
    %1305 = vmatpush1.bf16.msra.mxu0 %v958
    %1306 = vmatprep.subr.bf16.mxu0 %v961
    %1307 = vmatpush1.bf16.msra.mxu0 %v960
    %1308 = vmatprep.subr.bf16.mxu0 %v963
    %1309 = vmatpush1.bf16.msra.mxu0 %v962
    %1310 = vmatprep.subr.bf16.mxu0 %v965
    %1311 = vmatpush1.bf16.msra.mxu0 %v964
    %1312 = vmatprep.subr.bf16.mxu0 %v967
    %1313 = vmatpush1.bf16.msra.mxu0 %v966
    %1314 = vmatprep.subr.bf16.mxu0 %v969
    %1315 = vmatpush1.bf16.msra.mxu0 %v968
    %1316 = vmatprep.subr.bf16.mxu0 %v971
    %1317 = vmatpush1.bf16.msra.mxu0 %v970
    %1318 = vmatprep.subr.bf16.mxu0 %v973
    %1319 = vmatpush1.bf16.msra.mxu0 %v972
    %1320 = vmatprep.mubr.bf16.mxu0 %v433
    %1321 = vmatmul.mubr.bf16.gmra.mrb[0].mxu0 %v432
    %v1322 = vpop.f32.mrb[0].mxu0
    %v1323 = vadd.f32 %v1210, %v1322
    %v1324 = vpop.f32.mrb[0].mxu0
    %v1325 = vadd.f32 %v1212, %v1324
    %v1326 = vpop.f32.mrb[0].mxu0
    %v1327 = vadd.f32 %v1214, %v1326
    %v1328 = vpop.f32.mrb[0].mxu0
    %v1329 = vadd.f32 %v1216, %v1328
    %1330 = vmatprep.mubr.bf16.mxu0 %v441
    %1331 = vmatmul.mubr.bf16.gmra.mrb[0].mxu0 %v440
    %v1332 = vpop.f32.mrb[0].mxu0
    %v1333 = vadd.f32 %v1220, %v1332
    %v1334 = vpop.f32.mrb[0].mxu0
    %v1335 = vadd.f32 %v1222, %v1334
    %v1336 = vpop.f32.mrb[0].mxu0
    %v1337 = vadd.f32 %v1224, %v1336
    %v1338 = vpop.f32.mrb[0].mxu0
    %v1339 = vadd.f32 %v1226, %v1338
    %1340 = vmatprep.mubr.bf16.mxu0 %v449
    %1341 = vmatmul.mubr.bf16.gmra.mrb[0].mxu0 %v448
    %v1342 = vpop.f32.mrb[0].mxu0
    %v1343 = vadd.f32 %v1230, %v1342
    %v1344 = vpop.f32.mrb[0].mxu0
    %v1345 = vadd.f32 %v1232, %v1344
    %v1346 = vpop.f32.mrb[0].mxu0
    %v1347 = vadd.f32 %v1234, %v1346
    %v1348 = vpop.f32.mrb[0].mxu0
    %v1349 = vadd.f32 %v1236, %v1348
    %1350 = vmatprep.mubr.bf16.mxu0 %v457
    %1351 = vmatmul.mubr.bf16.gmra.mrb[0].mxu0 %v456
    %v1352 = vpop.f32.mrb[0].mxu0
    %v1353 = vadd.f32 %v1240, %v1352
    %v1354 = vpop.f32.mrb[0].mxu0
    %v1355 = vadd.f32 %v1242, %v1354
    %v1356 = vpop.f32.mrb[0].mxu0
    %v1357 = vadd.f32 %v1244, %v1356
    %v1358 = vpop.f32.mrb[0].mxu0
    %v1359 = vadd.f32 %v1246, %v1358
    %1360 = vmatprep.mubr.bf16.mxu0 %v465
    %1361 = vmatmul.mubr.bf16.gmra.mrb[0].mxu0 %v464
    %v1362 = vpop.f32.mrb[0].mxu0
    %v1363 = vadd.f32 %v1250, %v1362
    %v1364 = vpop.f32.mrb[0].mxu0
    %v1365 = vadd.f32 %v1252, %v1364
    %v1366 = vpop.f32.mrb[0].mxu0
    %v1367 = vadd.f32 %v1254, %v1366
    %v1368 = vpop.f32.mrb[0].mxu0
    %v1369 = vadd.f32 %v1256, %v1368
    %1370 = vmatprep.mubr.bf16.mxu0 %v473
    %1371 = vmatmul.mubr.bf16.gmra.mrb[0].mxu0 %v472
    %v1372 = vpop.f32.mrb[0].mxu0
    %v1373 = vadd.f32 %v1260, %v1372
    %v1374 = vpop.f32.mrb[0].mxu0
    %v1375 = vadd.f32 %v1262, %v1374
    %v1376 = vpop.f32.mrb[0].mxu0
    %v1377 = vadd.f32 %v1264, %v1376
    %v1378 = vpop.f32.mrb[0].mxu0
    %v1379 = vadd.f32 %v1266, %v1378
    %1380 = vmatprep.mubr.bf16.mxu0 %v481
    %1381 = vmatmul.mubr.bf16.gmra.mrb[0].mxu0 %v480
    %v1382 = vpop.f32.mrb[0].mxu0
    %v1383 = vadd.f32 %v1270, %v1382
    %v1384 = vpop.f32.mrb[0].mxu0
    %v1385 = vadd.f32 %v1272, %v1384
    %v1386 = vpop.f32.mrb[0].mxu0
    %v1387 = vadd.f32 %v1274, %v1386
    %v1388 = vpop.f32.mrb[0].mxu0
    %v1389 = vadd.f32 %v1276, %v1388
    %1390 = vmatprep.mubr.bf16.mxu0 %v489
    %1391 = vmatmul.mubr.bf16.gmra.mrb[0].mxu0 %v488
    %v1392 = vpop.f32.mrb[0].mxu0
    %v1393 = vadd.f32 %v1280, %v1392
    %v1394 = vpop.f32.mrb[0].mxu0
    %v1395 = vadd.f32 %v1282, %v1394
    %v1396 = vpop.f32.mrb[0].mxu0
    %v1397 = vadd.f32 %v1284, %v1396
    %v1398 = vpop.f32.mrb[0].mxu0
    %v1399 = vadd.f32 %v1286, %v1398
    %1400 = vdwg.mxu0
    %1401 = vmatprep.subr.bf16.mxu0 %v975
    %1402 = vmatpush1.bf16.msra.mxu0 %v974
    %1403 = vmatprep.subr.bf16.mxu0 %v977
    %1404 = vmatpush1.bf16.msra.mxu0 %v976
    %1405 = vmatprep.subr.bf16.mxu0 %v979
    %1406 = vmatpush1.bf16.msra.mxu0 %v978
    %1407 = vmatprep.subr.bf16.mxu0 %v981
    %1408 = vmatpush1.bf16.msra.mxu0 %v980
    %1409 = vmatprep.subr.bf16.mxu0 %v983
    %1410 = vmatpush1.bf16.msra.mxu0 %v982
    %1411 = vmatprep.subr.bf16.mxu0 %v985
    %1412 = vmatpush1.bf16.msra.mxu0 %v984
    %1413 = vmatprep.subr.bf16.mxu0 %v987
    %1414 = vmatpush1.bf16.msra.mxu0 %v986
    %1415 = vmatprep.subr.bf16.mxu0 %v989
    %1416 = vmatpush1.bf16.msra.mxu0 %v988
    %1417 = vmatprep.subr.bf16.mxu0 %v991
    %1418 = vmatpush1.bf16.msra.mxu0 %v990
    %1419 = vmatprep.subr.bf16.mxu0 %v993
    %1420 = vmatpush1.bf16.msra.mxu0 %v992
    %1421 = vmatprep.subr.bf16.mxu0 %v995
    %1422 = vmatpush1.bf16.msra.mxu0 %v994
    %1423 = vmatprep.subr.bf16.mxu0 %v997
    %1424 = vmatpush1.bf16.msra.mxu0 %v996
    %1425 = vmatprep.subr.bf16.mxu0 %v999
    %1426 = vmatpush1.bf16.msra.mxu0 %v998
    %1427 = vmatprep.subr.bf16.mxu0 %v1001
    %1428 = vmatpush1.bf16.msra.mxu0 %v1000
    %1429 = vmatprep.subr.bf16.mxu0 %v1003
    %1430 = vmatpush1.bf16.msra.mxu0 %v1002
    %1431 = vmatprep.subr.bf16.mxu0 %v1005
    %1432 = vmatpush1.bf16.msra.mxu0 %v1004
    %1433 = vmatprep.mubr.bf16.mxu0 %v435
    %1434 = vmatmul.mubr.bf16.gmra.mrb[0].mxu0 %v434
    %v1435 = vpop.f32.mrb[0].mxu0
    %v1436 = vadd.f32 %v1323, %v1435
    %v1437 = vpop.f32.mrb[0].mxu0
    %v1438 = vadd.f32 %v1325, %v1437
    %v1439 = vpop.f32.mrb[0].mxu0
    %v1440 = vadd.f32 %v1327, %v1439
    %v1441 = vpop.f32.mrb[0].mxu0
    %v1442 = vadd.f32 %v1329, %v1441
    %1443 = vmatprep.mubr.bf16.mxu0 %v443
    %1444 = vmatmul.mubr.bf16.gmra.mrb[0].mxu0 %v442
    %v1445 = vpop.f32.mrb[0].mxu0
    %v1446 = vadd.f32 %v1333, %v1445
    %v1447 = vpop.f32.mrb[0].mxu0
    %v1448 = vadd.f32 %v1335, %v1447
    %v1449 = vpop.f32.mrb[0].mxu0
    %v1450 = vadd.f32 %v1337, %v1449
    %v1451 = vpop.f32.mrb[0].mxu0
    %v1452 = vadd.f32 %v1339, %v1451
    %1453 = vmatprep.mubr.bf16.mxu0 %v451
    %1454 = vmatmul.mubr.bf16.gmra.mrb[0].mxu0 %v450
    %v1455 = vpop.f32.mrb[0].mxu0
    %v1456 = vadd.f32 %v1343, %v1455
    %v1457 = vpop.f32.mrb[0].mxu0
    %v1458 = vadd.f32 %v1345, %v1457
    %v1459 = vpop.f32.mrb[0].mxu0
    %v1460 = vadd.f32 %v1347, %v1459
    %v1461 = vpop.f32.mrb[0].mxu0
    %v1462 = vadd.f32 %v1349, %v1461
    %1463 = vmatprep.mubr.bf16.mxu0 %v459
    %1464 = vmatmul.mubr.bf16.gmra.mrb[0].mxu0 %v458
    %v1465 = vpop.f32.mrb[0].mxu0
    %v1466 = vadd.f32 %v1353, %v1465
    %v1467 = vpop.f32.mrb[0].mxu0
    %v1468 = vadd.f32 %v1355, %v1467
    %v1469 = vpop.f32.mrb[0].mxu0
    %v1470 = vadd.f32 %v1357, %v1469
    %v1471 = vpop.f32.mrb[0].mxu0
    %v1472 = vadd.f32 %v1359, %v1471
    %1473 = vmatprep.mubr.bf16.mxu0 %v467
    %1474 = vmatmul.mubr.bf16.gmra.mrb[0].mxu0 %v466
    %v1475 = vpop.f32.mrb[0].mxu0
    %v1476 = vadd.f32 %v1363, %v1475
    %v1477 = vpop.f32.mrb[0].mxu0
    %v1478 = vadd.f32 %v1365, %v1477
    %v1479 = vpop.f32.mrb[0].mxu0
    %v1480 = vadd.f32 %v1367, %v1479
    %v1481 = vpop.f32.mrb[0].mxu0
    %v1482 = vadd.f32 %v1369, %v1481
    %1483 = vmatprep.mubr.bf16.mxu0 %v475
    %1484 = vmatmul.mubr.bf16.gmra.mrb[0].mxu0 %v474
    %v1485 = vpop.f32.mrb[0].mxu0
    %v1486 = vadd.f32 %v1373, %v1485
    %v1487 = vpop.f32.mrb[0].mxu0
    %v1488 = vadd.f32 %v1375, %v1487
    %v1489 = vpop.f32.mrb[0].mxu0
    %v1490 = vadd.f32 %v1377, %v1489
    %v1491 = vpop.f32.mrb[0].mxu0
    %v1492 = vadd.f32 %v1379, %v1491
    %1493 = vmatprep.mubr.bf16.mxu0 %v483
    %1494 = vmatmul.mubr.bf16.gmra.mrb[0].mxu0 %v482
    %v1495 = vpop.f32.mrb[0].mxu0
    %v1496 = vadd.f32 %v1383, %v1495
    %v1497 = vpop.f32.mrb[0].mxu0
    %v1498 = vadd.f32 %v1385, %v1497
    %v1499 = vpop.f32.mrb[0].mxu0
    %v1500 = vadd.f32 %v1387, %v1499
    %v1501 = vpop.f32.mrb[0].mxu0
    %v1502 = vadd.f32 %v1389, %v1501
    %1503 = vmatprep.mubr.bf16.mxu0 %v491
    %1504 = vmatmul.mubr.bf16.gmra.mrb[0].mxu0 %v490
    %v1505 = vpop.f32.mrb[0].mxu0
    %v1506 = vadd.f32 %v1393, %v1505
    %v1507 = vpop.f32.mrb[0].mxu0
    %v1508 = vadd.f32 %v1395, %v1507
    %v1509 = vpop.f32.mrb[0].mxu0
    %v1510 = vadd.f32 %v1397, %v1509
    %v1511 = vpop.f32.mrb[0].mxu0
    %v1512 = vadd.f32 %v1399, %v1511
    %1513 = vdwg.mxu0
    %1514 = vmatprep.subr.bf16.mxu0 %v1007
    %1515 = vmatpush1.bf16.msra.mxu0 %v1006
    %1516 = vmatprep.subr.bf16.mxu0 %v1009
    %1517 = vmatpush1.bf16.msra.mxu0 %v1008
    %1518 = vmatprep.subr.bf16.mxu0 %v1011
    %1519 = vmatpush1.bf16.msra.mxu0 %v1010
    %1520 = vmatprep.subr.bf16.mxu0 %v1013
    %1521 = vmatpush1.bf16.msra.mxu0 %v1012
    %1522 = vmatprep.subr.bf16.mxu0 %v1015
    %1523 = vmatpush1.bf16.msra.mxu0 %v1014
    %1524 = vmatprep.subr.bf16.mxu0 %v1017
    %1525 = vmatpush1.bf16.msra.mxu0 %v1016
    %1526 = vmatprep.subr.bf16.mxu0 %v1019
    %1527 = vmatpush1.bf16.msra.mxu0 %v1018
    %1528 = vmatprep.subr.bf16.mxu0 %v1021
    %1529 = vmatpush1.bf16.msra.mxu0 %v1020
    %1530 = vmatprep.subr.bf16.mxu0 %v1023
    %1531 = vmatpush1.bf16.msra.mxu0 %v1022
    %1532 = vmatprep.subr.bf16.mxu0 %v1025
    %1533 = vmatpush1.bf16.msra.mxu0 %v1024
    %1534 = vmatprep.subr.bf16.mxu0 %v1027
    %1535 = vmatpush1.bf16.msra.mxu0 %v1026
    %1536 = vmatprep.subr.bf16.mxu0 %v1029
    %1537 = vmatpush1.bf16.msra.mxu0 %v1028
    %1538 = vmatprep.subr.bf16.mxu0 0
    %1539 = vmatpush1.bf16.msra.mxu0 0
    %1540 = vmatprep.subr.bf16.mxu0 0
    %1541 = vmatpush1.bf16.msra.mxu0 0
    %1542 = vmatprep.subr.bf16.mxu0 0
    %1543 = vmatpush1.bf16.msra.mxu0 0
    %1544 = vmatprep.subr.bf16.mxu0 0
    %1545 = vmatpush1.bf16.msra.mxu0 0
    %1546 = vmatprep.mubr.bf16.mxu0 %v1152
    %1547 = vmatmul.mubr.bf16.gmra.mrb[0].mxu0 %v436
    %v1548 = vpop.f32.mrb[0].mxu0
    %v1549 = vadd.f32 %v1436, %v1548
    %v1550 = vpop.f32.mrb[0].mxu0
    %v1551 = vadd.f32 %v1438, %v1550
    %v1552 = vpop.f32.mrb[0].mxu0
    %v1553 = vadd.f32 %v1440, %v1552
    %v1554 = vpop.f32.mrb[0].mxu0
    %v1555 = vadd.f32 %v1442, %v1554
    %1556 = vmatprep.mubr.bf16.mxu0 %v1155
    %1557 = vmatmul.mubr.bf16.gmra.mrb[0].mxu0 %v444
    %v1558 = vpop.f32.mrb[0].mxu0
    %v1559 = vadd.f32 %v1446, %v1558
    %v1560 = vpop.f32.mrb[0].mxu0
    %v1561 = vadd.f32 %v1448, %v1560
    %v1562 = vpop.f32.mrb[0].mxu0
    %v1563 = vadd.f32 %v1450, %v1562
    %v1564 = vpop.f32.mrb[0].mxu0
    %v1565 = vadd.f32 %v1452, %v1564
    %1566 = vmatprep.mubr.bf16.mxu0 %v1158
    %1567 = vmatmul.mubr.bf16.gmra.mrb[0].mxu0 %v452
    %v1568 = vpop.f32.mrb[0].mxu0
    %v1569 = vadd.f32 %v1456, %v1568
    %v1570 = vpop.f32.mrb[0].mxu0
    %v1571 = vadd.f32 %v1458, %v1570
    %v1572 = vpop.f32.mrb[0].mxu0
    %v1573 = vadd.f32 %v1460, %v1572
    %v1574 = vpop.f32.mrb[0].mxu0
    %v1575 = vadd.f32 %v1462, %v1574
    %1576 = vmatprep.mubr.bf16.mxu0 %v1161
    %1577 = vmatmul.mubr.bf16.gmra.mrb[0].mxu0 %v460
    %v1578 = vpop.f32.mrb[0].mxu0
    %v1579 = vadd.f32 %v1466, %v1578
    %v1580 = vpop.f32.mrb[0].mxu0
    %v1581 = vadd.f32 %v1468, %v1580
    %v1582 = vpop.f32.mrb[0].mxu0
    %v1583 = vadd.f32 %v1470, %v1582
    %v1584 = vpop.f32.mrb[0].mxu0
    %v1585 = vadd.f32 %v1472, %v1584
    %1586 = vmatprep.mubr.bf16.mxu0 %v1164
    %1587 = vmatmul.mubr.bf16.gmra.mrb[0].mxu0 %v468
    %v1588 = vpop.f32.mrb[0].mxu0
    %v1589 = vadd.f32 %v1476, %v1588
    %v1590 = vpop.f32.mrb[0].mxu0
    %v1591 = vadd.f32 %v1478, %v1590
    %v1592 = vpop.f32.mrb[0].mxu0
    %v1593 = vadd.f32 %v1480, %v1592
    %v1594 = vpop.f32.mrb[0].mxu0
    %v1595 = vadd.f32 %v1482, %v1594
    %1596 = vmatprep.mubr.bf16.mxu0 %v1167
    %1597 = vmatmul.mubr.bf16.gmra.mrb[0].mxu0 %v476
    %v1598 = vpop.f32.mrb[0].mxu0
    %v1599 = vadd.f32 %v1486, %v1598
    %v1600 = vpop.f32.mrb[0].mxu0
    %v1601 = vadd.f32 %v1488, %v1600
    %v1602 = vpop.f32.mrb[0].mxu0
    %v1603 = vadd.f32 %v1490, %v1602
    %v1604 = vpop.f32.mrb[0].mxu0
    %v1605 = vadd.f32 %v1492, %v1604
    %1606 = vmatprep.mubr.bf16.mxu0 %v1170
    %1607 = vmatmul.mubr.bf16.gmra.mrb[0].mxu0 %v484
    %v1608 = vpop.f32.mrb[0].mxu0
    %v1609 = vadd.f32 %v1496, %v1608
    %v1610 = vpop.f32.mrb[0].mxu0
    %v1611 = vadd.f32 %v1498, %v1610
    %v1612 = vpop.f32.mrb[0].mxu0
    %v1613 = vadd.f32 %v1500, %v1612
    %v1614 = vpop.f32.mrb[0].mxu0
    %v1615 = vadd.f32 %v1502, %v1614
    %1616 = vmatprep.mubr.bf16.mxu0 %v1173
    %1617 = vmatmul.mubr.bf16.gmra.mrb[0].mxu0 %v492
    %v1618 = vpop.f32.mrb[0].mxu0
    %v1619 = vadd.f32 %v1506, %v1618
    %v1620 = vpop.f32.mrb[0].mxu0
    %v1621 = vadd.f32 %v1508, %v1620
    %v1622 = vpop.f32.mrb[0].mxu0
    %v1623 = vadd.f32 %v1510, %v1622
    %v1624 = vpop.f32.mrb[0].mxu0
    %v1625 = vadd.f32 %v1512, %v1624
    %1626 = vdwg.mxu0
    %v1627 = vpack.c.bf16 %v1553, %v1549
    %v1628 = vpack.c.bf16 %v1555, %v1551
    %v1629 = vpack.c.bf16 %v1563, %v1559
    %v1630 = vpack.c.bf16 %v1565, %v1561
    %v1631 = vpack.c.bf16 %v1573, %v1569
    %v1632 = vpack.c.bf16 %v1575, %v1571
    %v1633 = vpack.c.bf16 %v1583, %v1579
    %v1634 = vpack.c.bf16 %v1585, %v1581
    %v1635 = vpack.c.bf16 %v1593, %v1589
    %v1636 = vpack.c.bf16 %v1595, %v1591
    %v1637 = vpack.c.bf16 %v1603, %v1599
    %v1638 = vpack.c.bf16 %v1605, %v1601
    %v1639 = vpack.c.bf16 %v1613, %v1609
    %v1640 = vpack.c.bf16 %v1615, %v1611
    %v1641 = vpack.c.bf16 %v1623, %v1619
    %v1642 = vpack.c.bf16 %v1625, %v1621
    %v1643 = vld [vmem:[%s3] sm:$0xff]
    %v1644 = vld [vmem:[%s3 + $0x8] sm:$0xf]
    %v1645 = vld [vmem:[%s3 + $0xc] sm:$0xff]
    %v1646 = vld [vmem:[%s3 + $0x14] sm:$0xf]
    %v1647 = vld [vmem:[%s3 + $0x18] sm:$0xff]
    %v1648 = vld [vmem:[%s3 + $0x20] sm:$0xf]
    %v1649 = vld [vmem:[%s3 + $0x24] sm:$0xff]
    %v1650 = vld [vmem:[%s3 + $0x2c] sm:$0xf]
    %v1651 = vld [vmem:[%s3 + $0x30] sm:$0xff]
    %v1652 = vld [vmem:[%s3 + $0x38] sm:$0xf]
    %v1653 = vld [vmem:[%s3 + $0x3c] sm:$0xff]
    %v1654 = vld [vmem:[%s3 + $0x44] sm:$0xf]
    %v1655 = vld [vmem:[%s3 + $0x48] sm:$0xff]
    %v1656 = vld [vmem:[%s3 + $0x50] sm:$0xf]
    %v1657 = vld [vmem:[%s3 + $0x54] sm:$0xff]
    %v1658 = vld [vmem:[%s3 + $0x5c] sm:$0xf]
    %v1659 = vld [vmem:[%s3 + $0x60] sm:$0xff]
    %v1660 = vld [vmem:[%s3 + $0x68] sm:$0xf]
    %v1661 = vld [vmem:[%s3 + $0x6c] sm:$0xff]
    %v1662 = vld [vmem:[%s3 + $0x74] sm:$0xf]
    %v1663 = vld [vmem:[%s3 + $0x78] sm:$0xff]
    %v1664 = vld [vmem:[%s3 + $0x80] sm:$0xf]
    %v1665 = vld [vmem:[%s3 + $0x84] sm:$0xff]
    %v1666 = vld [vmem:[%s3 + $0x8c] sm:$0xf]
    %v1667 = vld [vmem:[%s3 + $0x90] sm:$0xff]
    %v1668 = vld [vmem:[%s3 + $0x98] sm:$0xf]
    %v1669 = vld [vmem:[%s3 + $0x9c] sm:$0xff]
    %v1670 = vld [vmem:[%s3 + $0xa4] sm:$0xf]
    %v1671 = vld [vmem:[%s3 + $0xa8] sm:$0xff]
    %v1672 = vld [vmem:[%s3 + $0xb0] sm:$0xf]
    %v1673 = vld [vmem:[%s3 + $0xb4] sm:$0xff]
    %v1674 = vld [vmem:[%s3 + $0xbc] sm:$0xf]
    %v1675 = vld [vmem:[%s3 + $0xc0] sm:$0xff]
    %v1676 = vld [vmem:[%s3 + $0xc8] sm:$0xf]
    %v1677 = vld [vmem:[%s3 + $0xcc] sm:$0xff]
    %v1678 = vld [vmem:[%s3 + $0xd4] sm:$0xf]
    %v1679 = vld [vmem:[%s3 + $0xd8] sm:$0xff]
    %v1680 = vld [vmem:[%s3 + $0xe0] sm:$0xf]
    %v1681 = vld [vmem:[%s3 + $0xe4] sm:$0xff]
    %v1682 = vld [vmem:[%s3 + $0xec] sm:$0xf]
    %v1683 = vld [vmem:[%s3 + $0xf0] sm:$0xff]
    %v1684 = vld [vmem:[%s3 + $0xf8] sm:$0xf]
    %v1685 = vld [vmem:[%s3 + $0xfc] sm:$0xff]
    %v1686 = vld [vmem:[%s3 + $0x104] sm:$0xf]
    %v1687 = vld [vmem:[%s3 + $0x108] sm:$0xff]
    %v1688 = vld [vmem:[%s3 + $0x110] sm:$0xf]
    %v1689 = vld [vmem:[%s3 + $0x114] sm:$0xff]
    %v1690 = vld [vmem:[%s3 + $0x11c] sm:$0xf]
    %v1691 = vld [vmem:[%s3 + $0x120] sm:$0xff]
    %v1692 = vld [vmem:[%s3 + $0x128] sm:$0xf]
    %v1693 = vld [vmem:[%s3 + $0x12c] sm:$0xff]
    %v1694 = vld [vmem:[%s3 + $0x134] sm:$0xf]
    %v1695 = vld [vmem:[%s3 + $0x138] sm:$0xff]
    %v1696 = vld [vmem:[%s3 + $0x140] sm:$0xf]
    %v1697 = vld [vmem:[%s3 + $0x144] sm:$0xff]
    %v1698 = vld [vmem:[%s3 + $0x14c] sm:$0xf]
    %v1699 = vld [vmem:[%s3 + $0x150] sm:$0xff]
    %v1700 = vld [vmem:[%s3 + $0x158] sm:$0xf]
    %v1701 = vld [vmem:[%s3 + $0x15c] sm:$0xff]
    %v1702 = vld [vmem:[%s3 + $0x164] sm:$0xf]
    %v1703 = vld [vmem:[%s3 + $0x168] sm:$0xff]
    %v1704 = vld [vmem:[%s3 + $0x170] sm:$0xf]
    %v1705 = vld [vmem:[%s3 + $0x174] sm:$0xff]
    %v1706 = vld [vmem:[%s3 + $0x17c] sm:$0xf]
    %v1771 = vunpack.c.l.b16 %v1643
    %v1772 = vunpack.c.h.b16 %v1643
    %v1773 = vunpack.c.l.b16 %v1644
    %v1774 = vunpack.c.l.b16 %v1645
    %v1775 = vunpack.c.h.b16 %v1645
    %v1776 = vunpack.c.l.b16 %v1646
    %v1777 = vunpack.c.l.b16 %v1647
    %v1778 = vunpack.c.h.b16 %v1647
    %v1779 = vunpack.c.l.b16 %v1648
    %v1780 = vunpack.c.l.b16 %v1649
    %v1781 = vunpack.c.h.b16 %v1649
    %v1782 = vunpack.c.l.b16 %v1650
    %v1783 = vunpack.c.l.b16 %v1651
    %v1784 = vunpack.c.h.b16 %v1651
    %v1785 = vunpack.c.l.b16 %v1652
    %v1786 = vunpack.c.l.b16 %v1653
    %v1787 = vunpack.c.h.b16 %v1653
    %v1788 = vunpack.c.l.b16 %v1654
    %v1789 = vunpack.c.l.b16 %v1655
    %v1790 = vunpack.c.h.b16 %v1655
    %v1791 = vunpack.c.l.b16 %v1656
    %v1792 = vunpack.c.l.b16 %v1657
    %v1793 = vunpack.c.h.b16 %v1657
    %v1794 = vunpack.c.l.b16 %v1658
    %v1795 = vunpack.c.l.b16 %v1659
    %v1796 = vunpack.c.h.b16 %v1659
    %v1797 = vunpack.c.l.b16 %v1660
    %v1798 = vunpack.c.l.b16 %v1661
    %v1799 = vunpack.c.h.b16 %v1661
    %v1800 = vunpack.c.l.b16 %v1662
    %v1801 = vunpack.c.l.b16 %v1663
    %v1802 = vunpack.c.h.b16 %v1663
    %v1803 = vunpack.c.l.b16 %v1664
    %v1804 = vunpack.c.l.b16 %v1665
    %v1805 = vunpack.c.h.b16 %v1665
    %v1806 = vunpack.c.l.b16 %v1666
    %v1807 = vunpack.c.l.b16 %v1667
    %v1808 = vunpack.c.h.b16 %v1667
    %v1809 = vunpack.c.l.b16 %v1668
    %v1810 = vunpack.c.l.b16 %v1669
    %v1811 = vunpack.c.h.b16 %v1669
    %v1812 = vunpack.c.l.b16 %v1670
    %v1813 = vunpack.c.l.b16 %v1671
    %v1814 = vunpack.c.h.b16 %v1671
    %v1815 = vunpack.c.l.b16 %v1672
    %v1816 = vunpack.c.l.b16 %v1673
    %v1817 = vunpack.c.h.b16 %v1673
    %v1818 = vunpack.c.l.b16 %v1674
    %v1819 = vunpack.c.l.b16 %v1675
    %v1820 = vunpack.c.h.b16 %v1675
    %v1821 = vunpack.c.l.b16 %v1676
    %v1822 = vunpack.c.l.b16 %v1677
    %v1823 = vunpack.c.h.b16 %v1677
    %v1824 = vunpack.c.l.b16 %v1678
    %v1825 = vunpack.c.l.b16 %v1679
    %v1826 = vunpack.c.h.b16 %v1679
    %v1827 = vunpack.c.l.b16 %v1680
    %v1828 = vunpack.c.l.b16 %v1681
    %v1829 = vunpack.c.h.b16 %v1681
    %v1830 = vunpack.c.l.b16 %v1682
    %v1831 = vunpack.c.l.b16 %v1683
    %v1832 = vunpack.c.h.b16 %v1683
    %v1833 = vunpack.c.l.b16 %v1684
    %v1834 = vunpack.c.l.b16 %v1685
    %v1835 = vunpack.c.h.b16 %v1685
    %v1836 = vunpack.c.l.b16 %v1686
    %v1837 = vunpack.c.l.b16 %v1687
    %v1838 = vunpack.c.h.b16 %v1687
    %v1839 = vunpack.c.l.b16 %v1688
    %v1840 = vunpack.c.l.b16 %v1689
    %v1841 = vunpack.c.h.b16 %v1689
    %v1842 = vunpack.c.l.b16 %v1690
    %v1843 = vunpack.c.l.b16 %v1691
    %v1844 = vunpack.c.h.b16 %v1691
    %v1845 = vunpack.c.l.b16 %v1692
    %v1846 = vunpack.c.l.b16 %v1693
    %v1847 = vunpack.c.h.b16 %v1693
    %v1848 = vunpack.c.l.b16 %v1694
    %v1849 = vunpack.c.l.b16 %v1695
    %v1850 = vunpack.c.h.b16 %v1695
    %v1851 = vunpack.c.l.b16 %v1696
    %v1852 = vunpack.c.l.b16 %v1697
    %v1853 = vunpack.c.h.b16 %v1697
    %v1854 = vunpack.c.l.b16 %v1698
    %v1855 = vunpack.c.l.b16 %v1699
    %v1856 = vunpack.c.h.b16 %v1699
    %v1857 = vunpack.c.l.b16 %v1700
    %v1858 = vunpack.c.l.b16 %v1701
    %v1859 = vunpack.c.h.b16 %v1701
    %v1860 = vunpack.c.l.b16 %v1702
    %v1861 = vunpack.c.l.b16 %v1703
    %v1862 = vunpack.c.h.b16 %v1703
    %v1863 = vunpack.c.l.b16 %v1704
    %v1864 = vunpack.c.l.b16 %v1705
    %v1865 = vunpack.c.h.b16 %v1705
    %v1866 = vunpack.c.l.b16 %v1706
    %v1867 = vpack.c.b16 %v1774, %v1771
    %v1868 = vpack.c.b16 %v1775, %v1772
    %v1869 = vpack.c.b16 %v1776, %v1773
    %v1870 = vpack.c.b16 %v1780, %v1777
    %v1871 = vpack.c.b16 %v1781, %v1778
    %v1872 = vpack.c.b16 %v1782, %v1779
    %v1873 = vpack.c.b16 %v1786, %v1783
    %v1874 = vpack.c.b16 %v1787, %v1784
    %v1875 = vpack.c.b16 %v1788, %v1785
    %v1876 = vpack.c.b16 %v1792, %v1789
    %v1877 = vpack.c.b16 %v1793, %v1790
    %v1878 = vpack.c.b16 %v1794, %v1791
    %v1879 = vpack.c.b16 %v1798, %v1795
    %v1880 = vpack.c.b16 %v1799, %v1796
    %v1881 = vpack.c.b16 %v1800, %v1797
    %v1882 = vpack.c.b16 %v1804, %v1801
    %v1883 = vpack.c.b16 %v1805, %v1802
    %v1884 = vpack.c.b16 %v1806, %v1803
    %v1885 = vpack.c.b16 %v1810, %v1807
    %v1886 = vpack.c.b16 %v1811, %v1808
    %v1887 = vpack.c.b16 %v1812, %v1809
    %v1888 = vpack.c.b16 %v1816, %v1813
    %v1889 = vpack.c.b16 %v1817, %v1814
    %v1890 = vpack.c.b16 %v1818, %v1815
    %v1891 = vpack.c.b16 %v1822, %v1819
    %v1892 = vpack.c.b16 %v1823, %v1820
    %v1893 = vpack.c.b16 %v1824, %v1821
    %v1894 = vpack.c.b16 %v1828, %v1825
    %v1895 = vpack.c.b16 %v1829, %v1826
    %v1896 = vpack.c.b16 %v1830, %v1827
    %v1897 = vpack.c.b16 %v1834, %v1831
    %v1898 = vpack.c.b16 %v1835, %v1832
    %v1899 = vpack.c.b16 %v1836, %v1833
    %v1900 = vpack.c.b16 %v1840, %v1837
    %v1901 = vpack.c.b16 %v1841, %v1838
    %v1902 = vpack.c.b16 %v1842, %v1839
    %v1903 = vpack.c.b16 %v1846, %v1843
    %v1904 = vpack.c.b16 %v1847, %v1844
    %v1905 = vpack.c.b16 %v1848, %v1845
    %v1906 = vpack.c.b16 %v1852, %v1849
    %v1907 = vpack.c.b16 %v1853, %v1850
    %v1908 = vpack.c.b16 %v1854, %v1851
    %v1909 = vpack.c.b16 %v1858, %v1855
    %v1910 = vpack.c.b16 %v1859, %v1856
    %v1911 = vpack.c.b16 %v1860, %v1857
    %v1912 = vpack.c.b16 %v1864, %v1861
    %v1913 = vpack.c.b16 %v1865, %v1862
    %v1914 = vpack.c.b16 %v1866, %v1863
    %1963 = vmatprep.subr.bf16.mxu0 %v1868
    %1964 = vmatpush1.bf16.msra.mxu0 %v1867
    %1965 = vmatprep.subr.bf16.mxu0 %v1871
    %1966 = vmatpush1.bf16.msra.mxu0 %v1870
    %1967 = vmatprep.subr.bf16.mxu0 %v1874
    %1968 = vmatpush1.bf16.msra.mxu0 %v1873
    %1969 = vmatprep.subr.bf16.mxu0 %v1877
    %1970 = vmatpush1.bf16.msra.mxu0 %v1876
    %1971 = vmatprep.subr.bf16.mxu0 %v1880
    %1972 = vmatpush1.bf16.msra.mxu0 %v1879
    %1973 = vmatprep.subr.bf16.mxu0 %v1883
    %1974 = vmatpush1.bf16.msra.mxu0 %v1882
    %1975 = vmatprep.subr.bf16.mxu0 %v1886
    %1976 = vmatpush1.bf16.msra.mxu0 %v1885
    %1977 = vmatprep.subr.bf16.mxu0 %v1889
    %1978 = vmatpush1.bf16.msra.mxu0 %v1888
    %1979 = vmatprep.subr.bf16.mxu0 %v1892
    %1980 = vmatpush1.bf16.msra.mxu0 %v1891
    %1981 = vmatprep.subr.bf16.mxu0 %v1895
    %1982 = vmatpush1.bf16.msra.mxu0 %v1894
    %1983 = vmatprep.subr.bf16.mxu0 %v1898
    %1984 = vmatpush1.bf16.msra.mxu0 %v1897
    %1985 = vmatprep.subr.bf16.mxu0 %v1901
    %1986 = vmatpush1.bf16.msra.mxu0 %v1900
    %1987 = vmatprep.subr.bf16.mxu0 %v1904
    %1988 = vmatpush1.bf16.msra.mxu0 %v1903
    %1989 = vmatprep.subr.bf16.mxu0 %v1907
    %1990 = vmatpush1.bf16.msra.mxu0 %v1906
    %1991 = vmatprep.subr.bf16.mxu0 %v1910
    %1992 = vmatpush1.bf16.msra.mxu0 %v1909
    %1993 = vmatprep.subr.bf16.mxu0 %v1913
    %1994 = vmatpush1.bf16.msra.mxu0 %v1912
    %1995 = vmatprep.mubr.bf16.mxu0 %v1628
    %1996 = vmatmul.mubr.bf16.gmra.mrb[0].mxu0 %v1627
    %v1997 = vpop.f32.mrb[0].mxu0
    %v1998 = vadd.f32 0.0, %v1997
    %v1999 = vpop.f32.mrb[0].mxu0
    %v2000 = vadd.f32 0.0, %v1999
    %v2001 = vpop.f32.mrb[0].mxu0
    %v2002 = vadd.f32 0.0, %v2001
    %v2003 = vpop.f32.mrb[0].mxu0
    %v2004 = vadd.f32 0.0, %v2003
    %2005 = vmatprep.mubr.bf16.mxu0 %v1630
    %2006 = vmatmul.mubr.bf16.gmra.mrb[0].mxu0 %v1629
    %v2007 = vpop.f32.mrb[0].mxu0
    %v2008 = vadd.f32 0.0, %v2007
    %v2009 = vpop.f32.mrb[0].mxu0
    %v2010 = vadd.f32 0.0, %v2009
    %v2011 = vpop.f32.mrb[0].mxu0
    %v2012 = vadd.f32 0.0, %v2011
    %v2013 = vpop.f32.mrb[0].mxu0
    %v2014 = vadd.f32 0.0, %v2013
    %2015 = vmatprep.mubr.bf16.mxu0 %v1632
    %2016 = vmatmul.mubr.bf16.gmra.mrb[0].mxu0 %v1631
    %v2017 = vpop.f32.mrb[0].mxu0
    %v2018 = vadd.f32 0.0, %v2017
    %v2019 = vpop.f32.mrb[0].mxu0
    %v2020 = vadd.f32 0.0, %v2019
    %v2021 = vpop.f32.mrb[0].mxu0
    %v2022 = vadd.f32 0.0, %v2021
    %v2023 = vpop.f32.mrb[0].mxu0
    %v2024 = vadd.f32 0.0, %v2023
    %2025 = vmatprep.mubr.bf16.mxu0 %v1634
    %2026 = vmatmul.mubr.bf16.gmra.mrb[0].mxu0 %v1633
    %v2027 = vpop.f32.mrb[0].mxu0
    %v2028 = vadd.f32 0.0, %v2027
    %v2029 = vpop.f32.mrb[0].mxu0
    %v2030 = vadd.f32 0.0, %v2029
    %v2031 = vpop.f32.mrb[0].mxu0
    %v2032 = vadd.f32 0.0, %v2031
    %v2033 = vpop.f32.mrb[0].mxu0
    %v2034 = vadd.f32 0.0, %v2033
    %2035 = vmatprep.mubr.bf16.mxu0 %v1636
    %2036 = vmatmul.mubr.bf16.gmra.mrb[0].mxu0 %v1635
    %v2037 = vpop.f32.mrb[0].mxu0
    %v2038 = vadd.f32 0.0, %v2037
    %v2039 = vpop.f32.mrb[0].mxu0
    %v2040 = vadd.f32 0.0, %v2039
    %v2041 = vpop.f32.mrb[0].mxu0
    %v2042 = vadd.f32 0.0, %v2041
    %v2043 = vpop.f32.mrb[0].mxu0
    %v2044 = vadd.f32 0.0, %v2043
    %2045 = vmatprep.mubr.bf16.mxu0 %v1638
    %2046 = vmatmul.mubr.bf16.gmra.mrb[0].mxu0 %v1637
    %v2047 = vpop.f32.mrb[0].mxu0
    %v2048 = vadd.f32 0.0, %v2047
    %v2049 = vpop.f32.mrb[0].mxu0
    %v2050 = vadd.f32 0.0, %v2049
    %v2051 = vpop.f32.mrb[0].mxu0
    %v2052 = vadd.f32 0.0, %v2051
    %v2053 = vpop.f32.mrb[0].mxu0
    %v2054 = vadd.f32 0.0, %v2053
    %2055 = vmatprep.mubr.bf16.mxu0 %v1640
    %2056 = vmatmul.mubr.bf16.gmra.mrb[0].mxu0 %v1639
    %v2057 = vpop.f32.mrb[0].mxu0
    %v2058 = vadd.f32 0.0, %v2057
    %v2059 = vpop.f32.mrb[0].mxu0
    %v2060 = vadd.f32 0.0, %v2059
    %v2061 = vpop.f32.mrb[0].mxu0
    %v2062 = vadd.f32 0.0, %v2061
    %v2063 = vpop.f32.mrb[0].mxu0
    %v2064 = vadd.f32 0.0, %v2063
    %2065 = vmatprep.mubr.bf16.mxu0 %v1642
    %2066 = vmatmul.mubr.bf16.gmra.mrb[0].mxu0 %v1641
    %v2067 = vpop.f32.mrb[0].mxu0
    %v2068 = vadd.f32 0.0, %v2067
    %v2069 = vpop.f32.mrb[0].mxu0
    %v2070 = vadd.f32 0.0, %v2069
    %v2071 = vpop.f32.mrb[0].mxu0
    %v2072 = vadd.f32 0.0, %v2071
    %v2073 = vpop.f32.mrb[0].mxu0
    %v2074 = vadd.f32 0.0, %v2073
    %2075 = vdwg.mxu0
    %2076 = vmatprep.subr.bf16.mxu0 0
    %2077 = vmatpush1.bf16.msra.mxu0 %v1869
    %2078 = vmatprep.subr.bf16.mxu0 0
    %2079 = vmatpush1.bf16.msra.mxu0 %v1872
    %2080 = vmatprep.subr.bf16.mxu0 0
    %2081 = vmatpush1.bf16.msra.mxu0 %v1875
    %2082 = vmatprep.subr.bf16.mxu0 0
    %2083 = vmatpush1.bf16.msra.mxu0 %v1878
    %2084 = vmatprep.subr.bf16.mxu0 0
    %2085 = vmatpush1.bf16.msra.mxu0 %v1881
    %2086 = vmatprep.subr.bf16.mxu0 0
    %2087 = vmatpush1.bf16.msra.mxu0 %v1884
    %2088 = vmatprep.subr.bf16.mxu0 0
    %2089 = vmatpush1.bf16.msra.mxu0 %v1887
    %2090 = vmatprep.subr.bf16.mxu0 0
    %2091 = vmatpush1.bf16.msra.mxu0 %v1890
    %2092 = vmatprep.subr.bf16.mxu0 0
    %2093 = vmatpush1.bf16.msra.mxu0 %v1893
    %2094 = vmatprep.subr.bf16.mxu0 0
    %2095 = vmatpush1.bf16.msra.mxu0 %v1896
    %2096 = vmatprep.subr.bf16.mxu0 0
    %2097 = vmatpush1.bf16.msra.mxu0 %v1899
    %2098 = vmatprep.subr.bf16.mxu0 0
    %2099 = vmatpush1.bf16.msra.mxu0 %v1902
    %2100 = vmatprep.subr.bf16.mxu0 0
    %2101 = vmatpush1.bf16.msra.mxu0 %v1905
    %2102 = vmatprep.subr.bf16.mxu0 0
    %2103 = vmatpush1.bf16.msra.mxu0 %v1908
    %2104 = vmatprep.subr.bf16.mxu0 0
    %2105 = vmatpush1.bf16.msra.mxu0 %v1911
    %2106 = vmatprep.subr.bf16.mxu0 0
    %2107 = vmatpush1.bf16.msra.mxu0 %v1914
    %2108 = vmatprep.mubr.bf16.mxu0 %v1628
    %2109 = vmatmul.mubr.bf16.gmra.mrb[0].mxu0 %v1627
    %v2110 = vpop.f32.mrb[0].mxu0
    %v2111 = vadd.f32 0.0, %v2110
    %v2112 = vpop.f32.mrb[0].mxu0
    %v2113 = vpop.f32.mrb[0].mxu0
    %v2114 = vadd.f32 0.0, %v2113
    %v2115 = vpop.f32.mrb[0].mxu0
    %2116 = vmatprep.mubr.bf16.mxu0 %v1630
    %2117 = vmatmul.mubr.bf16.gmra.mrb[0].mxu0 %v1629
    %v2118 = vpop.f32.mrb[0].mxu0
    %v2119 = vadd.f32 0.0, %v2118
    %v2120 = vpop.f32.mrb[0].mxu0
    %v2121 = vpop.f32.mrb[0].mxu0
    %v2122 = vadd.f32 0.0, %v2121
    %v2123 = vpop.f32.mrb[0].mxu0
    %2124 = vmatprep.mubr.bf16.mxu0 %v1632
    %2125 = vmatmul.mubr.bf16.gmra.mrb[0].mxu0 %v1631
    %v2126 = vpop.f32.mrb[0].mxu0
    %v2127 = vadd.f32 0.0, %v2126
    %v2128 = vpop.f32.mrb[0].mxu0
    %v2129 = vpop.f32.mrb[0].mxu0
    %v2130 = vadd.f32 0.0, %v2129
    %v2131 = vpop.f32.mrb[0].mxu0
    %2132 = vmatprep.mubr.bf16.mxu0 %v1634
    %2133 = vmatmul.mubr.bf16.gmra.mrb[0].mxu0 %v1633
    %v2134 = vpop.f32.mrb[0].mxu0
    %v2135 = vadd.f32 0.0, %v2134
    %v2136 = vpop.f32.mrb[0].mxu0
    %v2137 = vpop.f32.mrb[0].mxu0
    %v2138 = vadd.f32 0.0, %v2137
    %v2139 = vpop.f32.mrb[0].mxu0
    %2140 = vmatprep.mubr.bf16.mxu0 %v1636
    %2141 = vmatmul.mubr.bf16.gmra.mrb[0].mxu0 %v1635
    %v2142 = vpop.f32.mrb[0].mxu0
    %v2143 = vadd.f32 0.0, %v2142
    %v2144 = vpop.f32.mrb[0].mxu0
    %v2145 = vpop.f32.mrb[0].mxu0
    %v2146 = vadd.f32 0.0, %v2145
    %v2147 = vpop.f32.mrb[0].mxu0
    %2148 = vmatprep.mubr.bf16.mxu0 %v1638
    %2149 = vmatmul.mubr.bf16.gmra.mrb[0].mxu0 %v1637
    %v2150 = vpop.f32.mrb[0].mxu0
    %v2151 = vadd.f32 0.0, %v2150
    %v2152 = vpop.f32.mrb[0].mxu0
    %v2153 = vpop.f32.mrb[0].mxu0
    %v2154 = vadd.f32 0.0, %v2153
    %v2155 = vpop.f32.mrb[0].mxu0
    %2156 = vmatprep.mubr.bf16.mxu0 %v1640
    %2157 = vmatmul.mubr.bf16.gmra.mrb[0].mxu0 %v1639
    %v2158 = vpop.f32.mrb[0].mxu0
    %v2159 = vadd.f32 0.0, %v2158
    %v2160 = vpop.f32.mrb[0].mxu0
    %v2161 = vpop.f32.mrb[0].mxu0
    %v2162 = vadd.f32 0.0, %v2161
    %v2163 = vpop.f32.mrb[0].mxu0
    %2164 = vmatprep.mubr.bf16.mxu0 %v1642
    %2165 = vmatmul.mubr.bf16.gmra.mrb[0].mxu0 %v1641
    %v2166 = vpop.f32.mrb[0].mxu0
    %v2167 = vadd.f32 0.0, %v2166
    %v2168 = vpop.f32.mrb[0].mxu0
    %v2169 = vpop.f32.mrb[0].mxu0
    %v2170 = vadd.f32 0.0, %v2169
    %v2171 = vpop.f32.mrb[0].mxu0
    %2172 = vdwg.mxu0
    %s2173 = scalar_lea.vmem [#allocation2], 16
    %vm2174 = vcmask 261120
    %2175 = vst.msk [vmem:[%s2173 + $0x1] sm:$0xff] %vm2174, %v2000
    %2176 = vst.msk [vmem:[%s2173 + $0x11] sm:$0xff] %vm2174, %v2004
    %2177 = vst.msk [vmem:[%s2173 + $0x21] sm:$0xff] %vm2174, %v2010
    %2178 = vst.msk [vmem:[%s2173 + $0x31] sm:$0xff] %vm2174, %v2014
    %2179 = vst.msk [vmem:[%s2173 + $0x41] sm:$0xff] %vm2174, %v2020
    %2180 = vst.msk [vmem:[%s2173 + $0x51] sm:$0xff] %vm2174, %v2024
    %2181 = vst.msk [vmem:[%s2173 + $0x61] sm:$0xff] %vm2174, %v2030
    %2182 = vst.msk [vmem:[%s2173 + $0x71] sm:$0xff] %vm2174, %v2034
    %2183 = vst.msk [vmem:[%s2173 + $0xa1] sm:$0xff] %vm2174, %v2040
    %2184 = vst.msk [vmem:[%s2173 + $0xb1] sm:$0xff] %vm2174, %v2044
    %2185 = vst.msk [vmem:[%s2173 + $0xc1] sm:$0xff] %vm2174, %v2050
    %2186 = vst.msk [vmem:[%s2173 + $0xd1] sm:$0xff] %vm2174, %v2054
    %2187 = vst.msk [vmem:[%s2173 + $0xe1] sm:$0xff] %vm2174, %v2060
    %2188 = vst.msk [vmem:[%s2173 + $0xf1] sm:$0xff] %vm2174, %v2064
    %2189 = vst.msk [vmem:[%s2173 + $0x101] sm:$0xff] %vm2174, %v2070
    %2190 = vst.msk [vmem:[%s2173 + $0x111] sm:$0xff] %vm2174, %v2074
    %s2191 = scalar_lea.vmem [#allocation2], 32
    %v2192 = vld [vmem:[%s2191 + $0x2] sm:$0xff]
    %v2193 = vld [vmem:[%s2191 + $0x12] sm:$0xff]
    %v2194 = vld [vmem:[%s2191 + $0x22] sm:$0xff]
    %v2195 = vld [vmem:[%s2191 + $0x32] sm:$0xff]
    %v2196 = vld [vmem:[%s2191 + $0x42] sm:$0xff]
    %v2197 = vld [vmem:[%s2191 + $0x52] sm:$0xff]
    %v2198 = vld [vmem:[%s2191 + $0x62] sm:$0xff]
    %v2199 = vld [vmem:[%s2191 + $0x72] sm:$0xff]
    %v2200 = vld [vmem:[%s2191 + $0xa2] sm:$0xff]
    %v2201 = vld [vmem:[%s2191 + $0xb2] sm:$0xff]
    %v2202 = vld [vmem:[%s2191 + $0xc2] sm:$0xff]
    %v2203 = vld [vmem:[%s2191 + $0xd2] sm:$0xff]
    %v2204 = vld [vmem:[%s2191 + $0xe2] sm:$0xff]
    %v2205 = vld [vmem:[%s2191 + $0xf2] sm:$0xff]
    %v2206 = vld [vmem:[%s2191 + $0x102] sm:$0xff]
    %v2207 = vld [vmem:[%s2191 + $0x112] sm:$0xff]
    %v2208 = vadd.f32 %v2192, %v1998
    %v2209 = vadd.f32 %v2193, %v2002
    %v2210 = vadd.f32 %v2194, %v2008
    %v2211 = vadd.f32 %v2195, %v2012
    %v2212 = vadd.f32 %v2196, %v2018
    %v2213 = vadd.f32 %v2197, %v2022
    %v2214 = vadd.f32 %v2198, %v2028
    %v2215 = vadd.f32 %v2199, %v2032
    %v2216 = vadd.f32 %v2200, %v2038
    %v2217 = vadd.f32 %v2201, %v2042
    %v2218 = vadd.f32 %v2202, %v2048
    %v2219 = vadd.f32 %v2203, %v2052
    %v2220 = vadd.f32 %v2204, %v2058
    %v2221 = vadd.f32 %v2205, %v2062
    %v2222 = vadd.f32 %v2206, %v2068
    %v2223 = vadd.f32 %v2207, %v2072
    %2224 = vst.msk [vmem:[%s2191 + $0x2] sm:$0xff] %vm2174, %v2208
    %2225 = vst.msk [vmem:[%s2191 + $0x12] sm:$0xff] %vm2174, %v2209
    %2226 = vst.msk [vmem:[%s2191 + $0x22] sm:$0xff] %vm2174, %v2210
    %2227 = vst.msk [vmem:[%s2191 + $0x32] sm:$0xff] %vm2174, %v2211
    %2228 = vst.msk [vmem:[%s2191 + $0x42] sm:$0xff] %vm2174, %v2212
    %2229 = vst.msk [vmem:[%s2191 + $0x52] sm:$0xff] %vm2174, %v2213
    %2230 = vst.msk [vmem:[%s2191 + $0x62] sm:$0xff] %vm2174, %v2214
    %2231 = vst.msk [vmem:[%s2191 + $0x72] sm:$0xff] %vm2174, %v2215
    %2232 = vst.msk [vmem:[%s2191 + $0xa2] sm:$0xff] %vm2174, %v2216
    %2233 = vst.msk [vmem:[%s2191 + $0xb2] sm:$0xff] %vm2174, %v2217
    %2234 = vst.msk [vmem:[%s2191 + $0xc2] sm:$0xff] %vm2174, %v2218
    %2235 = vst.msk [vmem:[%s2191 + $0xd2] sm:$0xff] %vm2174, %v2219
    %2236 = vst.msk [vmem:[%s2191 + $0xe2] sm:$0xff] %vm2174, %v2220
    %2237 = vst.msk [vmem:[%s2191 + $0xf2] sm:$0xff] %vm2174, %v2221
    %2238 = vst.msk [vmem:[%s2191 + $0x102] sm:$0xff] %vm2174, %v2222
    %2239 = vst.msk [vmem:[%s2191 + $0x112] sm:$0xff] %vm2174, %v2223
    %v2240 = vld [vmem:[%s2191 + $0x1] sm:$0xff]
    %v2241 = vld [vmem:[%s2191 + $0x11] sm:$0xff]
    %v2242 = vld [vmem:[%s2191 + $0x21] sm:$0xff]
    %v2243 = vld [vmem:[%s2191 + $0x31] sm:$0xff]
    %v2244 = vld [vmem:[%s2191 + $0x41] sm:$0xff]
    %v2245 = vld [vmem:[%s2191 + $0x51] sm:$0xff]
    %v2246 = vld [vmem:[%s2191 + $0x61] sm:$0xff]
    %v2247 = vld [vmem:[%s2191 + $0x71] sm:$0xff]
    %v2248 = vld [vmem:[%s2191 + $0xa1] sm:$0xff]
    %v2249 = vld [vmem:[%s2191 + $0xb1] sm:$0xff]
    %v2250 = vld [vmem:[%s2191 + $0xc1] sm:$0xff]
    %v2251 = vld [vmem:[%s2191 + $0xd1] sm:$0xff]
    %v2252 = vld [vmem:[%s2191 + $0xe1] sm:$0xff]
    %v2253 = vld [vmem:[%s2191 + $0xf1] sm:$0xff]
    %v2254 = vld [vmem:[%s2191 + $0x101] sm:$0xff]
    %v2255 = vld [vmem:[%s2191 + $0x111] sm:$0xff]
    %2272 = vrot.lane.b32.xlu0 %v1998, 96
    %v2273 = vpop.permute.xlu0 %2272
    %2274 = vrot.lane.b32.xlu0 %v2002, 96
    %v2275 = vpop.permute.xlu0 %2274
    %2276 = vrot.lane.b32.xlu0 %v2008, 96
    %v2277 = vpop.permute.xlu0 %2276
    %2278 = vrot.lane.b32.xlu0 %v2012, 96
    %v2279 = vpop.permute.xlu0 %2278
    %2280 = vrot.lane.b32.xlu0 %v2018, 96
    %v2281 = vpop.permute.xlu0 %2280
    %2282 = vrot.lane.b32.xlu0 %v2022, 96
    %v2283 = vpop.permute.xlu0 %2282
    %2284 = vrot.lane.b32.xlu0 %v2028, 96
    %v2285 = vpop.permute.xlu0 %2284
    %2286 = vrot.lane.b32.xlu0 %v2032, 96
    %v2287 = vpop.permute.xlu0 %2286
    %2288 = vrot.lane.b32.xlu0 %v2038, 96
    %v2289 = vpop.permute.xlu0 %2288
    %2290 = vrot.lane.b32.xlu0 %v2042, 96
    %v2291 = vpop.permute.xlu0 %2290
    %2292 = vrot.lane.b32.xlu0 %v2048, 96
    %v2293 = vpop.permute.xlu0 %2292
    %2294 = vrot.lane.b32.xlu0 %v2052, 96
    %v2295 = vpop.permute.xlu0 %2294
    %2296 = vrot.lane.b32.xlu0 %v2058, 96
    %v2297 = vpop.permute.xlu0 %2296
    %2298 = vrot.lane.b32.xlu0 %v2062, 96
    %v2299 = vpop.permute.xlu0 %2298
    %2300 = vrot.lane.b32.xlu0 %v2068, 96
    %v2301 = vpop.permute.xlu0 %2300
    %2302 = vrot.lane.b32.xlu0 %v2072, 96
    %v2303 = vpop.permute.xlu0 %2302
    %v2320 = vadd.f32 %v2240, %v2273
    %v2321 = vadd.f32 %v2241, %v2275
    %v2322 = vadd.f32 %v2242, %v2277
    %v2323 = vadd.f32 %v2243, %v2279
    %v2324 = vadd.f32 %v2244, %v2281
    %v2325 = vadd.f32 %v2245, %v2283
    %v2326 = vadd.f32 %v2246, %v2285
    %v2327 = vadd.f32 %v2247, %v2287
    %v2328 = vadd.f32 %v2248, %v2289
    %v2329 = vadd.f32 %v2249, %v2291
    %v2330 = vadd.f32 %v2250, %v2293
    %v2331 = vadd.f32 %v2251, %v2295
    %v2332 = vadd.f32 %v2252, %v2297
    %v2333 = vadd.f32 %v2253, %v2299
    %v2334 = vadd.f32 %v2254, %v2301
    %v2335 = vadd.f32 %v2255, %v2303
    %2336 = vst.msk [vmem:[%s2191 + $0x1] sm:$0xff] %vm2174, %v2320
    %2337 = vst.msk [vmem:[%s2191 + $0x11] sm:$0xff] %vm2174, %v2321
    %2338 = vst.msk [vmem:[%s2191 + $0x21] sm:$0xff] %vm2174, %v2322
    %2339 = vst.msk [vmem:[%s2191 + $0x31] sm:$0xff] %vm2174, %v2323
    %2340 = vst.msk [vmem:[%s2191 + $0x41] sm:$0xff] %vm2174, %v2324
    %2341 = vst.msk [vmem:[%s2191 + $0x51] sm:$0xff] %vm2174, %v2325
    %2342 = vst.msk [vmem:[%s2191 + $0x61] sm:$0xff] %vm2174, %v2326
    %2343 = vst.msk [vmem:[%s2191 + $0x71] sm:$0xff] %vm2174, %v2327
    %2344 = vst.msk [vmem:[%s2191 + $0xa1] sm:$0xff] %vm2174, %v2328
    %2345 = vst.msk [vmem:[%s2191 + $0xb1] sm:$0xff] %vm2174, %v2329
    %2346 = vst.msk [vmem:[%s2191 + $0xc1] sm:$0xff] %vm2174, %v2330
    %2347 = vst.msk [vmem:[%s2191 + $0xd1] sm:$0xff] %vm2174, %v2331
    %2348 = vst.msk [vmem:[%s2191 + $0xe1] sm:$0xff] %vm2174, %v2332
    %2349 = vst.msk [vmem:[%s2191 + $0xf1] sm:$0xff] %vm2174, %v2333
    %2350 = vst.msk [vmem:[%s2191 + $0x101] sm:$0xff] %vm2174, %v2334
    %2351 = vst.msk [vmem:[%s2191 + $0x111] sm:$0xff] %vm2174, %v2335
    %v2352 = vld [vmem:[%s2191] sm:$0xff]
    %v2353 = vld [vmem:[%s2191 + $0x10] sm:$0xff]
    %v2354 = vld [vmem:[%s2191 + $0x20] sm:$0xff]
    %v2355 = vld [vmem:[%s2191 + $0x30] sm:$0xff]
    %v2356 = vld [vmem:[%s2191 + $0x40] sm:$0xff]
    %v2357 = vld [vmem:[%s2191 + $0x50] sm:$0xff]
    %v2358 = vld [vmem:[%s2191 + $0x60] sm:$0xff]
    %v2359 = vld [vmem:[%s2191 + $0x70] sm:$0xff]
    %v2360 = vld [vmem:[%s2191 + $0xa0] sm:$0xff]
    %v2361 = vld [vmem:[%s2191 + $0xb0] sm:$0xff]
    %v2362 = vld [vmem:[%s2191 + $0xc0] sm:$0xff]
    %v2363 = vld [vmem:[%s2191 + $0xd0] sm:$0xff]
    %v2364 = vld [vmem:[%s2191 + $0xe0] sm:$0xff]
    %v2365 = vld [vmem:[%s2191 + $0xf0] sm:$0xff]
    %v2366 = vld [vmem:[%s2191 + $0x100] sm:$0xff]
    %v2367 = vld [vmem:[%s2191 + $0x110] sm:$0xff]
    %2368 = vrot.lane.b32.xlu0 %v1998, 64
    %v2369 = vpop.permute.xlu0 %2368
    %2370 = vrot.lane.b32.xlu0 %v2002, 64
    %v2371 = vpop.permute.xlu0 %2370
    %2372 = vrot.lane.b32.xlu0 %v2008, 64
    %v2373 = vpop.permute.xlu0 %2372
    %2374 = vrot.lane.b32.xlu0 %v2012, 64
    %v2375 = vpop.permute.xlu0 %2374
    %2376 = vrot.lane.b32.xlu0 %v2018, 64
    %v2377 = vpop.permute.xlu0 %2376
    %2378 = vrot.lane.b32.xlu0 %v2022, 64
    %v2379 = vpop.permute.xlu0 %2378
    %2380 = vrot.lane.b32.xlu0 %v2028, 64
    %v2381 = vpop.permute.xlu0 %2380
    %2382 = vrot.lane.b32.xlu0 %v2032, 64
    %v2383 = vpop.permute.xlu0 %2382
    %2384 = vrot.lane.b32.xlu0 %v2038, 64
    %v2385 = vpop.permute.xlu0 %2384
    %2386 = vrot.lane.b32.xlu0 %v2042, 64
    %v2387 = vpop.permute.xlu0 %2386
    %2388 = vrot.lane.b32.xlu0 %v2048, 64
    %v2389 = vpop.permute.xlu0 %2388
    %2390 = vrot.lane.b32.xlu0 %v2052, 64
    %v2391 = vpop.permute.xlu0 %2390
    %2392 = vrot.lane.b32.xlu0 %v2058, 64
    %v2393 = vpop.permute.xlu0 %2392
    %2394 = vrot.lane.b32.xlu0 %v2062, 64
    %v2395 = vpop.permute.xlu0 %2394
    %2396 = vrot.lane.b32.xlu0 %v2068, 64
    %v2397 = vpop.permute.xlu0 %2396
    %2398 = vrot.lane.b32.xlu0 %v2072, 64
    %v2399 = vpop.permute.xlu0 %2398
    %v2416 = vadd.f32 %v2352, %v2369
    %v2417 = vadd.f32 %v2353, %v2371
    %v2418 = vadd.f32 %v2354, %v2373
    %v2419 = vadd.f32 %v2355, %v2375
    %v2420 = vadd.f32 %v2356, %v2377
    %v2421 = vadd.f32 %v2357, %v2379
    %v2422 = vadd.f32 %v2358, %v2381
    %v2423 = vadd.f32 %v2359, %v2383
    %v2424 = vadd.f32 %v2360, %v2385
    %v2425 = vadd.f32 %v2361, %v2387
    %v2426 = vadd.f32 %v2362, %v2389
    %v2427 = vadd.f32 %v2363, %v2391
    %v2428 = vadd.f32 %v2364, %v2393
    %v2429 = vadd.f32 %v2365, %v2395
    %v2430 = vadd.f32 %v2366, %v2397
    %v2431 = vadd.f32 %v2367, %v2399
    %2432 = vst.msk [vmem:[%s2191] sm:$0xff] %vm2174, %v2416
    %2433 = vst.msk [vmem:[%s2191 + $0x10] sm:$0xff] %vm2174, %v2417
    %2434 = vst.msk [vmem:[%s2191 + $0x20] sm:$0xff] %vm2174, %v2418
    %2435 = vst.msk [vmem:[%s2191 + $0x30] sm:$0xff] %vm2174, %v2419
    %2436 = vst.msk [vmem:[%s2191 + $0x40] sm:$0xff] %vm2174, %v2420
    %2437 = vst.msk [vmem:[%s2191 + $0x50] sm:$0xff] %vm2174, %v2421
    %2438 = vst.msk [vmem:[%s2191 + $0x60] sm:$0xff] %vm2174, %v2422
    %2439 = vst.msk [vmem:[%s2191 + $0x70] sm:$0xff] %vm2174, %v2423
    %2440 = vst.msk [vmem:[%s2191 + $0xa0] sm:$0xff] %vm2174, %v2424
    %2441 = vst.msk [vmem:[%s2191 + $0xb0] sm:$0xff] %vm2174, %v2425
    %2442 = vst.msk [vmem:[%s2191 + $0xc0] sm:$0xff] %vm2174, %v2426
    %2443 = vst.msk [vmem:[%s2191 + $0xd0] sm:$0xff] %vm2174, %v2427
    %2444 = vst.msk [vmem:[%s2191 + $0xe0] sm:$0xff] %vm2174, %v2428
    %2445 = vst.msk [vmem:[%s2191 + $0xf0] sm:$0xff] %vm2174, %v2429
    %2446 = vst.msk [vmem:[%s2191 + $0x100] sm:$0xff] %vm2174, %v2430
    %2447 = vst.msk [vmem:[%s2191 + $0x110] sm:$0xff] %vm2174, %v2431
    %v2448 = vld [vmem:[%s2173 + $0x2] sm:$0xff]
    %v2449 = vld [vmem:[%s2173 + $0x12] sm:$0xff]
    %v2450 = vld [vmem:[%s2173 + $0x22] sm:$0xff]
    %v2451 = vld [vmem:[%s2173 + $0x32] sm:$0xff]
    %v2452 = vld [vmem:[%s2173 + $0x42] sm:$0xff]
    %v2453 = vld [vmem:[%s2173 + $0x52] sm:$0xff]
    %v2454 = vld [vmem:[%s2173 + $0x62] sm:$0xff]
    %v2455 = vld [vmem:[%s2173 + $0x72] sm:$0xff]
    %v2456 = vld [vmem:[%s2173 + $0xa2] sm:$0xff]
    %v2457 = vld [vmem:[%s2173 + $0xb2] sm:$0xff]
    %v2458 = vld [vmem:[%s2173 + $0xc2] sm:$0xff]
    %v2459 = vld [vmem:[%s2173 + $0xd2] sm:$0xff]
    %v2460 = vld [vmem:[%s2173 + $0xe2] sm:$0xff]
    %v2461 = vld [vmem:[%s2173 + $0xf2] sm:$0xff]
    %v2462 = vld [vmem:[%s2173 + $0x102] sm:$0xff]
    %v2463 = vld [vmem:[%s2173 + $0x112] sm:$0xff]
    %2464 = vrot.lane.b32.xlu0 %v1998, 32
    %v2465 = vpop.permute.xlu0 %2464
    %2466 = vrot.lane.b32.xlu0 %v2002, 32
    %v2467 = vpop.permute.xlu0 %2466
    %2468 = vrot.lane.b32.xlu0 %v2008, 32
    %v2469 = vpop.permute.xlu0 %2468
    %2470 = vrot.lane.b32.xlu0 %v2012, 32
    %v2471 = vpop.permute.xlu0 %2470
    %2472 = vrot.lane.b32.xlu0 %v2018, 32
    %v2473 = vpop.permute.xlu0 %2472
    %2474 = vrot.lane.b32.xlu0 %v2022, 32
    %v2475 = vpop.permute.xlu0 %2474
    %2476 = vrot.lane.b32.xlu0 %v2028, 32
    %v2477 = vpop.permute.xlu0 %2476
    %2478 = vrot.lane.b32.xlu0 %v2032, 32
    %v2479 = vpop.permute.xlu0 %2478
    %2480 = vrot.lane.b32.xlu0 %v2038, 32
    %v2481 = vpop.permute.xlu0 %2480
    %2482 = vrot.lane.b32.xlu0 %v2042, 32
    %v2483 = vpop.permute.xlu0 %2482
    %2484 = vrot.lane.b32.xlu0 %v2048, 32
    %v2485 = vpop.permute.xlu0 %2484
    %2486 = vrot.lane.b32.xlu0 %v2052, 32
    %v2487 = vpop.permute.xlu0 %2486
    %2488 = vrot.lane.b32.xlu0 %v2058, 32
    %v2489 = vpop.permute.xlu0 %2488
    %2490 = vrot.lane.b32.xlu0 %v2062, 32
    %v2491 = vpop.permute.xlu0 %2490
    %2492 = vrot.lane.b32.xlu0 %v2068, 32
    %v2493 = vpop.permute.xlu0 %2492
    %2494 = vrot.lane.b32.xlu0 %v2072, 32
    %v2495 = vpop.permute.xlu0 %2494
    %v2512 = vadd.f32 %v2448, %v2465
    %v2513 = vadd.f32 %v2449, %v2467
    %v2514 = vadd.f32 %v2450, %v2469
    %v2515 = vadd.f32 %v2451, %v2471
    %v2516 = vadd.f32 %v2452, %v2473
    %v2517 = vadd.f32 %v2453, %v2475
    %v2518 = vadd.f32 %v2454, %v2477
    %v2519 = vadd.f32 %v2455, %v2479
    %v2520 = vadd.f32 %v2456, %v2481
    %v2521 = vadd.f32 %v2457, %v2483
    %v2522 = vadd.f32 %v2458, %v2485
    %v2523 = vadd.f32 %v2459, %v2487
    %v2524 = vadd.f32 %v2460, %v2489
    %v2525 = vadd.f32 %v2461, %v2491
    %v2526 = vadd.f32 %v2462, %v2493
    %v2527 = vadd.f32 %v2463, %v2495
    %2528 = vst.msk [vmem:[%s2173 + $0x2] sm:$0xff] %vm2174, %v2512
    %2529 = vst.msk [vmem:[%s2173 + $0x12] sm:$0xff] %vm2174, %v2513
    %2530 = vst.msk [vmem:[%s2173 + $0x22] sm:$0xff] %vm2174, %v2514
    %2531 = vst.msk [vmem:[%s2173 + $0x32] sm:$0xff] %vm2174, %v2515
    %2532 = vst.msk [vmem:[%s2173 + $0x42] sm:$0xff] %vm2174, %v2516
    %2533 = vst.msk [vmem:[%s2173 + $0x52] sm:$0xff] %vm2174, %v2517
    %2534 = vst.msk [vmem:[%s2173 + $0x62] sm:$0xff] %vm2174, %v2518
    %2535 = vst.msk [vmem:[%s2173 + $0x72] sm:$0xff] %vm2174, %v2519
    %2536 = vst.msk [vmem:[%s2173 + $0xa2] sm:$0xff] %vm2174, %v2520
    %2537 = vst.msk [vmem:[%s2173 + $0xb2] sm:$0xff] %vm2174, %v2521
    %2538 = vst.msk [vmem:[%s2173 + $0xc2] sm:$0xff] %vm2174, %v2522
    %2539 = vst.msk [vmem:[%s2173 + $0xd2] sm:$0xff] %vm2174, %v2523
    %2540 = vst.msk [vmem:[%s2173 + $0xe2] sm:$0xff] %vm2174, %v2524
    %2541 = vst.msk [vmem:[%s2173 + $0xf2] sm:$0xff] %vm2174, %v2525
    %2542 = vst.msk [vmem:[%s2173 + $0x102] sm:$0xff] %vm2174, %v2526
    %2543 = vst.msk [vmem:[%s2173 + $0x112] sm:$0xff] %vm2174, %v2527
    %v2544 = vld [vmem:[%s2173] sm:$0xff]
    %v2545 = vld [vmem:[%s2173 + $0x10] sm:$0xff]
    %v2546 = vld [vmem:[%s2173 + $0x20] sm:$0xff]
    %v2547 = vld [vmem:[%s2173 + $0x30] sm:$0xff]
    %v2548 = vld [vmem:[%s2173 + $0x40] sm:$0xff]
    %v2549 = vld [vmem:[%s2173 + $0x50] sm:$0xff]
    %v2550 = vld [vmem:[%s2173 + $0x60] sm:$0xff]
    %v2551 = vld [vmem:[%s2173 + $0x70] sm:$0xff]
    %v2552 = vld [vmem:[%s2173 + $0xa0] sm:$0xff]
    %v2553 = vld [vmem:[%s2173 + $0xb0] sm:$0xff]
    %v2554 = vld [vmem:[%s2173 + $0xc0] sm:$0xff]
    %v2555 = vld [vmem:[%s2173 + $0xd0] sm:$0xff]
    %v2556 = vld [vmem:[%s2173 + $0xe0] sm:$0xff]
    %v2557 = vld [vmem:[%s2173 + $0xf0] sm:$0xff]
    %v2558 = vld [vmem:[%s2173 + $0x100] sm:$0xff]
    %v2559 = vld [vmem:[%s2173 + $0x110] sm:$0xff]
    %2576 = vrot.lane.b32.xlu0 %v2000, 96
    %v2577 = vpop.permute.xlu0 %2576
    %2578 = vrot.lane.b32.xlu0 %v2004, 96
    %v2579 = vpop.permute.xlu0 %2578
    %2580 = vrot.lane.b32.xlu0 %v2010, 96
    %v2581 = vpop.permute.xlu0 %2580
    %2582 = vrot.lane.b32.xlu0 %v2014, 96
    %v2583 = vpop.permute.xlu0 %2582
    %2584 = vrot.lane.b32.xlu0 %v2020, 96
    %v2585 = vpop.permute.xlu0 %2584
    %2586 = vrot.lane.b32.xlu0 %v2024, 96
    %v2587 = vpop.permute.xlu0 %2586
    %2588 = vrot.lane.b32.xlu0 %v2030, 96
    %v2589 = vpop.permute.xlu0 %2588
    %2590 = vrot.lane.b32.xlu0 %v2034, 96
    %v2591 = vpop.permute.xlu0 %2590
    %2592 = vrot.lane.b32.xlu0 %v2040, 96
    %v2593 = vpop.permute.xlu0 %2592
    %2594 = vrot.lane.b32.xlu0 %v2044, 96
    %v2595 = vpop.permute.xlu0 %2594
    %2596 = vrot.lane.b32.xlu0 %v2050, 96
    %v2597 = vpop.permute.xlu0 %2596
    %2598 = vrot.lane.b32.xlu0 %v2054, 96
    %v2599 = vpop.permute.xlu0 %2598
    %2600 = vrot.lane.b32.xlu0 %v2060, 96
    %v2601 = vpop.permute.xlu0 %2600
    %2602 = vrot.lane.b32.xlu0 %v2064, 96
    %v2603 = vpop.permute.xlu0 %2602
    %2604 = vrot.lane.b32.xlu0 %v2070, 96
    %v2605 = vpop.permute.xlu0 %2604
    %2606 = vrot.lane.b32.xlu0 %v2074, 96
    %v2607 = vpop.permute.xlu0 %2606
    %v2624 = vadd.f32 %v2544, %v2577
    %v2625 = vadd.f32 %v2545, %v2579
    %v2626 = vadd.f32 %v2546, %v2581
    %v2627 = vadd.f32 %v2547, %v2583
    %v2628 = vadd.f32 %v2548, %v2585
    %v2629 = vadd.f32 %v2549, %v2587
    %v2630 = vadd.f32 %v2550, %v2589
    %v2631 = vadd.f32 %v2551, %v2591
    %v2632 = vadd.f32 %v2552, %v2593
    %v2633 = vadd.f32 %v2553, %v2595
    %v2634 = vadd.f32 %v2554, %v2597
    %v2635 = vadd.f32 %v2555, %v2599
    %v2636 = vadd.f32 %v2556, %v2601
    %v2637 = vadd.f32 %v2557, %v2603
    %v2638 = vadd.f32 %v2558, %v2605
    %v2639 = vadd.f32 %v2559, %v2607
    %2640 = vst.msk [vmem:[%s2173] sm:$0xff] %vm2174, %v2624
    %2641 = vst.msk [vmem:[%s2173 + $0x10] sm:$0xff] %vm2174, %v2625
    %2642 = vst.msk [vmem:[%s2173 + $0x20] sm:$0xff] %vm2174, %v2626
    %2643 = vst.msk [vmem:[%s2173 + $0x30] sm:$0xff] %vm2174, %v2627
    %2644 = vst.msk [vmem:[%s2173 + $0x40] sm:$0xff] %vm2174, %v2628
    %2645 = vst.msk [vmem:[%s2173 + $0x50] sm:$0xff] %vm2174, %v2629
    %2646 = vst.msk [vmem:[%s2173 + $0x60] sm:$0xff] %vm2174, %v2630
    %2647 = vst.msk [vmem:[%s2173 + $0x70] sm:$0xff] %vm2174, %v2631
    %2648 = vst.msk [vmem:[%s2173 + $0xa0] sm:$0xff] %vm2174, %v2632
    %2649 = vst.msk [vmem:[%s2173 + $0xb0] sm:$0xff] %vm2174, %v2633
    %2650 = vst.msk [vmem:[%s2173 + $0xc0] sm:$0xff] %vm2174, %v2634
    %2651 = vst.msk [vmem:[%s2173 + $0xd0] sm:$0xff] %vm2174, %v2635
    %2652 = vst.msk [vmem:[%s2173 + $0xe0] sm:$0xff] %vm2174, %v2636
    %2653 = vst.msk [vmem:[%s2173 + $0xf0] sm:$0xff] %vm2174, %v2637
    %2654 = vst.msk [vmem:[%s2173 + $0x100] sm:$0xff] %vm2174, %v2638
    %2655 = vst.msk [vmem:[%s2173 + $0x110] sm:$0xff] %vm2174, %v2639
    %v2656 = vld [vmem:[#allocation2 + $0x2] sm:$0xff]
    %v2657 = vld [vmem:[#allocation2 + $0x12] sm:$0xff]
    %v2658 = vld [vmem:[#allocation2 + $0x22] sm:$0xff]
    %v2659 = vld [vmem:[#allocation2 + $0x32] sm:$0xff]
    %v2660 = vld [vmem:[#allocation2 + $0x42] sm:$0xff]
    %v2661 = vld [vmem:[#allocation2 + $0x52] sm:$0xff]
    %v2662 = vld [vmem:[#allocation2 + $0x62] sm:$0xff]
    %v2663 = vld [vmem:[#allocation2 + $0x72] sm:$0xff]
    %v2664 = vld [vmem:[#allocation2 + $0xa2] sm:$0xff]
    %v2665 = vld [vmem:[#allocation2 + $0xb2] sm:$0xff]
    %v2666 = vld [vmem:[#allocation2 + $0xc2] sm:$0xff]
    %v2667 = vld [vmem:[#allocation2 + $0xd2] sm:$0xff]
    %v2668 = vld [vmem:[#allocation2 + $0xe2] sm:$0xff]
    %v2669 = vld [vmem:[#allocation2 + $0xf2] sm:$0xff]
    %v2670 = vld [vmem:[#allocation2 + $0x102] sm:$0xff]
    %v2671 = vld [vmem:[#allocation2 + $0x112] sm:$0xff]
    %2672 = vrot.lane.b32.xlu0 %v2000, 64
    %v2673 = vpop.permute.xlu0 %2672
    %2674 = vrot.lane.b32.xlu0 %v2004, 64
    %v2675 = vpop.permute.xlu0 %2674
    %2676 = vrot.lane.b32.xlu0 %v2010, 64
    %v2677 = vpop.permute.xlu0 %2676
    %2678 = vrot.lane.b32.xlu0 %v2014, 64
    %v2679 = vpop.permute.xlu0 %2678
    %2680 = vrot.lane.b32.xlu0 %v2020, 64
    %v2681 = vpop.permute.xlu0 %2680
    %2682 = vrot.lane.b32.xlu0 %v2024, 64
    %v2683 = vpop.permute.xlu0 %2682
    %2684 = vrot.lane.b32.xlu0 %v2030, 64
    %v2685 = vpop.permute.xlu0 %2684
    %2686 = vrot.lane.b32.xlu0 %v2034, 64
    %v2687 = vpop.permute.xlu0 %2686
    %2688 = vrot.lane.b32.xlu0 %v2040, 64
    %v2689 = vpop.permute.xlu0 %2688
    %2690 = vrot.lane.b32.xlu0 %v2044, 64
    %v2691 = vpop.permute.xlu0 %2690
    %2692 = vrot.lane.b32.xlu0 %v2050, 64
    %v2693 = vpop.permute.xlu0 %2692
    %2694 = vrot.lane.b32.xlu0 %v2054, 64
    %v2695 = vpop.permute.xlu0 %2694
    %2696 = vrot.lane.b32.xlu0 %v2060, 64
    %v2697 = vpop.permute.xlu0 %2696
    %2698 = vrot.lane.b32.xlu0 %v2064, 64
    %v2699 = vpop.permute.xlu0 %2698
    %2700 = vrot.lane.b32.xlu0 %v2070, 64
    %v2701 = vpop.permute.xlu0 %2700
    %2702 = vrot.lane.b32.xlu0 %v2074, 64
    %v2703 = vpop.permute.xlu0 %2702
    %v2720 = vadd.f32 %v2656, %v2673
    %v2721 = vadd.f32 %v2657, %v2675
    %v2722 = vadd.f32 %v2658, %v2677
    %v2723 = vadd.f32 %v2659, %v2679
    %v2724 = vadd.f32 %v2660, %v2681
    %v2725 = vadd.f32 %v2661, %v2683
    %v2726 = vadd.f32 %v2662, %v2685
    %v2727 = vadd.f32 %v2663, %v2687
    %v2728 = vadd.f32 %v2664, %v2689
    %v2729 = vadd.f32 %v2665, %v2691
    %v2730 = vadd.f32 %v2666, %v2693
    %v2731 = vadd.f32 %v2667, %v2695
    %v2732 = vadd.f32 %v2668, %v2697
    %v2733 = vadd.f32 %v2669, %v2699
    %v2734 = vadd.f32 %v2670, %v2701
    %v2735 = vadd.f32 %v2671, %v2703
    %2736 = vst.msk [vmem:[#allocation2 + $0x2] sm:$0xff] %vm2174, %v2720
    %2737 = vst.msk [vmem:[#allocation2 + $0x12] sm:$0xff] %vm2174, %v2721
    %2738 = vst.msk [vmem:[#allocation2 + $0x22] sm:$0xff] %vm2174, %v2722
    %2739 = vst.msk [vmem:[#allocation2 + $0x32] sm:$0xff] %vm2174, %v2723
    %2740 = vst.msk [vmem:[#allocation2 + $0x42] sm:$0xff] %vm2174, %v2724
    %2741 = vst.msk [vmem:[#allocation2 + $0x52] sm:$0xff] %vm2174, %v2725
    %2742 = vst.msk [vmem:[#allocation2 + $0x62] sm:$0xff] %vm2174, %v2726
    %2743 = vst.msk [vmem:[#allocation2 + $0x72] sm:$0xff] %vm2174, %v2727
    %2744 = vst.msk [vmem:[#allocation2 + $0xa2] sm:$0xff] %vm2174, %v2728
    %2745 = vst.msk [vmem:[#allocation2 + $0xb2] sm:$0xff] %vm2174, %v2729
    %2746 = vst.msk [vmem:[#allocation2 + $0xc2] sm:$0xff] %vm2174, %v2730
    %2747 = vst.msk [vmem:[#allocation2 + $0xd2] sm:$0xff] %vm2174, %v2731
    %2748 = vst.msk [vmem:[#allocation2 + $0xe2] sm:$0xff] %vm2174, %v2732
    %2749 = vst.msk [vmem:[#allocation2 + $0xf2] sm:$0xff] %vm2174, %v2733
    %2750 = vst.msk [vmem:[#allocation2 + $0x102] sm:$0xff] %vm2174, %v2734
    %2751 = vst.msk [vmem:[#allocation2 + $0x112] sm:$0xff] %vm2174, %v2735
    %v2752 = vld [vmem:[#allocation2 + $0x1] sm:$0xff]
    %v2753 = vld [vmem:[#allocation2 + $0x11] sm:$0xff]
    %v2754 = vld [vmem:[#allocation2 + $0x21] sm:$0xff]
    %v2755 = vld [vmem:[#allocation2 + $0x31] sm:$0xff]
    %v2756 = vld [vmem:[#allocation2 + $0x41] sm:$0xff]
    %v2757 = vld [vmem:[#allocation2 + $0x51] sm:$0xff]
    %v2758 = vld [vmem:[#allocation2 + $0x61] sm:$0xff]
    %v2759 = vld [vmem:[#allocation2 + $0x71] sm:$0xff]
    %v2760 = vld [vmem:[#allocation2 + $0xa1] sm:$0xff]
    %v2761 = vld [vmem:[#allocation2 + $0xb1] sm:$0xff]
    %v2762 = vld [vmem:[#allocation2 + $0xc1] sm:$0xff]
    %v2763 = vld [vmem:[#allocation2 + $0xd1] sm:$0xff]
    %v2764 = vld [vmem:[#allocation2 + $0xe1] sm:$0xff]
    %v2765 = vld [vmem:[#allocation2 + $0xf1] sm:$0xff]
    %v2766 = vld [vmem:[#allocation2 + $0x101] sm:$0xff]
    %v2767 = vld [vmem:[#allocation2 + $0x111] sm:$0xff]
    %2768 = vrot.lane.b32.xlu0 %v2000, 32
    %v2769 = vpop.permute.xlu0 %2768
    %2770 = vrot.lane.b32.xlu0 %v2004, 32
    %v2771 = vpop.permute.xlu0 %2770
    %2772 = vrot.lane.b32.xlu0 %v2010, 32
    %v2773 = vpop.permute.xlu0 %2772
    %2774 = vrot.lane.b32.xlu0 %v2014, 32
    %v2775 = vpop.permute.xlu0 %2774
    %2776 = vrot.lane.b32.xlu0 %v2020, 32
    %v2777 = vpop.permute.xlu0 %2776
    %2778 = vrot.lane.b32.xlu0 %v2024, 32
    %v2779 = vpop.permute.xlu0 %2778
    %2780 = vrot.lane.b32.xlu0 %v2030, 32
    %v2781 = vpop.permute.xlu0 %2780
    %2782 = vrot.lane.b32.xlu0 %v2034, 32
    %v2783 = vpop.permute.xlu0 %2782
    %2784 = vrot.lane.b32.xlu0 %v2040, 32
    %v2785 = vpop.permute.xlu0 %2784
    %2786 = vrot.lane.b32.xlu0 %v2044, 32
    %v2787 = vpop.permute.xlu0 %2786
    %2788 = vrot.lane.b32.xlu0 %v2050, 32
    %v2789 = vpop.permute.xlu0 %2788
    %2790 = vrot.lane.b32.xlu0 %v2054, 32
    %v2791 = vpop.permute.xlu0 %2790
    %2792 = vrot.lane.b32.xlu0 %v2060, 32
    %v2793 = vpop.permute.xlu0 %2792
    %2794 = vrot.lane.b32.xlu0 %v2064, 32
    %v2795 = vpop.permute.xlu0 %2794
    %2796 = vrot.lane.b32.xlu0 %v2070, 32
    %v2797 = vpop.permute.xlu0 %2796
    %2798 = vrot.lane.b32.xlu0 %v2074, 32
    %v2799 = vpop.permute.xlu0 %2798
    %v2816 = vadd.f32 %v2752, %v2769
    %v2817 = vadd.f32 %v2753, %v2771
    %v2818 = vadd.f32 %v2754, %v2773
    %v2819 = vadd.f32 %v2755, %v2775
    %v2820 = vadd.f32 %v2756, %v2777
    %v2821 = vadd.f32 %v2757, %v2779
    %v2822 = vadd.f32 %v2758, %v2781
    %v2823 = vadd.f32 %v2759, %v2783
    %v2824 = vadd.f32 %v2760, %v2785
    %v2825 = vadd.f32 %v2761, %v2787
    %v2826 = vadd.f32 %v2762, %v2789
    %v2827 = vadd.f32 %v2763, %v2791
    %v2828 = vadd.f32 %v2764, %v2793
    %v2829 = vadd.f32 %v2765, %v2795
    %v2830 = vadd.f32 %v2766, %v2797
    %v2831 = vadd.f32 %v2767, %v2799
    %2832 = vst.msk [vmem:[#allocation2 + $0x1] sm:$0xff] %vm2174, %v2816
    %2833 = vst.msk [vmem:[#allocation2 + $0x11] sm:$0xff] %vm2174, %v2817
    %2834 = vst.msk [vmem:[#allocation2 + $0x21] sm:$0xff] %vm2174, %v2818
    %2835 = vst.msk [vmem:[#allocation2 + $0x31] sm:$0xff] %vm2174, %v2819
    %2836 = vst.msk [vmem:[#allocation2 + $0x41] sm:$0xff] %vm2174, %v2820
    %2837 = vst.msk [vmem:[#allocation2 + $0x51] sm:$0xff] %vm2174, %v2821
    %2838 = vst.msk [vmem:[#allocation2 + $0x61] sm:$0xff] %vm2174, %v2822
    %2839 = vst.msk [vmem:[#allocation2 + $0x71] sm:$0xff] %vm2174, %v2823
    %2840 = vst.msk [vmem:[#allocation2 + $0xa1] sm:$0xff] %vm2174, %v2824
    %2841 = vst.msk [vmem:[#allocation2 + $0xb1] sm:$0xff] %vm2174, %v2825
    %2842 = vst.msk [vmem:[#allocation2 + $0xc1] sm:$0xff] %vm2174, %v2826
    %2843 = vst.msk [vmem:[#allocation2 + $0xd1] sm:$0xff] %vm2174, %v2827
    %2844 = vst.msk [vmem:[#allocation2 + $0xe1] sm:$0xff] %vm2174, %v2828
    %2845 = vst.msk [vmem:[#allocation2 + $0xf1] sm:$0xff] %vm2174, %v2829
    %2846 = vst.msk [vmem:[#allocation2 + $0x101] sm:$0xff] %vm2174, %v2830
    %2847 = vst.msk [vmem:[#allocation2 + $0x111] sm:$0xff] %vm2174, %v2831
    %v2848 = vld [vmem:[#allocation2] sm:$0xff]
    %v2849 = vld [vmem:[#allocation2 + $0x10] sm:$0xff]
    %v2850 = vld [vmem:[#allocation2 + $0x20] sm:$0xff]
    %v2851 = vld [vmem:[#allocation2 + $0x30] sm:$0xff]
    %v2852 = vld [vmem:[#allocation2 + $0x40] sm:$0xff]
    %v2853 = vld [vmem:[#allocation2 + $0x50] sm:$0xff]
    %v2854 = vld [vmem:[#allocation2 + $0x60] sm:$0xff]
    %v2855 = vld [vmem:[#allocation2 + $0x70] sm:$0xff]
    %v2856 = vld [vmem:[#allocation2 + $0xa0] sm:$0xff]
    %v2857 = vld [vmem:[#allocation2 + $0xb0] sm:$0xff]
    %v2858 = vld [vmem:[#allocation2 + $0xc0] sm:$0xff]
    %v2859 = vld [vmem:[#allocation2 + $0xd0] sm:$0xff]
    %v2860 = vld [vmem:[#allocation2 + $0xe0] sm:$0xff]
    %v2861 = vld [vmem:[#allocation2 + $0xf0] sm:$0xff]
    %v2862 = vld [vmem:[#allocation2 + $0x100] sm:$0xff]
    %v2863 = vld [vmem:[#allocation2 + $0x110] sm:$0xff]
    %v2864 = vadd.f32 %v2848, %v2111
    %v2865 = vadd.f32 %v2849, %v2114
    %v2866 = vadd.f32 %v2850, %v2119
    %v2867 = vadd.f32 %v2851, %v2122
    %v2868 = vadd.f32 %v2852, %v2127
    %v2869 = vadd.f32 %v2853, %v2130
    %v2870 = vadd.f32 %v2854, %v2135
    %v2871 = vadd.f32 %v2855, %v2138
    %v2872 = vadd.f32 %v2856, %v2143
    %v2873 = vadd.f32 %v2857, %v2146
    %v2874 = vadd.f32 %v2858, %v2151
    %v2875 = vadd.f32 %v2859, %v2154
    %v2876 = vadd.f32 %v2860, %v2159
    %v2877 = vadd.f32 %v2861, %v2162
    %v2878 = vadd.f32 %v2862, %v2167
    %v2879 = vadd.f32 %v2863, %v2170
    %2880 = vst.msk [vmem:[#allocation2] sm:$0xff] %vm2174, %v2864
    %2881 = vst.msk [vmem:[#allocation2 + $0x10] sm:$0xff] %vm2174, %v2865
    %2882 = vst.msk [vmem:[#allocation2 + $0x20] sm:$0xff] %vm2174, %v2866
    %2883 = vst.msk [vmem:[#allocation2 + $0x30] sm:$0xff] %vm2174, %v2867
    %2884 = vst.msk [vmem:[#allocation2 + $0x40] sm:$0xff] %vm2174, %v2868
    %2885 = vst.msk [vmem:[#allocation2 + $0x50] sm:$0xff] %vm2174, %v2869
    %2886 = vst.msk [vmem:[#allocation2 + $0x60] sm:$0xff] %vm2174, %v2870
    %2887 = vst.msk [vmem:[#allocation2 + $0x70] sm:$0xff] %vm2174, %v2871
    %2888 = vst.msk [vmem:[#allocation2 + $0xa0] sm:$0xff] %vm2174, %v2872
    %2889 = vst.msk [vmem:[#allocation2 + $0xb0] sm:$0xff] %vm2174, %v2873
    %2890 = vst.msk [vmem:[#allocation2 + $0xc0] sm:$0xff] %vm2174, %v2874
    %2891 = vst.msk [vmem:[#allocation2 + $0xd0] sm:$0xff] %vm2174, %v2875
    %2892 = vst.msk [vmem:[#allocation2 + $0xe0] sm:$0xff] %vm2174, %v2876
    %2893 = vst.msk [vmem:[#allocation2 + $0xf0] sm:$0xff] %vm2174, %v2877
    %2894 = vst.msk [vmem:[#allocation2 + $0x100] sm:$0xff] %vm2174, %v2878
    %2895 = vst.msk [vmem:[#allocation2 + $0x110] sm:$0xff] %vm2174, %v2879
    %v2896 = vld [vmem:[%s2173 + $0x1] sm:$0xff]
    %v2897 = vld [vmem:[%s2173 + $0x11] sm:$0xff]
    %v2898 = vld [vmem:[%s2173 + $0x21] sm:$0xff]
    %v2899 = vld [vmem:[%s2173 + $0x31] sm:$0xff]
    %v2900 = vld [vmem:[%s2173 + $0x41] sm:$0xff]
    %v2901 = vld [vmem:[%s2173 + $0x51] sm:$0xff]
    %v2902 = vld [vmem:[%s2173 + $0x61] sm:$0xff]
    %v2903 = vld [vmem:[%s2173 + $0x71] sm:$0xff]
    %v2904 = vld [vmem:[%s2173 + $0xa1] sm:$0xff]
    %v2905 = vld [vmem:[%s2173 + $0xb1] sm:$0xff]
    %v2906 = vld [vmem:[%s2173 + $0xc1] sm:$0xff]
    %v2907 = vld [vmem:[%s2173 + $0xd1] sm:$0xff]
    %v2908 = vld [vmem:[%s2173 + $0xe1] sm:$0xff]
    %v2909 = vld [vmem:[%s2173 + $0xf1] sm:$0xff]
    %v2910 = vld [vmem:[%s2173 + $0x101] sm:$0xff]
    %v2911 = vld [vmem:[%s2173 + $0x111] sm:$0xff]
    %v2912 = vld [vmem:[%s4] sm:$0x1]
    %v2914 = vlaneseq
    %v2915 = vshrl.u32 %v2914, 7
    %v2916 = vsub.s32 0, %v2915
    %v2917 = vrot.slane %v2912, %v2916
    %v2919 = vadd.f32 %v2896, %v2917
    %v2920 = vadd.f32 %v2897, %v2917
    %v2921 = vadd.f32 %v2898, %v2917
    %v2922 = vadd.f32 %v2899, %v2917
    %v2923 = vadd.f32 %v2900, %v2917
    %v2924 = vadd.f32 %v2901, %v2917
    %v2925 = vadd.f32 %v2902, %v2917
    %v2926 = vadd.f32 %v2903, %v2917
    %v2927 = vadd.f32 %v2904, %v2917
    %v2928 = vadd.f32 %v2905, %v2917
    %v2929 = vadd.f32 %v2906, %v2917
    %v2930 = vadd.f32 %v2907, %v2917
    %v2931 = vadd.f32 %v2908, %v2917
    %v2932 = vadd.f32 %v2909, %v2917
    %v2933 = vadd.f32 %v2910, %v2917
    %v2934 = vadd.f32 %v2911, %v2917
    %v2935 = vmax.f32 %v2919, 0.0
    %v2936 = vmax.f32 %v2920, 0.0
    %v2937 = vmax.f32 %v2921, 0.0
    %v2938 = vmax.f32 %v2922, 0.0
    %v2939 = vmax.f32 %v2923, 0.0
    %v2940 = vmax.f32 %v2924, 0.0
    %v2941 = vmax.f32 %v2925, 0.0
    %v2942 = vmax.f32 %v2926, 0.0
    %v2943 = vmax.f32 %v2927, 0.0
    %v2944 = vmax.f32 %v2928, 0.0
    %v2945 = vmax.f32 %v2929, 0.0
    %v2946 = vmax.f32 %v2930, 0.0
    %v2947 = vmax.f32 %v2931, 0.0
    %v2948 = vmax.f32 %v2932, 0.0
    %v2949 = vmax.f32 %v2933, 0.0
    %v2950 = vmax.f32 %v2934, 0.0
    %v2951 = vld [vmem:[%s5] sm:$0xff]
    %v2952 = vld [vmem:[%s5 + $0x8] sm:$0xff]
    %v2953 = vld [vmem:[%s5 + $0x10] sm:$0xff]
    %v2954 = vld [vmem:[%s5 + $0x18] sm:$0xff]
    %v2955 = vld [vmem:[%s6] sm:$0x1]
    %v2957 = vlaneseq
    %v2958 = vshrl.u32 %v2957, 7
    %v2959 = vsub.s32 0, %v2958
    %v2960 = vrot.slane %v2955, %v2959
    %v2963 = vsel %vm2174, %v2935, 0
    %v2966 = vsel %vm2174, %v2936, 0
    %v2969 = vsel %vm2174, %v2937, 0
    %v2972 = vsel %vm2174, %v2938, 0
    %v2975 = vsel %vm2174, %v2939, 0
    %v2978 = vsel %vm2174, %v2940, 0
    %v2981 = vsel %vm2174, %v2941, 0
    %v2984 = vsel %vm2174, %v2942, 0
    %v2987 = vsel %vm2174, %v2943, 0
    %v2990 = vsel %vm2174, %v2944, 0
    %v2993 = vsel %vm2174, %v2945, 0
    %v2996 = vsel %vm2174, %v2946, 0
    %v2999 = vsel %vm2174, %v2947, 0
    %v3002 = vsel %vm2174, %v2948, 0
    %v3005 = vsel %vm2174, %v2949, 0
    %v3008 = vsel %vm2174, %v2950, 0
    %3010 = vmatprep.subr.mxu0 0.0
    %3011 = vmatpush1.msra.mxu0 %v2951
    %3012 = vmatprep.subr.mxu0 0.0
    %3013 = vmatpush1.msra.mxu0 %v2952
    %3014 = vmatprep.subr.mxu0 0.0
    %3015 = vmatpush1.msra.mxu0 %v2953
    %3016 = vmatprep.subr.mxu0 0.0
    %3017 = vmatpush1.msra.mxu0 %v2954
    %3018 = vmatprep.subr.mxu0 0.0
    %3019 = vmatpush1.msra.mxu0 0.0
    %3020 = vmatprep.subr.mxu0 0.0
    %3021 = vmatpush1.msra.mxu0 0.0
    %3022 = vmatprep.subr.mxu0 0.0
    %3023 = vmatpush1.msra.mxu0 0.0
    %3024 = vmatprep.subr.mxu0 0.0
    %3025 = vmatpush1.msra.mxu0 0.0
    %3026 = vmatprep.subr.mxu0 0.0
    %3027 = vmatpush1.msra.mxu0 0.0
    %3028 = vmatprep.subr.mxu0 0.0
    %3029 = vmatpush1.msra.mxu0 0.0
    %3030 = vmatprep.subr.mxu0 0.0
    %3031 = vmatpush1.msra.mxu0 0.0
    %3032 = vmatprep.subr.mxu0 0.0
    %3033 = vmatpush1.msra.mxu0 0.0
    %3034 = vmatprep.subr.mxu0 0.0
    %3035 = vmatpush1.msra.mxu0 0.0
    %3036 = vmatprep.subr.mxu0 0.0
    %3037 = vmatpush1.msra.mxu0 0.0
    %3038 = vmatprep.subr.mxu0 0.0
    %3039 = vmatpush1.msra.mxu0 0.0
    %3040 = vmatprep.subr.mxu0 0.0
    %3041 = vmatpush1.msra.mxu0 0.0
    %3042 = vmatprep.subr.mxu0 0.0
    %3043 = vmatpush1.msra.mxu0 0.0
    %3044 = vmatprep.subr.mxu0 0.0
    %3045 = vmatpush1.msra.mxu0 0.0
    %3046 = vmatprep.subr.mxu0 0.0
    %3047 = vmatpush1.msra.mxu0 0.0
    %3048 = vmatprep.subr.mxu0 0.0
    %3049 = vmatpush1.msra.mxu0 0.0
    %3050 = vmatprep.subr.mxu0 0.0
    %3051 = vmatpush1.msra.mxu0 0.0
    %3052 = vmatprep.subr.mxu0 0.0
    %3053 = vmatpush1.msra.mxu0 0.0
    %3054 = vmatprep.subr.mxu0 0.0
    %3055 = vmatpush1.msra.mxu0 0.0
    %3056 = vmatprep.subr.mxu0 0.0
    %3057 = vmatpush1.msra.mxu0 0.0
    %3058 = vmatprep.subr.mxu0 0.0
    %3059 = vmatpush1.msra.mxu0 0.0
    %3060 = vmatprep.subr.mxu0 0.0
    %3061 = vmatpush1.msra.mxu0 0.0
    %3062 = vmatprep.subr.mxu0 0.0
    %3063 = vmatpush1.msra.mxu0 0.0
    %3064 = vmatprep.subr.mxu0 0.0
    %3065 = vmatpush1.msra.mxu0 0.0
    %3066 = vmatprep.subr.mxu0 0.0
    %3067 = vmatpush1.msra.mxu0 0.0
    %3068 = vmatprep.subr.mxu0 0.0
    %3069 = vmatpush1.msra.mxu0 0.0
    %3070 = vmatprep.subr.mxu0 0.0
    %3071 = vmatpush1.msra.mxu0 0.0
    %3072 = vmatprep.subr.mxu0 0.0
    %3073 = vmatpush1.msra.mxu0 0.0
    %3074 = vmatprep.mubr.f32.mxu0 0.0
    %3075 = vmatmul.mubr.f32.gmra.mrb[0].mxu0 %v2963
    %v3076 = vpop.f32.mrb[0].mxu0
    %v3077 = vadd.f32 %v2960, %v3076
    %v3078 = vpop.f32.mrb[0].mxu0
    %3079 = vmatprep.mubr.f32.mxu0 0.0
    %3080 = vmatmul.mubr.f32.gmra.mrb[0].mxu0 %v2966
    %v3081 = vpop.f32.mrb[0].mxu0
    %v3082 = vadd.f32 %v2960, %v3081
    %v3083 = vpop.f32.mrb[0].mxu0
    %3084 = vmatprep.mubr.f32.mxu0 0.0
    %3085 = vmatmul.mubr.f32.gmra.mrb[0].mxu0 %v2969
    %v3086 = vpop.f32.mrb[0].mxu0
    %v3087 = vadd.f32 %v2960, %v3086
    %v3088 = vpop.f32.mrb[0].mxu0
    %3089 = vmatprep.mubr.f32.mxu0 0.0
    %3090 = vmatmul.mubr.f32.gmra.mrb[0].mxu0 %v2972
    %v3091 = vpop.f32.mrb[0].mxu0
    %v3092 = vadd.f32 %v2960, %v3091
    %v3093 = vpop.f32.mrb[0].mxu0
    %3094 = vmatprep.mubr.f32.mxu0 0.0
    %3095 = vmatmul.mubr.f32.gmra.mrb[0].mxu0 %v2975
    %v3096 = vpop.f32.mrb[0].mxu0
    %v3097 = vadd.f32 %v2960, %v3096
    %v3098 = vpop.f32.mrb[0].mxu0
    %3099 = vmatprep.mubr.f32.mxu0 0.0
    %3100 = vmatmul.mubr.f32.gmra.mrb[0].mxu0 %v2978
    %v3101 = vpop.f32.mrb[0].mxu0
    %v3102 = vadd.f32 %v2960, %v3101
    %v3103 = vpop.f32.mrb[0].mxu0
    %3104 = vmatprep.mubr.f32.mxu0 0.0
    %3105 = vmatmul.mubr.f32.gmra.mrb[0].mxu0 %v2981
    %v3106 = vpop.f32.mrb[0].mxu0
    %v3107 = vadd.f32 %v2960, %v3106
    %v3108 = vpop.f32.mrb[0].mxu0
    %3109 = vmatprep.mubr.f32.mxu0 0.0
    %3110 = vmatmul.mubr.f32.gmra.mrb[0].mxu0 %v2984
    %v3111 = vpop.f32.mrb[0].mxu0
    %v3112 = vadd.f32 %v2960, %v3111
    %v3113 = vpop.f32.mrb[0].mxu0
    %3114 = vmatprep.mubr.f32.mxu0 0.0
    %3115 = vmatmul.mubr.f32.gmra.mrb[0].mxu0 %v2987
    %v3116 = vpop.f32.mrb[0].mxu0
    %v3117 = vadd.f32 %v2960, %v3116
    %v3118 = vpop.f32.mrb[0].mxu0
    %3119 = vmatprep.mubr.f32.mxu0 0.0
    %3120 = vmatmul.mubr.f32.gmra.mrb[0].mxu0 %v2990
    %v3121 = vpop.f32.mrb[0].mxu0
    %v3122 = vadd.f32 %v2960, %v3121
    %v3123 = vpop.f32.mrb[0].mxu0
    %3124 = vmatprep.mubr.f32.mxu0 0.0
    %3125 = vmatmul.mubr.f32.gmra.mrb[0].mxu0 %v2993
    %v3126 = vpop.f32.mrb[0].mxu0
    %v3127 = vadd.f32 %v2960, %v3126
    %v3128 = vpop.f32.mrb[0].mxu0
    %3129 = vmatprep.mubr.f32.mxu0 0.0
    %3130 = vmatmul.mubr.f32.gmra.mrb[0].mxu0 %v2996
    %v3131 = vpop.f32.mrb[0].mxu0
    %v3132 = vadd.f32 %v2960, %v3131
    %v3133 = vpop.f32.mrb[0].mxu0
    %3134 = vmatprep.mubr.f32.mxu0 0.0
    %3135 = vmatmul.mubr.f32.gmra.mrb[0].mxu0 %v2999
    %v3136 = vpop.f32.mrb[0].mxu0
    %v3137 = vadd.f32 %v2960, %v3136
    %v3138 = vpop.f32.mrb[0].mxu0
    %3139 = vmatprep.mubr.f32.mxu0 0.0
    %3140 = vmatmul.mubr.f32.gmra.mrb[0].mxu0 %v3002
    %v3141 = vpop.f32.mrb[0].mxu0
    %v3142 = vadd.f32 %v2960, %v3141
    %v3143 = vpop.f32.mrb[0].mxu0
    %3144 = vmatprep.mubr.f32.mxu0 0.0
    %3145 = vmatmul.mubr.f32.gmra.mrb[0].mxu0 %v3005
    %v3146 = vpop.f32.mrb[0].mxu0
    %v3147 = vadd.f32 %v2960, %v3146
    %v3148 = vpop.f32.mrb[0].mxu0
    %3149 = vmatprep.mubr.f32.mxu0 0.0
    %3150 = vmatmul.mubr.f32.gmra.mrb[0].mxu0 %v3008
    %v3151 = vpop.f32.mrb[0].mxu0
    %v3152 = vadd.f32 %v2960, %v3151
    %v3153 = vpop.f32.mrb[0].mxu0
    %3154 = vdwg.mxu0
    %vm3155 = vcmask 171008
    %3156 = vst.msk [vmem:[#allocation6] sm:$0xff] %vm3155, %v3077
    %3157 = vst.msk [vmem:[#allocation6 + $0x8] sm:$0xff] %vm3155, %v3082
    %3158 = vst.msk [vmem:[#allocation6 + $0x10] sm:$0xff] %vm3155, %v3087
    %3159 = vst.msk [vmem:[#allocation6 + $0x18] sm:$0xff] %vm3155, %v3092
    %3160 = vst.msk [vmem:[#allocation6 + $0x20] sm:$0xff] %vm3155, %v3097
    %3161 = vst.msk [vmem:[#allocation6 + $0x28] sm:$0xff] %vm3155, %v3102
    %3162 = vst.msk [vmem:[#allocation6 + $0x30] sm:$0xff] %vm3155, %v3107
    %3163 = vst.msk [vmem:[#allocation6 + $0x38] sm:$0xff] %vm3155, %v3112
    %3164 = vst.msk [vmem:[#allocation6 + $0x40] sm:$0xff] %vm3155, %v3117
    %3165 = vst.msk [vmem:[#allocation6 + $0x48] sm:$0xff] %vm3155, %v3122
    %3166 = vst.msk [vmem:[#allocation6 + $0x50] sm:$0xff] %vm3155, %v3127
    %3167 = vst.msk [vmem:[#allocation6 + $0x58] sm:$0xff] %vm3155, %v3132
    %3168 = vst.msk [vmem:[#allocation6 + $0x60] sm:$0xff] %vm3155, %v3137
    %3169 = vst.msk [vmem:[#allocation6 + $0x68] sm:$0xff] %vm3155, %v3142
    %3170 = vst.msk [vmem:[#allocation6 + $0x70] sm:$0xff] %vm3155, %v3147
    %3171 = vst.msk [vmem:[#allocation6 + $0x78] sm:$0xff] %vm3155, %v3152
    // Predicated region
    $region34: #{tpu_custom_call.1} parent=1 // pred_check
      _
    $region35: #{tpu_custom_call.1} parent=1 // pred_check_branch
      %3173 = sbr.rel (0) target = $region37
    $region36: #{tpu_custom_call.1} parent=1 // pred_region
      %s3175 = ssub.s32 2048, 2048
      %3176 = vsyncadd [#allocation5], %s3175
      %s3177 = sshll.u32 [#allocation6], 4
      %s3178 = int_to_ptr.vmem [resolvable:$true] %s3177
      %3183 = dma.vmem_to_hbm [thread:$0]  %s3178, 2048, %s7, [#allocation5], 128, 128, 8
    $region37: #{tpu_custom_call.1} parent=1 // pred_fallthru
      _
    // Predicated region
    $region38: #{tpu_custom_call.1} parent=1 // pred_check
      _
    $region39: #{tpu_custom_call.1} parent=1 // pred_check_branch
      %3185 = sbr.rel (0) target = $region41
    $region40: #{tpu_custom_call.1} parent=1 // pred_region
      %3186 = dma.done [#allocation5], 2048
    $region41: #{tpu_custom_call.1} parent=1 // pred_fallthru
      _
    %3187 = vsyncpa [#allocation4], 1
    %3188 = vsyncpa [#allocation5], 1

</llo_original>
